<compile_context>
chip_gen: v6e
topology: v6e:2x2x1
jax: 0.10.0
libtpu: 0.0.40
codegen_flags: <defaults>
</compile_context>

<pallas_src>
import functools

import jax
import jax.numpy as jnp
from jax.experimental import pallas as pl
from jax.experimental.pallas import tpu as pltpu

_LANES = 128


def _conv_stats_kernel(xb_ref, w_ref, y_ref, stats_ref, *, H, W, TH):
    """Pass 1: relu -> 3x3 conv (9 accumulated K=Cin matmuls) -> partial BN stats.

    xb_ref   : (1, 1, (TH+2)*W, Cin)  f32  halo'd input band, rows are W-major
    w_ref    : (9, Cin, Cout_pad)     compute dtype, tap t = kh*3 + kw
    y_ref    : (1, 1, TH*W, Cout_pad) f32  conv output band
    stats_ref: (1, 1, 2, Cout_pad)    f32  [sum, band-mean-centred sum of squares]
    """
    b = pl.program_id(1)
    _, _, L, Cin = xb_ref.shape
    Cout = w_ref.shape[-1]
    Mb = TH * W
    cdt = w_ref.dtype

    # Fused leading ReLU (zero halo rows stay zero); cast once so the shifted
    # copies below are already half-width when compute dtype is bf16.
    xr = jnp.maximum(xb_ref[0, 0], 0.0).astype(cdt)                  # (L, Cin)

    # W-edge handling without a zero-padded scratch: rows are W-major, so the
    # (w-1)/(w+1) taps are +-1 row shifts once rows that would cross an image
    # row boundary are masked to zero (iota mod W).
    wpos = jax.lax.broadcasted_iota(jnp.int32, (L, 1), 0) % W
    zrow = jnp.zeros((1, Cin), cdt)
    x_m1 = jnp.where(wpos == 0, 0.0,
                     jnp.concatenate([zrow, xr[:L - 1]], axis=0))    # col w-1
    x_p1 = jnp.where(wpos == W - 1, 0.0,
                     jnp.concatenate([xr[1:], zrow], axis=0))        # col w+1
    shifted = (x_m1, xr, x_p1)

    # 3x3 conv = 9 accumulated (Mb x Cin) @ (Cin x Cout_pad) MXU matmuls read
    # directly from the shifted band (no materialized im2col).
    acc = jnp.zeros((Mb, Cout), jnp.float32)
    for kh in range(3):
        for kw in range(3):
            lhs = shifted[kw][kh * W:kh * W + Mb, :]
            acc = acc + jnp.dot(lhs, w_ref[kh * 3 + kw],
                                preferred_element_type=jnp.float32)
    y_ref[0, 0] = acc

    # Per-band BN partials over valid rows only (the last band per image may
    # be ragged): sum and band-mean-centred sum of squares (stable).
    valid = jnp.minimum(TH, H - b * TH) * W                  # valid flattened rows
    rmask = jax.lax.broadcasted_iota(jnp.int32, (Mb, 1), 0) < valid
    ym = jnp.where(rmask, acc, 0.0)
    s = jnp.sum(ym, axis=0, keepdims=True)                   # (1, Cout_pad)
    mean_b = s * (1.0 / valid.astype(jnp.float32))
    d = jnp.where(rmask, acc - mean_b, 0.0)
    m2 = jnp.sum(d * d, axis=0, keepdims=True)
    stats_ref[0, 0] = jnp.concatenate([s, m2], axis=0)


def _bn_relu_kernel(y_ref, scale_ref, shift_ref, o_ref):
    """Pass 2: y * scale + shift (BN mean/var/affine folded), then ReLU."""
    o_ref[0, 0] = jnp.maximum(y_ref[0, 0] * scale_ref[...] + shift_ref[...], 0.0)


def fused_relu_conv_bn_relu_nhwc(x_nhwc, w_oihw, gamma, beta, *, eps=1e-3,
                                 compute_dtype=jnp.float32, band_rows=None):
    """NHWC-native fused relu->conv3x3->batchnorm(train)->relu.

    x_nhwc: (N, H, W, 64) f32; w_oihw: (96, 64, 3, 3); gamma/beta: (96,).
    Returns (N, H, W, 96) f32.  Keep callers NHWC end-to-end so no layout
    transposes are needed around this op.
    """
    N, H, W, Cin = x_nhwc.shape
    Cout, Cin_w, KH, KW = w_oihw.shape
    assert (Cin_w, KH, KW) == (Cin, 3, 3)
    Cout_pad = _LANES * pl.cdiv(Cout, _LANES)                # 96 -> 128 lane-dense
    csize = jnp.dtype(compute_dtype).itemsize

    # Row-band size: large enough to amortize per-step overhead and keep the
    # MXU LHS tall, small enough that a double-buffered band stays a few MiB.
    if band_rows is None:
        per_row = W * (Cin * 4 + 3 * Cin * csize + 2 * Cout_pad * 4)
        band_rows = max(8, (2 << 20) // max(per_row, 1))
    TH = int(min(H, max(1, band_rows)))
    num_bands = pl.cdiv(H, TH)
    H_pad = num_bands * TH
    L, Mb = (TH + 2) * W, TH * W

    # Weights in per-tap (9, Cin, Cout_pad) layout, lane-padded, compute dtype.
    w_taps = jnp.transpose(w_oihw, (2, 3, 1, 0)).reshape(KH * KW, Cin, Cout)
    w_taps = jnp.pad(w_taps, ((0, 0), (0, 0), (0, Cout_pad - Cout)))
    w_taps = w_taps.astype(compute_dtype)

    # Halo'd row bands: band b of image n = rows [b*TH-1, b*TH+TH+1) of x
    # (zero outside), flattened W-major.  This single wrapper-side pass
    # replaces any in-kernel halo padding / manual DMA and keeps every band
    # independent, so both grid axes can be "parallel".
    x_hp = jnp.pad(x_nhwc, ((0, 0), (1, 1 + H_pad - H), (0, 0), (0, 0)))
    xb = jnp.stack([x_hp[:, b * TH:b * TH + TH + 2] for b in range(num_bands)],
                   axis=1)
    xb = xb.reshape(N, num_bands, L, Cin)

    kern1 = functools.partial(_conv_stats_kernel, H=H, W=W, TH=TH)
    flops1 = 2 * N * num_bands * Mb * (KH * KW * Cin) * Cout_pad
    bytes1 = (xb.size * 4 + w_taps.size * csize
              + N * num_bands * (Mb * Cout_pad + 2 * Cout_pad) * 4)
    vmem_est = (2 * (L * Cin * 4 + w_taps.size * csize + Mb * Cout_pad * 4)
                + 3 * L * Cin * csize + 2 * Mb * Cout_pad * 4 + (4 << 20))
    cparams = pltpu.CompilerParams(
        dimension_semantics=("parallel", "parallel"),
        vmem_limit_bytes=int(min(max(vmem_est, 32 << 20), 56 << 20)))

    y, stats = pl.pallas_call(
        kern1,
        grid=(N, num_bands),
        in_specs=[
            pl.BlockSpec((1, 1, L, Cin), lambda n, b: (n, b, 0, 0)),
            pl.BlockSpec((KH * KW, Cin, Cout_pad), lambda n, b: (0, 0, 0)),
        ],
        out_specs=[
            pl.BlockSpec((1, 1, Mb, Cout_pad), lambda n, b: (n, b, 0, 0)),
            pl.BlockSpec((1, 1, 2, Cout_pad), lambda n, b: (n, b, 0, 0)),
        ],
        out_shape=[
            jax.ShapeDtypeStruct((N, num_bands, Mb, Cout_pad), jnp.float32),
            jax.ShapeDtypeStruct((N, num_bands, 2, Cout_pad), jnp.float32),
        ],
        compiler_params=cparams,
        cost_estimate=pl.CostEstimate(flops=int(flops1), transcendentals=0,
                                      bytes_accessed=int(bytes1)),
    )(xb, w_taps)

    # Numerically stable cross-band merge of BN batch statistics
    # (parallel-variance / Chan formula; biased variance, like BatchNorm2d).
    vrows = jnp.minimum(TH, H - TH * jnp.arange(num_bands))
    cnts = (vrows * W).astype(jnp.float32)[None, :, None]        # (1, B, 1)
    total = float(N * H * W)
    sums, m2s = stats[:, :, 0, :], stats[:, :, 1, :]             # (N, B, C)
    mean = jnp.sum(sums, axis=(0, 1)) / total                    # (C,)
    band_means = sums / cnts
    m2 = jnp.sum(m2s + cnts * jnp.square(band_means - mean), axis=(0, 1))
    var = m2 / total
    g_pad = jnp.pad(gamma.astype(jnp.float32), (0, Cout_pad - Cout))
    b_pad = jnp.pad(beta.astype(jnp.float32), (0, Cout_pad - Cout))
    scale = (g_pad * jax.lax.rsqrt(var + eps)).reshape(1, Cout_pad)
    shift = (b_pad - mean * scale[0]).reshape(1, Cout_pad)

    out = pl.pallas_call(
        _bn_relu_kernel,
        grid=(N, num_bands),
        in_specs=[
            pl.BlockSpec((1, 1, Mb, Cout_pad), lambda n, b: (n, b, 0, 0)),
            pl.BlockSpec((1, Cout_pad), lambda n, b: (0, 0)),
            pl.BlockSpec((1, Cout_pad), lambda n, b: (0, 0)),
        ],
        out_specs=pl.BlockSpec((1, 1, Mb, Cout_pad), lambda n, b: (n, b, 0, 0)),
        out_shape=jax.ShapeDtypeStruct((N, num_bands, Mb, Cout_pad), jnp.float32),
        compiler_params=pltpu.CompilerParams(
            dimension_semantics=("parallel", "parallel")),
        cost_estimate=pl.CostEstimate(flops=int(2 * y.size), transcendentals=0,
                                      bytes_accessed=int(2 * y.size * 4)),
    )(y, scale, shift)

    # Un-band + drop H / Cout padding (fold the slice into the consumer when
    # the surrounding model keeps 128-channel / NHWC tensors).
    out = out.reshape(N, H_pad, W, Cout_pad)[:, :H, :, :Cout]
    return out


def fused_relu_conv_bn_relu(x_nchw, w_oihw, gamma, beta, **kwargs):
    """NCHW wrapper matching the PyTorch layout (adds two transposes; prefer
    the NHWC entry point inside an NHWC-native model)."""
    x_nhwc = jnp.transpose(x_nchw, (0, 2, 3, 1))
    out_nhwc = fused_relu_conv_bn_relu_nhwc(x_nhwc, w_oihw, gamma, beta, **kwargs)
    return jnp.transpose(out_nhwc, (0, 3, 1, 2))


def _reference(x_nchw, w_oihw, gamma, beta, eps=1e-3):
    """Pure-JAX reference (training-mode BN forward)."""
    x = jnp.maximum(x_nchw, 0.0)
    y = jax.lax.conv_general_dilated(
        x, w_oihw, window_strides=(1, 1), padding=((1, 1), (1, 1)),
        dimension_numbers=("NCHW", "OIHW", "NCHW"))
    mean = jnp.mean(y, axis=(0, 2, 3), keepdims=True)
    var = jnp.mean(jnp.square(y - mean), axis=(0, 2, 3), keepdims=True)
    y = (y - mean) * jax.lax.rsqrt(var + eps)
    y = y * gamma.reshape(1, -1, 1, 1) + beta.reshape(1, -1, 1, 1)
    return jnp.maximum(y, 0.0)


# TODO(synk): BatchNorm2d running_mean/running_var (momentum 0.1) buffer
#             updates are not reproduced; only the forward output is.

if __name__ == "__main__":
    key = jax.random.PRNGKey(0)
    kx, kw, kg, kb = jax.random.split(key, 4)

    # Shapes from the module: x87 = (1, 64, 25, 25); Conv2d(64 -> 96, 3x3, p=1).
    N, Cin, H, W = 1, 64, 25, 25
    Cout = 96
    x = jax.random.normal(kx, (N, Cin, H, W), jnp.float32)
    w = jax.random.normal(kw, (Cout, Cin, 3, 3), jnp.float32) * 0.05
    gamma = 1.0 + 0.1 * jax.random.normal(kg, (Cout,), jnp.float32)
    beta = 0.1 * jax.random.normal(kb, (Cout,), jnp.float32)

    ref = jax.block_until_ready(_reference(x, w, gamma, beta))

    # band_rows=8 -> 4 row-bands (last one ragged) to exercise the banded grid
    # and the stable stats merge even at this small spatial size.
    run_f32 = jax.jit(functools.partial(fused_relu_conv_bn_relu,
                                        compute_dtype=jnp.float32, band_rows=8))
    out = jax.block_until_ready(run_f32(x, w, gamma, beta))
    assert out.shape == (N, Cout, H, W), out.shape
    assert jnp.allclose(out, ref, rtol=1e-4, atol=1e-4), "f32 kernel mismatch"

    # bf16 MXU inputs with f32 accumulation (fast path; looser tolerance).
    run_bf16 = jax.jit(functools.partial(fused_relu_conv_bn_relu,
                                         compute_dtype=jnp.bfloat16, band_rows=8))
    out_bf16 = jax.block_until_ready(run_bf16(x, w, gamma, beta))
    assert out_bf16.shape == (N, Cout, H, W), out_bf16.shape
    assert jnp.allclose(out_bf16, ref, rtol=3e-2, atol=3e-2), "bf16 kernel mismatch"

    print("KERNEL_OK")
</pallas_src>

<mosaic_0001>
module attributes {stable_mosaic.version = 11 : i64} {
  func.func @_conv_stats_kernel(%arg0: i32, %arg1: i32, %arg2: memref<1x1x250x64xf32, #tpu.memory_space<vmem>>, %arg3: memref<9x64x128xf32, #tpu.memory_space<vmem>>, %arg4: memref<1x1x200x128xf32, #tpu.memory_space<vmem>>, %arg5: memref<1x1x2x128xf32, #tpu.memory_space<vmem>>) attributes {dimension_semantics = [#tpu.dimension_semantics<parallel>, #tpu.dimension_semantics<parallel>], iteration_bounds = array<i64: 1, 4>, scalar_prefetch = 0 : i64, scratch_operands = 0 : i64, tpu.core_type = #tpu.core_type<tc>, window_params = [{transform_indices = @transform_0, window_bounds = array<i64: 1, 1, 250, 64>}, {pipeline_mode = #tpu.pipeline_mode<synchronous>, transform_indices = @transform_1, window_bounds = array<i64: 9, 64, 128>}, {transform_indices = @transform_2, window_bounds = array<i64: 1, 1, 200, 128>}, {transform_indices = @transform_3, window_bounds = array<i64: 1, 1, 2, 128>}]} {
    %c0 = arith.constant 0 : index
    %c0_0 = arith.constant 0 : index
    %c0_1 = arith.constant 0 : index
    %c0_2 = arith.constant 0 : index
    %0 = vector.load %arg2[%c0, %c0_0, %c0_1, %c0_2] : memref<1x1x250x64xf32, #tpu.memory_space<vmem>>, vector<1x1x250x64xf32>
    %1 = vector.shape_cast %0 : vector<1x1x250x64xf32> to vector<250x64xf32>
    %cst = arith.constant 0.000000e+00 : f32
    %2 = vector.broadcast %cst : f32 to vector<250x64xf32>
    %3 = arith.maximumf %1, %2 : vector<250x64xf32>
    %4 = tpu.iota {dimensions = array<i32: 0>} : vector<250x1xi32>
    %c25_i32 = arith.constant 25 : i32
    %c0_i32 = arith.constant 0 : i32
    %5 = arith.cmpi eq, %c25_i32, %c0_i32 : i32
    %c1_i32 = arith.constant 1 : i32
    %6 = arith.select %5, %c1_i32, %c25_i32 : i32
    %7 = vector.broadcast %6 : i32 to vector<250x1xi32>
    %8 = arith.remsi %4, %7 : vector<250x1xi32>
    %c0_i32_3 = arith.constant 0 : i32
    %9 = vector.broadcast %c0_i32_3 : i32 to vector<250x1xi32>
    %10 = arith.cmpi ne, %8, %9 : vector<250x1xi32>
    %c0_i32_4 = arith.constant 0 : i32
    %11 = vector.broadcast %c0_i32_4 : i32 to vector<250x1xi32>
    %12 = arith.cmpi slt, %8, %11 : vector<250x1xi32>
    %c0_i32_5 = arith.constant 0 : i32
    %13 = arith.cmpi slt, %6, %c0_i32_5 : i32
    %14 = vector.broadcast %13 : i1 to vector<250x1xi1>
    %15 = vector.broadcast %14 : vector<250x1xi1> to vector<250x1xi1>
    %16 = arith.xori %12, %15 : vector<250x1xi1>
    %17 = arith.andi %16, %10 : vector<250x1xi1>
    %18 = vector.broadcast %6 : i32 to vector<250x1xi32>
    %19 = arith.addi %8, %18 : vector<250x1xi32>
    %20 = arith.select %17, %19, %8 : vector<250x1xi1>, vector<250x1xi32>
    %cst_6 = arith.constant 0.000000e+00 : f32
    %21 = vector.broadcast %cst_6 : f32 to vector<1x64xf32>
    %c0_i32_7 = arith.constant 0 : i32
    %22 = vector.broadcast %c0_i32_7 : i32 to vector<250x1xi32>
    %23 = arith.cmpi eq, %20, %22 : vector<250x1xi32>
    %24 = vector.extract_strided_slice %3 {offsets = [0, 0], sizes = [249, 64], strides = [1, 1]} : vector<250x64xf32> to vector<249x64xf32>
    %25 = tpu.concatenate %21, %24 in 0 : vector<1x64xf32>, vector<249x64xf32> -> vector<250x64xf32>
    %cst_8 = arith.constant 0.000000e+00 : f32
    %26 = vector.shape_cast %23 : vector<250x1xi1> to vector<250x1xi1>
    %27 = vector.broadcast %26 : vector<250x1xi1> to vector<250x64xi1>
    %28 = vector.broadcast %cst_8 : f32 to vector<250x64xf32>
    %29 = arith.select %27, %28, %25 : vector<250x64xi1>, vector<250x64xf32>
    %c24_i32 = arith.constant 24 : i32
    %30 = vector.broadcast %c24_i32 : i32 to vector<250x1xi32>
    %31 = arith.cmpi eq, %20, %30 : vector<250x1xi32>
    %32 = vector.extract_strided_slice %3 {offsets = [1, 0], sizes = [249, 64], strides = [1, 1]} : vector<250x64xf32> to vector<249x64xf32>
    %33 = tpu.concatenate %32, %21 in 0 : vector<249x64xf32>, vector<1x64xf32> -> vector<250x64xf32>
    %cst_9 = arith.constant 0.000000e+00 : f32
    %34 = vector.shape_cast %31 : vector<250x1xi1> to vector<250x1xi1>
    %35 = vector.broadcast %34 : vector<250x1xi1> to vector<250x64xi1>
    %36 = vector.broadcast %cst_9 : f32 to vector<250x64xf32>
    %37 = arith.select %35, %36, %33 : vector<250x64xi1>, vector<250x64xf32>
    %cst_10 = arith.constant 0.000000e+00 : f32
    %38 = vector.broadcast %cst_10 : f32 to vector<200x128xf32>
    %39 = vector.extract_strided_slice %29 {offsets = [0, 0], sizes = [200, 64], strides = [1, 1]} : vector<250x64xf32> to vector<200x64xf32>
    %c0_11 = arith.constant 0 : index
    %c0_12 = arith.constant 0 : index
    %c0_13 = arith.constant 0 : index
    %40 = vector.load %arg3[%c0_11, %c0_12, %c0_13] : memref<9x64x128xf32, #tpu.memory_space<vmem>>, vector<1x64x128xf32>
    %41 = vector.shape_cast %40 : vector<1x64x128xf32> to vector<64x128xf32>
    %cst_14 = arith.constant dense<0.000000e+00> : vector<200x128xf32>
    %42 = tpu.matmul %39, %41, %cst_14 {dimension_numbers = #tpu.dot_dimension_numbers<[1], [0], [0], [1], [0, 0, 1, 1], [], []>} : vector<200x64xf32>, vector<64x128xf32>, vector<200x128xf32> -> vector<200x128xf32>
    %43 = arith.addf %38, %42 : vector<200x128xf32>
    %44 = vector.extract_strided_slice %3 {offsets = [0, 0], sizes = [200, 64], strides = [1, 1]} : vector<250x64xf32> to vector<200x64xf32>
    %c1 = arith.constant 1 : index
    %c0_15 = arith.constant 0 : index
    %c0_16 = arith.constant 0 : index
    %45 = vector.load %arg3[%c1, %c0_15, %c0_16] : memref<9x64x128xf32, #tpu.memory_space<vmem>>, vector<1x64x128xf32>
    %46 = vector.shape_cast %45 : vector<1x64x128xf32> to vector<64x128xf32>
    %cst_17 = arith.constant dense<0.000000e+00> : vector<200x128xf32>
    %47 = tpu.matmul %44, %46, %cst_17 {dimension_numbers = #tpu.dot_dimension_numbers<[1], [0], [0], [1], [0, 0, 1, 1], [], []>} : vector<200x64xf32>, vector<64x128xf32>, vector<200x128xf32> -> vector<200x128xf32>
    %48 = arith.addf %43, %47 : vector<200x128xf32>
    %49 = vector.extract_strided_slice %37 {offsets = [0, 0], sizes = [200, 64], strides = [1, 1]} : vector<250x64xf32> to vector<200x64xf32>
    %c2 = arith.constant 2 : index
    %c0_18 = arith.constant 0 : index
    %c0_19 = arith.constant 0 : index
    %50 = vector.load %arg3[%c2, %c0_18, %c0_19] : memref<9x64x128xf32, #tpu.memory_space<vmem>>, vector<1x64x128xf32>
    %51 = vector.shape_cast %50 : vector<1x64x128xf32> to vector<64x128xf32>
    %cst_20 = arith.constant dense<0.000000e+00> : vector<200x128xf32>
    %52 = tpu.matmul %49, %51, %cst_20 {dimension_numbers = #tpu.dot_dimension_numbers<[1], [0], [0], [1], [0, 0, 1, 1], [], []>} : vector<200x64xf32>, vector<64x128xf32>, vector<200x128xf32> -> vector<200x128xf32>
    %53 = arith.addf %48, %52 : vector<200x128xf32>
    %54 = vector.extract_strided_slice %29 {offsets = [25, 0], sizes = [200, 64], strides = [1, 1]} : vector<250x64xf32> to vector<200x64xf32>
    %c3 = arith.constant 3 : index
    %c0_21 = arith.constant 0 : index
    %c0_22 = arith.constant 0 : index
    %55 = vector.load %arg3[%c3, %c0_21, %c0_22] : memref<9x64x128xf32, #tpu.memory_space<vmem>>, vector<1x64x128xf32>
    %56 = vector.shape_cast %55 : vector<1x64x128xf32> to vector<64x128xf32>
    %cst_23 = arith.constant dense<0.000000e+00> : vector<200x128xf32>
    %57 = tpu.matmul %54, %56, %cst_23 {dimension_numbers = #tpu.dot_dimension_numbers<[1], [0], [0], [1], [0, 0, 1, 1], [], []>} : vector<200x64xf32>, vector<64x128xf32>, vector<200x128xf32> -> vector<200x128xf32>
    %58 = arith.addf %53, %57 : vector<200x128xf32>
    %59 = vector.extract_strided_slice %3 {offsets = [25, 0], sizes = [200, 64], strides = [1, 1]} : vector<250x64xf32> to vector<200x64xf32>
    %c4 = arith.constant 4 : index
    %c0_24 = arith.constant 0 : index
    %c0_25 = arith.constant 0 : index
    %60 = vector.load %arg3[%c4, %c0_24, %c0_25] : memref<9x64x128xf32, #tpu.memory_space<vmem>>, vector<1x64x128xf32>
    %61 = vector.shape_cast %60 : vector<1x64x128xf32> to vector<64x128xf32>
    %cst_26 = arith.constant dense<0.000000e+00> : vector<200x128xf32>
    %62 = tpu.matmul %59, %61, %cst_26 {dimension_numbers = #tpu.dot_dimension_numbers<[1], [0], [0], [1], [0, 0, 1, 1], [], []>} : vector<200x64xf32>, vector<64x128xf32>, vector<200x128xf32> -> vector<200x128xf32>
    %63 = arith.addf %58, %62 : vector<200x128xf32>
    %64 = vector.extract_strided_slice %37 {offsets = [25, 0], sizes = [200, 64], strides = [1, 1]} : vector<250x64xf32> to vector<200x64xf32>
    %c5 = arith.constant 5 : index
    %c0_27 = arith.constant 0 : index
    %c0_28 = arith.constant 0 : index
    %65 = vector.load %arg3[%c5, %c0_27, %c0_28] : memref<9x64x128xf32, #tpu.memory_space<vmem>>, vector<1x64x128xf32>
    %66 = vector.shape_cast %65 : vector<1x64x128xf32> to vector<64x128xf32>
    %cst_29 = arith.constant dense<0.000000e+00> : vector<200x128xf32>
    %67 = tpu.matmul %64, %66, %cst_29 {dimension_numbers = #tpu.dot_dimension_numbers<[1], [0], [0], [1], [0, 0, 1, 1], [], []>} : vector<200x64xf32>, vector<64x128xf32>, vector<200x128xf32> -> vector<200x128xf32>
    %68 = arith.addf %63, %67 : vector<200x128xf32>
    %69 = vector.extract_strided_slice %29 {offsets = [50, 0], sizes = [200, 64], strides = [1, 1]} : vector<250x64xf32> to vector<200x64xf32>
    %c6 = arith.constant 6 : index
    %c0_30 = arith.constant 0 : index
    %c0_31 = arith.constant 0 : index
    %70 = vector.load %arg3[%c6, %c0_30, %c0_31] : memref<9x64x128xf32, #tpu.memory_space<vmem>>, vector<1x64x128xf32>
    %71 = vector.shape_cast %70 : vector<1x64x128xf32> to vector<64x128xf32>
    %cst_32 = arith.constant dense<0.000000e+00> : vector<200x128xf32>
    %72 = tpu.matmul %69, %71, %cst_32 {dimension_numbers = #tpu.dot_dimension_numbers<[1], [0], [0], [1], [0, 0, 1, 1], [], []>} : vector<200x64xf32>, vector<64x128xf32>, vector<200x128xf32> -> vector<200x128xf32>
    %73 = arith.addf %68, %72 : vector<200x128xf32>
    %74 = vector.extract_strided_slice %3 {offsets = [50, 0], sizes = [200, 64], strides = [1, 1]} : vector<250x64xf32> to vector<200x64xf32>
    %c7 = arith.constant 7 : index
    %c0_33 = arith.constant 0 : index
    %c0_34 = arith.constant 0 : index
    %75 = vector.load %arg3[%c7, %c0_33, %c0_34] : memref<9x64x128xf32, #tpu.memory_space<vmem>>, vector<1x64x128xf32>
    %76 = vector.shape_cast %75 : vector<1x64x128xf32> to vector<64x128xf32>
    %cst_35 = arith.constant dense<0.000000e+00> : vector<200x128xf32>
    %77 = tpu.matmul %74, %76, %cst_35 {dimension_numbers = #tpu.dot_dimension_numbers<[1], [0], [0], [1], [0, 0, 1, 1], [], []>} : vector<200x64xf32>, vector<64x128xf32>, vector<200x128xf32> -> vector<200x128xf32>
    %78 = arith.addf %73, %77 : vector<200x128xf32>
    %79 = vector.extract_strided_slice %37 {offsets = [50, 0], sizes = [200, 64], strides = [1, 1]} : vector<250x64xf32> to vector<200x64xf32>
    %c8 = arith.constant 8 : index
    %c0_36 = arith.constant 0 : index
    %c0_37 = arith.constant 0 : index
    %80 = vector.load %arg3[%c8, %c0_36, %c0_37] : memref<9x64x128xf32, #tpu.memory_space<vmem>>, vector<1x64x128xf32>
    %81 = vector.shape_cast %80 : vector<1x64x128xf32> to vector<64x128xf32>
    %cst_38 = arith.constant dense<0.000000e+00> : vector<200x128xf32>
    %82 = tpu.matmul %79, %81, %cst_38 {dimension_numbers = #tpu.dot_dimension_numbers<[1], [0], [0], [1], [0, 0, 1, 1], [], []>} : vector<200x64xf32>, vector<64x128xf32>, vector<200x128xf32> -> vector<200x128xf32>
    %83 = arith.addf %78, %82 : vector<200x128xf32>
    %c0_39 = arith.constant 0 : index
    %c0_40 = arith.constant 0 : index
    %c0_41 = arith.constant 0 : index
    %c0_42 = arith.constant 0 : index
    %84 = vector.load %arg4[%c0_39, %c0_40, %c0_41, %c0_42] : memref<1x1x200x128xf32, #tpu.memory_space<vmem>>, vector<1x1x200x128xf32>
    %85 = vector.shape_cast %84 : vector<1x1x200x128xf32> to vector<200x128xf32>
    %86 = vector.shape_cast %83 : vector<200x128xf32> to vector<1x1x200x128xf32>
    tpu.vector_store %arg4[%c0_39, %c0_40, %c0_41, %c0_42], %86 {strides = array<i32>} : memref<1x1x200x128xf32, #tpu.memory_space<vmem>>, vector<1x1x200x128xf32>,
    %c8_i32 = arith.constant 8 : i32
    %87 = arith.muli %arg1, %c8_i32 : i32
    %c25_i32_43 = arith.constant 25 : i32
    %88 = arith.subi %c25_i32_43, %87 : i32
    %c8_i32_44 = arith.constant 8 : i32
    %89 = arith.minsi %c8_i32_44, %88 : i32
    %c25_i32_45 = arith.constant 25 : i32
    %90 = arith.muli %89, %c25_i32_45 : i32
    %91 = tpu.iota {dimensions = array<i32: 0>} : vector<200x1xi32>
    %92 = vector.broadcast %90 : i32 to vector<200x1xi32>
    %93 = arith.cmpi slt, %91, %92 : vector<200x1xi32>
    %cst_46 = arith.constant 0.000000e+00 : f32
    %94 = vector.shape_cast %93 : vector<200x1xi1> to vector<200x1xi1>
    %95 = vector.broadcast %94 : vector<200x1xi1> to vector<200x128xi1>
    %96 = vector.broadcast %cst_46 : f32 to vector<200x128xf32>
    %97 = arith.select %95, %83, %96 : vector<200x128xi1>, vector<200x128xf32>
    %cst_47 = arith.constant dense<0.000000e+00> : vector<128xf32>
    %98 = vector.multi_reduction <add>, %97, %cst_47 [0] : vector<200x128xf32> to vector<128xf32>
    %99 = vector.shape_cast %98 : vector<128xf32> to vector<1x128xf32>
    %100 = arith.sitofp %90 : i32 to f32
    %cst_48 = arith.constant 1.000000e+00 : f32
    %101 = arith.divf %cst_48, %100 : f32
    %102 = vector.broadcast %101 : f32 to vector<1x128xf32>
    %103 = arith.mulf %99, %102 : vector<1x128xf32>
    %104 = vector.broadcast %103 : vector<1x128xf32> to vector<200x128xf32>
    %105 = arith.subf %83, %104 : vector<200x128xf32>
    %cst_49 = arith.constant 0.000000e+00 : f32
    %106 = vector.shape_cast %93 : vector<200x1xi1> to vector<200x1xi1>
    %107 = vector.broadcast %106 : vector<200x1xi1> to vector<200x128xi1>
    %108 = vector.broadcast %cst_49 : f32 to vector<200x128xf32>
    %109 = arith.select %107, %105, %108 : vector<200x128xi1>, vector<200x128xf32>
    %110 = arith.mulf %109, %109 : vector<200x128xf32>
    %cst_50 = arith.constant dense<0.000000e+00> : vector<128xf32>
    %111 = vector.multi_reduction <add>, %110, %cst_50 [0] : vector<200x128xf32> to vector<128xf32>
    %112 = vector.shape_cast %111 : vector<128xf32> to vector<1x128xf32>
    %113 = tpu.concatenate %99, %112 in 0 : vector<1x128xf32>, vector<1x128xf32> -> vector<2x128xf32>
    %c0_51 = arith.constant 0 : index
    %c0_52 = arith.constant 0 : index
    %c0_53 = arith.constant 0 : index
    %c0_54 = arith.constant 0 : index
    %114 = vector.load %arg5[%c0_51, %c0_52, %c0_53, %c0_54] : memref<1x1x2x128xf32, #tpu.memory_space<vmem>>, vector<1x1x2x128xf32>
    %115 = vector.shape_cast %114 : vector<1x1x2x128xf32> to vector<2x128xf32>
    %116 = vector.shape_cast %113 : vector<2x128xf32> to vector<1x1x2x128xf32>
    tpu.vector_store %arg5[%c0_51, %c0_52, %c0_53, %c0_54], %116 {strides = array<i32>} : memref<1x1x2x128xf32, #tpu.memory_space<vmem>>, vector<1x1x2x128xf32>,
    return
  }
  func.func @transform_0(%arg0: i32, %arg1: i32) -> (i32, i32, i32, i32) {
    %c0_i32 = arith.constant 0 : i32
    %c0_i32_0 = arith.constant 0 : i32
    %c0_i32_1 = arith.constant 0 : i32
    return %arg0, %arg1, %c0_i32, %c0_i32_0 : i32, i32, i32, i32
  }
  func.func @transform_1(%arg0: i32, %arg1: i32) -> (i32, i32, i32) {
    %c0_i32 = arith.constant 0 : i32
    %c0_i32_0 = arith.constant 0 : i32
    %c0_i32_1 = arith.constant 0 : i32
    %c0_i32_2 = arith.constant 0 : i32
    return %c0_i32, %c0_i32_0, %c0_i32_1 : i32, i32, i32
  }
  func.func @transform_2(%arg0: i32, %arg1: i32) -> (i32, i32, i32, i32) {
    %c0_i32 = arith.constant 0 : i32
    %c0_i32_0 = arith.constant 0 : i32
    %c0_i32_1 = arith.constant 0 : i32
    return %arg0, %arg1, %c0_i32, %c0_i32_0 : i32, i32, i32, i32
  }
  func.func @transform_3(%arg0: i32, %arg1: i32) -> (i32, i32, i32, i32) {
    %c0_i32 = arith.constant 0 : i32
    %c0_i32_0 = arith.constant 0 : i32
    %c0_i32_1 = arith.constant 0 : i32
    return %arg0, %arg1, %c0_i32, %c0_i32_0 : i32, i32, i32, i32
  }
}

module attributes {stable_mosaic.version = 11 : i64} {
  func.func @_bn_relu_kernel(%arg0: i32, %arg1: i32, %arg2: memref<1x1x200x128xf32, #tpu.memory_space<vmem>>, %arg3: memref<1x128xf32, #tpu.memory_space<vmem>>, %arg4: memref<1x128xf32, #tpu.memory_space<vmem>>, %arg5: memref<1x1x200x128xf32, #tpu.memory_space<vmem>>) attributes {dimension_semantics = [#tpu.dimension_semantics<parallel>, #tpu.dimension_semantics<parallel>], iteration_bounds = array<i64: 1, 4>, scalar_prefetch = 0 : i64, scratch_operands = 0 : i64, tpu.core_type = #tpu.core_type<tc>, window_params = [{transform_indices = @transform_0, window_bounds = array<i64: 1, 1, 200, 128>}, {pipeline_mode = #tpu.pipeline_mode<synchronous>, transform_indices = @transform_1, window_bounds = array<i64: 1, 128>}, {pipeline_mode = #tpu.pipeline_mode<synchronous>, transform_indices = @transform_2, window_bounds = array<i64: 1, 128>}, {transform_indices = @transform_3, window_bounds = array<i64: 1, 1, 200, 128>}]} {
    %c0 = arith.constant 0 : index
    %c0_0 = arith.constant 0 : index
    %c0_1 = arith.constant 0 : index
    %c0_2 = arith.constant 0 : index
    %0 = vector.load %arg2[%c0, %c0_0, %c0_1, %c0_2] : memref<1x1x200x128xf32, #tpu.memory_space<vmem>>, vector<1x1x200x128xf32>
    %1 = vector.shape_cast %0 : vector<1x1x200x128xf32> to vector<200x128xf32>
    %c0_3 = arith.constant 0 : index
    %c0_4 = arith.constant 0 : index
    %2 = vector.load %arg3[%c0_3, %c0_4] : memref<1x128xf32, #tpu.memory_space<vmem>>, vector<1x128xf32>
    %3 = vector.broadcast %2 : vector<1x128xf32> to vector<200x128xf32>
    %4 = arith.mulf %1, %3 : vector<200x128xf32>
    %c0_5 = arith.constant 0 : index
    %c0_6 = arith.constant 0 : index
    %5 = vector.load %arg4[%c0_5, %c0_6] : memref<1x128xf32, #tpu.memory_space<vmem>>, vector<1x128xf32>
    %6 = vector.broadcast %5 : vector<1x128xf32> to vector<200x128xf32>
    %7 = arith.addf %4, %6 : vector<200x128xf32>
    %cst = arith.constant 0.000000e+00 : f32
    %8 = vector.broadcast %cst : f32 to vector<200x128xf32>
    %9 = arith.maximumf %7, %8 : vector<200x128xf32>
    %c0_7 = arith.constant 0 : index
    %c0_8 = arith.constant 0 : index
    %c0_9 = arith.constant 0 : index
    %c0_10 = arith.constant 0 : index
    %10 = vector.load %arg5[%c0_7, %c0_8, %c0_9, %c0_10] : memref<1x1x200x128xf32, #tpu.memory_space<vmem>>, vector<1x1x200x128xf32>
    %11 = vector.shape_cast %10 : vector<1x1x200x128xf32> to vector<200x128xf32>
    %12 = vector.shape_cast %9 : vector<200x128xf32> to vector<1x1x200x128xf32>
    tpu.vector_store %arg5[%c0_7, %c0_8, %c0_9, %c0_10], %12 {strides = array<i32>} : memref<1x1x200x128xf32, #tpu.memory_space<vmem>>, vector<1x1x200x128xf32>,
    return
  }
  func.func @transform_0(%arg0: i32, %arg1: i32) -> (i32, i32, i32, i32) {
    %c0_i32 = arith.constant 0 : i32
    %c0_i32_0 = arith.constant 0 : i32
    %c0_i32_1 = arith.constant 0 : i32
    return %arg0, %arg1, %c0_i32, %c0_i32_0 : i32, i32, i32, i32
  }
  func.func @transform_1(%arg0: i32, %arg1: i32) -> (i32, i32) {
    %c0_i32 = arith.constant 0 : i32
    %c0_i32_0 = arith.constant 0 : i32
    %c0_i32_1 = arith.constant 0 : i32
    return %c0_i32, %c0_i32_0 : i32, i32
  }
  func.func @transform_2(%arg0: i32, %arg1: i32) -> (i32, i32) {
    %c0_i32 = arith.constant 0 : i32
    %c0_i32_0 = arith.constant 0 : i32
    %c0_i32_1 = arith.constant 0 : i32
    return %c0_i32, %c0_i32_0 : i32, i32
  }
  func.func @transform_3(%arg0: i32, %arg1: i32) -> (i32, i32, i32, i32) {
    %c0_i32 = arith.constant 0 : i32
    %c0_i32_0 = arith.constant 0 : i32
    %c0_i32_1 = arith.constant 0 : i32
    return %arg0, %arg1, %c0_i32, %c0_i32_0 : i32, i32, i32, i32
  }
}

</mosaic_0001>

<llo_original>
// kernel: fused_relu_conv_bn_relu.3
$region0: #{fused_relu_conv_bn_relu.3}
  #allocation0 [shape = 'u32[]', space=smem, size = 0x4, offset = 0x4, fixed_abs, tag = 'smem constant byte address 0x4 - core index']
  #allocation1 [shape = 'u32[144,128]{1,0:T(1,128)}', space=vmem, size = 0x12000, scoped, tag = 'internal scratch']
  %s0 = inlined_call_operand.vmem [shape: f32[1,4,200,128], index: 0, kind: input, shape index: {}]
  %s1 = inlined_call_operand.vmem [shape: f32[1,128], index: 1, kind: input, shape index: {}]
  %s2 = inlined_call_operand.vmem [shape: f32[1,128], index: 2, kind: input, shape index: {}]
  %s3 = inlined_call_operand.vmem [shape: f32[1,4,200,128], index: 3, kind: output, shape index: {}]
  %s4 = sld [smem:[#allocation0]]
  $region45: #{fused_relu_conv_bn_relu.3} parent=0
    _
  %s6 = ssub.s32 1, %s4
  %s7 = scalar_select 0, %s6, %s4
  loop: start=0, step=1, limit=6
  $region2: #{fused_relu_conv_bn_relu.3} parent=0 // loop_pre_header
    _
  $region3: #{fused_relu_conv_bn_relu.3} parent=0 // loop_header
    %s9 = sphi 0, %s13
    %p10 = scmp.ge.s32.totalorder %s9, 6
    %s16 = sphi 0, %s28
    %s17 = sphi 0, %s24
    %s18 = sphi 0, %s16
    %s19 = sphi 0, %s17
    %s20 = sphi 0, %s18
    %s21 = sphi 0, %s19
    %s33 = sphi 0, %s35
    %s36 = sphi 0, %s33
    %s37 = sphi 0, %s36
    %s53 = sphi 0, %s37
    %s57 = sphi 0, %s57
    %s59 = sphi 0, %s57
    %s60 = sphi 0, %s59
    %s74 = sphi 0, %s60
    %s78 = sphi 0, %s78
    %s80 = sphi 0, %s78
    %s81 = sphi 0, %s80
    %s95 = sphi 0, %s81
    %s103 = sphi 0, %s105
    %s106 = sphi 0, %s103
    %s107 = sphi 0, %s106
    %s123 = sphi 0, %s107
  $region4: #{fused_relu_conv_bn_relu.3} parent=0 // loop_header_branch
    %12 = sbr.rel (%p10) target = $region8
  $region5: #{fused_relu_conv_bn_relu.3} parent=0 // loop_body
    %s14 = ssub.s32 %s9, 1
    %s15 = ssub.s32 %s9, 2
    %s22 = sadd.s32 1, %s17
    %p23 = scmp.ge.s32.totalorder %s22, 4
    %s24 = scalar_select %p23, 0, %s22
    %s25 = sadd.s32 1, %s16
    %s26 = scalar_select %p23, %s25, %s16
    %p27 = scmp.ge.s32.totalorder %s26, 1
    %s28 = scalar_select %p27, 0, %s26
    %s29 = ssub.s32 %s16, %s28
    %s30 = ssub.s32 %s17, %s24
    %s31 = sor.u32 %s29, %s30
    %p32 = scmp.eq.s32.totalorder %s31, 0
    %s34 = sadd.s32 %s33, 1
    %s35 = scalar_select %p32, %s33, %s34
    %p38 = pneg %p32
    %p39 = scmp.eq.s32.totalorder %s9, 3
    %p40 = por %p38, %p39
    %p41 = scmp.ne.s32.totalorder %s33, %s36
    %p42 = scmp.eq.s32.totalorder %s9, 0
    %p43 = por %p41, %p42
    %p44 = scmp.ne.s32.totalorder %s33, %s36
    %p45 = scmp.eq.s32.totalorder %s14, 3
    %p46 = por %p44, %p45
    %p47 = scmp.ne.s32.totalorder %s36, %s37
    %p48 = scmp.eq.s32.totalorder %s14, 0
    %p49 = por %p47, %p48
    %p50 = scmp.ne.s32.totalorder %s36, %s37
    %p51 = scmp.eq.s32.totalorder %s15, 3
    %p52 = por %p50, %p51
    %p54 = scmp.ne.s32.totalorder %s37, %s53
    %p55 = scmp.eq.s32.totalorder %s15, 0
    %p56 = por %p54, %p55
    %s58 = sadd.s32 %s57, 1
    %p61 = scmp.eq.s32.totalorder %s9, 3
    %p62 = scmp.ne.s32.totalorder %s57, %s59
    %p63 = scmp.eq.s32.totalorder %s9, 0
    %p64 = por %p62, %p63
    %p65 = scmp.ne.s32.totalorder %s57, %s59
    %p66 = scmp.eq.s32.totalorder %s14, 3
    %p67 = por %p65, %p66
    %p68 = scmp.ne.s32.totalorder %s59, %s60
    %p69 = scmp.eq.s32.totalorder %s14, 0
    %p70 = por %p68, %p69
    %p71 = scmp.ne.s32.totalorder %s59, %s60
    %p72 = scmp.eq.s32.totalorder %s15, 3
    %p73 = por %p71, %p72
    %p75 = scmp.ne.s32.totalorder %s60, %s74
    %p76 = scmp.eq.s32.totalorder %s15, 0
    %p77 = por %p75, %p76
    %s79 = sadd.s32 %s78, 1
    %p82 = scmp.eq.s32.totalorder %s9, 3
    %p83 = scmp.ne.s32.totalorder %s78, %s80
    %p84 = scmp.eq.s32.totalorder %s9, 0
    %p85 = por %p83, %p84
    %p86 = scmp.ne.s32.totalorder %s78, %s80
    %p87 = scmp.eq.s32.totalorder %s14, 3
    %p88 = por %p86, %p87
    %p89 = scmp.ne.s32.totalorder %s80, %s81
    %p90 = scmp.eq.s32.totalorder %s14, 0
    %p91 = por %p89, %p90
    %p92 = scmp.ne.s32.totalorder %s80, %s81
    %p93 = scmp.eq.s32.totalorder %s15, 3
    %p94 = por %p92, %p93
    %p96 = scmp.ne.s32.totalorder %s81, %s95
    %p97 = scmp.eq.s32.totalorder %s15, 0
    %p98 = por %p96, %p97
    %s99 = ssub.s32 %s16, %s28
    %s100 = ssub.s32 %s17, %s24
    %s101 = sor.u32 %s99, %s100
    %p102 = scmp.eq.s32.totalorder %s101, 0
    %s104 = sadd.s32 %s103, 1
    %s105 = scalar_select %p102, %s103, %s104
    %p108 = pneg %p102
    %p109 = scmp.eq.s32.totalorder %s9, 3
    %p110 = por %p108, %p109
    %p111 = scmp.ne.s32.totalorder %s103, %s106
    %p112 = scmp.eq.s32.totalorder %s9, 0
    %p113 = por %p111, %p112
    %p114 = scmp.ne.s32.totalorder %s103, %s106
    %p115 = scmp.eq.s32.totalorder %s14, 3
    %p116 = por %p114, %p115
    %p117 = scmp.ne.s32.totalorder %s106, %s107
    %p118 = scmp.eq.s32.totalorder %s14, 0
    %p119 = por %p117, %p118
    %p120 = scmp.ne.s32.totalorder %s106, %s107
    %p121 = scmp.eq.s32.totalorder %s15, 3
    %p122 = por %p120, %p121
    %p124 = scmp.ne.s32.totalorder %s107, %s123
    %p125 = scmp.eq.s32.totalorder %s15, 0
    %p126 = por %p124, %p125
    %p127 = scmp.le.s32.totalorder 1, %s9
    %p128 = scmp.lt.s32.totalorder %s9, 5
    %p129 = pnand %p127, %p128
    %p130 = pneg %p129
    // Predicated region
    $region9: #{fused_relu_conv_bn_relu.3} parent=5 // pred_check
      _
    $region10: #{fused_relu_conv_bn_relu.3} parent=5 // pred_check_branch
      %132 = sbr.rel (%p129) target = $region12
    $region11: #{fused_relu_conv_bn_relu.3} parent=5 // pred_region
      %s133 = ssub.s32 %s9, 1
      // Predicated region
      $region13: #{fused_relu_conv_bn_relu.3} parent=11 // pred_check
        %p134 = pneg %p70
      $region14: #{fused_relu_conv_bn_relu.3} parent=11 // pred_check_branch
        %136 = sbr.rel (%p134) target = $region16
      $region15: #{fused_relu_conv_bn_relu.3} parent=11 // pred_region
        _
      $region16: #{fused_relu_conv_bn_relu.3} parent=11 // pred_fallthru
        _
      // Predicated region
      $region17: #{fused_relu_conv_bn_relu.3} parent=11 // pred_check
        %p137 = pneg %p91
      $region18: #{fused_relu_conv_bn_relu.3} parent=11 // pred_check_branch
        %139 = sbr.rel (%p137) target = $region20
      $region19: #{fused_relu_conv_bn_relu.3} parent=11 // pred_region
        _
      $region20: #{fused_relu_conv_bn_relu.3} parent=11 // pred_fallthru
        _
    $region12: #{fused_relu_conv_bn_relu.3} parent=5 // pred_fallthru
      _
    %p140 = scmp.lt.s32.totalorder %s9, 4
    // Predicated region
    $region21: #{fused_relu_conv_bn_relu.3} parent=5 // pred_check
      %p141 = pneg %p140
    $region22: #{fused_relu_conv_bn_relu.3} parent=5 // pred_check_branch
      %143 = sbr.rel (%p141) target = $region24
    $region23: #{fused_relu_conv_bn_relu.3} parent=5 // pred_region
      // Predicated region
      $region25: #{fused_relu_conv_bn_relu.3} parent=23 // pred_check
        %p144 = pneg %p43
      $region26: #{fused_relu_conv_bn_relu.3} parent=23 // pred_check_branch
        %146 = sbr.rel (%p144) target = $region28
      $region27: #{fused_relu_conv_bn_relu.3} parent=23 // pred_region
        %p147 = scmp.lt.s32.totalorder %s16, 0
        %s148 = scalar_select %p147, %s16, 0
        %p149 = scmp.lt.s32.totalorder %s17, 3
        %s150 = scalar_select %p149, %s17, 3
        %s151 = smul.addr %s150, 25
        %s152 = smul.addr %s148, 100
        %s153 = sadd.s32 %s151, %s152
        %s154 = smul.addr %s153, 8
        %s155 = scalar_lea.vmem %s0, %s154
      $region28: #{fused_relu_conv_bn_relu.3} parent=23 // pred_fallthru
        _
    $region24: #{fused_relu_conv_bn_relu.3} parent=5 // pred_fallthru
      _
    %p156 = scmp.le.s32.totalorder 1, %s9
    %p157 = scmp.lt.s32.totalorder %s9, 5
    %p158 = pnand %p156, %p157
    %p159 = pneg %p158
    // Predicated region
    $region29: #{fused_relu_conv_bn_relu.3} parent=5 // pred_check
      _
    $region30: #{fused_relu_conv_bn_relu.3} parent=5 // pred_check_branch
      %161 = sbr.rel (%p158) target = $region32
    $region31: #{fused_relu_conv_bn_relu.3} parent=5 // pred_region
      %s162 = ssub.s32 %s9, 1
      %p163 = scmp.lt.s32.totalorder %s18, 0
      %s164 = scalar_select %p163, %s18, 0
      %p165 = scmp.lt.s32.totalorder %s19, 3
      %s166 = scalar_select %p165, %s19, 3
      %s167 = smul.addr %s166, 25
      %s168 = smul.addr %s164, 100
      %s169 = sadd.s32 %s167, %s168
      %s170 = smul.addr %s169, 8
      %s171 = scalar_lea.vmem %s0, %s170
      %p172 = pneg %p49
      %p173 = pneg %p46
      %p174 = pneg %p70
      %p175 = pneg %p67
      %p176 = pneg %p91
      %p177 = pneg %p88
      %p178 = pneg %p119
      %p179 = pneg %p116
      %p180 = scmp.lt.s32.totalorder %s18, 0
      %s181 = scalar_select %p180, %s18, 0
      %p182 = scmp.lt.s32.totalorder %s19, 3
      %s183 = scalar_select %p182, %s19, 3
      %s184 = smul.addr %s183, 25
      %s185 = smul.addr %s181, 100
      %s186 = sadd.s32 %s184, %s185
      %s187 = smul.addr %s186, 8
      %s188 = scalar_lea.vmem %s3, %s187
      %p189 = scmp.lt.s32.totalorder %s18, 0
      %s190 = scalar_select %p189, %s18, 0
      %p191 = scmp.lt.s32.totalorder %s19, 3
      %s192 = scalar_select %p191, %s19, 3
      %s193 = smul.addr %s192, 25
      %s194 = smul.addr %s190, 100
      %s195 = sadd.s32 %s193, %s194
      %s196 = smul.addr %s195, 8
      %s197 = scalar_lea.vmem %s0, %s196
      %p198 = scmp.lt.s32.totalorder %s18, 0
      %s199 = scalar_select %p198, %s18, 0
      %p200 = scmp.lt.s32.totalorder %s19, 3
      %s201 = scalar_select %p200, %s19, 3
      %s202 = smul.addr %s201, 25
      %s203 = smul.addr %s199, 100
      %s204 = sadd.s32 %s202, %s203
      %s205 = smul.addr %s204, 8
      %s206 = scalar_lea.vmem %s3, %s205
      %v207 = vld [vmem:[%s197] sm:$0xff]
      %v208 = vld [vmem:[%s197 + $0x8] sm:$0xff]
      %v209 = vld [vmem:[%s197 + $0x10] sm:$0xff]
      %v210 = vld [vmem:[%s197 + $0x18] sm:$0xff]
      %v211 = vld [vmem:[%s197 + $0x20] sm:$0xff]
      %v212 = vld [vmem:[%s197 + $0x28] sm:$0xff]
      %v213 = vld [vmem:[%s197 + $0x30] sm:$0xff]
      %v214 = vld [vmem:[%s197 + $0x38] sm:$0xff]
      %v215 = vld [vmem:[%s197 + $0x40] sm:$0xff]
      %v216 = vld [vmem:[%s197 + $0x48] sm:$0xff]
      %v217 = vld [vmem:[%s197 + $0x50] sm:$0xff]
      %v218 = vld [vmem:[%s197 + $0x58] sm:$0xff]
      %v219 = vld [vmem:[%s197 + $0x60] sm:$0xff]
      %v220 = vld [vmem:[%s197 + $0x68] sm:$0xff]
      %v221 = vld [vmem:[%s197 + $0x70] sm:$0xff]
      %v222 = vld [vmem:[%s197 + $0x78] sm:$0xff]
      %v223 = vld [vmem:[%s197 + $0x80] sm:$0xff]
      %v224 = vld [vmem:[%s197 + $0x88] sm:$0xff]
      %v225 = vld [vmem:[%s197 + $0x90] sm:$0xff]
      %v226 = vld [vmem:[%s197 + $0x98] sm:$0xff]
      %v227 = vld [vmem:[%s197 + $0xa0] sm:$0xff]
      %v228 = vld [vmem:[%s197 + $0xa8] sm:$0xff]
      %v229 = vld [vmem:[%s197 + $0xb0] sm:$0xff]
      %v230 = vld [vmem:[%s197 + $0xb8] sm:$0xff]
      %v231 = vld [vmem:[%s197 + $0xc0] sm:$0xff]
      %v232 = vld [vmem:[%s1] sm:$0x1]
      %v234 = vlaneseq
      %v235 = vshrl.u32 %v234, 7
      %v236 = vsub.s32 0, %v235
      %v237 = vrot.slane %v232, %v236
      %v239 = vmul.f32 %v207, %v237
      %v240 = vmul.f32 %v208, %v237
      %v241 = vmul.f32 %v209, %v237
      %v242 = vmul.f32 %v210, %v237
      %v243 = vmul.f32 %v211, %v237
      %v244 = vmul.f32 %v212, %v237
      %v245 = vmul.f32 %v213, %v237
      %v246 = vmul.f32 %v214, %v237
      %v247 = vmul.f32 %v215, %v237
      %v248 = vmul.f32 %v216, %v237
      %v249 = vmul.f32 %v217, %v237
      %v250 = vmul.f32 %v218, %v237
      %v251 = vmul.f32 %v219, %v237
      %v252 = vmul.f32 %v220, %v237
      %v253 = vmul.f32 %v221, %v237
      %v254 = vmul.f32 %v222, %v237
      %v255 = vmul.f32 %v223, %v237
      %v256 = vmul.f32 %v224, %v237
      %v257 = vmul.f32 %v225, %v237
      %v258 = vmul.f32 %v226, %v237
      %v259 = vmul.f32 %v227, %v237
      %v260 = vmul.f32 %v228, %v237
      %v261 = vmul.f32 %v229, %v237
      %v262 = vmul.f32 %v230, %v237
      %v263 = vmul.f32 %v231, %v237
      %v264 = vld [vmem:[%s2] sm:$0x1]
      %v266 = vlaneseq
      %v267 = vshrl.u32 %v266, 7
      %v268 = vsub.s32 0, %v267
      %v269 = vrot.slane %v264, %v268
      %v271 = vadd.f32 %v239, %v269
      %v272 = vadd.f32 %v240, %v269
      %v273 = vadd.f32 %v241, %v269
      %v274 = vadd.f32 %v242, %v269
      %v275 = vadd.f32 %v243, %v269
      %v276 = vadd.f32 %v244, %v269
      %v277 = vadd.f32 %v245, %v269
      %v278 = vadd.f32 %v246, %v269
      %v279 = vadd.f32 %v247, %v269
      %v280 = vadd.f32 %v248, %v269
      %v281 = vadd.f32 %v249, %v269
      %v282 = vadd.f32 %v250, %v269
      %v283 = vadd.f32 %v251, %v269
      %v284 = vadd.f32 %v252, %v269
      %v285 = vadd.f32 %v253, %v269
      %v286 = vadd.f32 %v254, %v269
      %v287 = vadd.f32 %v255, %v269
      %v288 = vadd.f32 %v256, %v269
      %v289 = vadd.f32 %v257, %v269
      %v290 = vadd.f32 %v258, %v269
      %v291 = vadd.f32 %v259, %v269
      %v292 = vadd.f32 %v260, %v269
      %v293 = vadd.f32 %v261, %v269
      %v294 = vadd.f32 %v262, %v269
      %v295 = vadd.f32 %v263, %v269
      %v296 = vmax.f32 %v271, 0.0
      %v297 = vmax.f32 %v272, 0.0
      %v298 = vmax.f32 %v273, 0.0
      %v299 = vmax.f32 %v274, 0.0
      %v300 = vmax.f32 %v275, 0.0
      %v301 = vmax.f32 %v276, 0.0
      %v302 = vmax.f32 %v277, 0.0
      %v303 = vmax.f32 %v278, 0.0
      %v304 = vmax.f32 %v279, 0.0
      %v305 = vmax.f32 %v280, 0.0
      %v306 = vmax.f32 %v281, 0.0
      %v307 = vmax.f32 %v282, 0.0
      %v308 = vmax.f32 %v283, 0.0
      %v309 = vmax.f32 %v284, 0.0
      %v310 = vmax.f32 %v285, 0.0
      %v311 = vmax.f32 %v286, 0.0
      %v312 = vmax.f32 %v287, 0.0
      %v313 = vmax.f32 %v288, 0.0
      %v314 = vmax.f32 %v289, 0.0
      %v315 = vmax.f32 %v290, 0.0
      %v316 = vmax.f32 %v291, 0.0
      %v317 = vmax.f32 %v292, 0.0
      %v318 = vmax.f32 %v293, 0.0
      %v319 = vmax.f32 %v294, 0.0
      %v320 = vmax.f32 %v295, 0.0
      %321 = vst [vmem:[%s206] sm:$0xff] %v296
      %322 = vst [vmem:[%s206 + $0x8] sm:$0xff] %v297
      %323 = vst [vmem:[%s206 + $0x10] sm:$0xff] %v298
      %324 = vst [vmem:[%s206 + $0x18] sm:$0xff] %v299
      %325 = vst [vmem:[%s206 + $0x20] sm:$0xff] %v300
      %326 = vst [vmem:[%s206 + $0x28] sm:$0xff] %v301
      %327 = vst [vmem:[%s206 + $0x30] sm:$0xff] %v302
      %328 = vst [vmem:[%s206 + $0x38] sm:$0xff] %v303
      %329 = vst [vmem:[%s206 + $0x40] sm:$0xff] %v304
      %330 = vst [vmem:[%s206 + $0x48] sm:$0xff] %v305
      %331 = vst [vmem:[%s206 + $0x50] sm:$0xff] %v306
      %332 = vst [vmem:[%s206 + $0x58] sm:$0xff] %v307
      %333 = vst [vmem:[%s206 + $0x60] sm:$0xff] %v308
      %334 = vst [vmem:[%s206 + $0x68] sm:$0xff] %v309
      %335 = vst [vmem:[%s206 + $0x70] sm:$0xff] %v310
      %336 = vst [vmem:[%s206 + $0x78] sm:$0xff] %v311
      %337 = vst [vmem:[%s206 + $0x80] sm:$0xff] %v312
      %338 = vst [vmem:[%s206 + $0x88] sm:$0xff] %v313
      %339 = vst [vmem:[%s206 + $0x90] sm:$0xff] %v314
      %340 = vst [vmem:[%s206 + $0x98] sm:$0xff] %v315
      %341 = vst [vmem:[%s206 + $0xa0] sm:$0xff] %v316
      %342 = vst [vmem:[%s206 + $0xa8] sm:$0xff] %v317
      %343 = vst [vmem:[%s206 + $0xb0] sm:$0xff] %v318
      %344 = vst [vmem:[%s206 + $0xb8] sm:$0xff] %v319
      %345 = vst [vmem:[%s206 + $0xc0] sm:$0xff] %v320
      %p346 = scmp.lt.s32.totalorder %s18, 0
      %s347 = scalar_select %p346, %s18, 0
      %p348 = scmp.lt.s32.totalorder %s19, 3
      %s349 = scalar_select %p348, %s19, 3
      %s350 = smul.addr %s349, 25
      %s351 = smul.addr %s347, 100
      %s352 = sadd.s32 %s350, %s351
      %s353 = smul.addr %s352, 8
      %s354 = scalar_lea.vmem %s3, %s353
      // Predicated region
      $region33: #{fused_relu_conv_bn_relu.3} parent=31 // pred_check
        %p355 = pneg %p116
      $region34: #{fused_relu_conv_bn_relu.3} parent=31 // pred_check_branch
        %357 = sbr.rel (%p355) target = $region36
      $region35: #{fused_relu_conv_bn_relu.3} parent=31 // pred_region
        _
      $region36: #{fused_relu_conv_bn_relu.3} parent=31 // pred_fallthru
        _
    $region32: #{fused_relu_conv_bn_relu.3} parent=5 // pred_fallthru
      _
    %p358 = scmp.le.s32.totalorder 2, %s9
    // Predicated region
    $region37: #{fused_relu_conv_bn_relu.3} parent=5 // pred_check
      %p359 = pneg %p358
    $region38: #{fused_relu_conv_bn_relu.3} parent=5 // pred_check_branch
      %361 = sbr.rel (%p359) target = $region40
    $region39: #{fused_relu_conv_bn_relu.3} parent=5 // pred_region
      %s362 = ssub.s32 %s9, 2
      // Predicated region
      $region41: #{fused_relu_conv_bn_relu.3} parent=39 // pred_check
        %p363 = pneg %p122
      $region42: #{fused_relu_conv_bn_relu.3} parent=39 // pred_check_branch
        %365 = sbr.rel (%p363) target = $region44
      $region43: #{fused_relu_conv_bn_relu.3} parent=39 // pred_region
        %p366 = scmp.lt.s32.totalorder %s20, 0
        %s367 = scalar_select %p366, %s20, 0
        %p368 = scmp.lt.s32.totalorder %s21, 3
        %s369 = scalar_select %p368, %s21, 3
        %s370 = smul.addr %s369, 25
        %s371 = smul.addr %s367, 100
        %s372 = sadd.s32 %s370, %s371
        %s373 = smul.addr %s372, 8
        %s374 = scalar_lea.vmem %s3, %s373
      $region44: #{fused_relu_conv_bn_relu.3} parent=39 // pred_fallthru
        _
    $region40: #{fused_relu_conv_bn_relu.3} parent=5 // pred_fallthru
      _
  $region6: #{fused_relu_conv_bn_relu.3} parent=0 // loop_footer
    %s13 = sadd.s32 1, %s9
  $region7: #{fused_relu_conv_bn_relu.3} parent=0 // loop_footer_branch
    %8 = sbr.rel target = $region3
  $region8: #{fused_relu_conv_bn_relu.3} parent=0 // loop_exit
    _

// kernel: fused_relu_conv_bn_relu.2
$region0: #{fused_relu_conv_bn_relu.2}
  #allocation0 [shape = 'u32[]', space=smem, size = 0x4, offset = 0x4, fixed_abs, tag = 'smem constant byte address 0x4 - core index']
  #allocation1 [shape = 'u32[144,128]{1,0:T(1,128)}', space=vmem, size = 0x12000, scoped, tag = 'internal scratch']
  %s0 = inlined_call_operand.vmem [shape: f32[1,4,250,64], index: 0, kind: input, shape index: {}]
  %s1 = inlined_call_operand.vmem [shape: f32[9,64,128], index: 1, kind: input, shape index: {}]
  %s2 = inlined_call_operand.vmem [shape: f32[1,4,200,128], index: 2, kind: output, shape index: {0}]
  %s3 = inlined_call_operand.vmem [shape: f32[1,4,2,128], index: 3, kind: output, shape index: {1}]
  %4 = xla_tuple %s2, %s3
  %s5 = sld [smem:[#allocation0]]
  $region49: #{fused_relu_conv_bn_relu.2} parent=0
    _
  %s7 = ssub.s32 1, %s5
  %s8 = scalar_select 0, %s7, %s5
  loop: start=0, step=1, limit=6
  $region2: #{fused_relu_conv_bn_relu.2} parent=0 // loop_pre_header
    _
  $region3: #{fused_relu_conv_bn_relu.2} parent=0 // loop_header
    %s10 = sphi 0, %s14
    %p11 = scmp.ge.s32.totalorder %s10, 6
    %s17 = sphi 0, %s29
    %s18 = sphi 0, %s25
    %s19 = sphi 0, %s17
    %s20 = sphi 0, %s18
    %s21 = sphi 0, %s19
    %s22 = sphi 0, %s20
    %s34 = sphi 0, %s36
    %s37 = sphi 0, %s34
    %s38 = sphi 0, %s37
    %s54 = sphi 0, %s38
    %s58 = sphi 0, %s58
    %s60 = sphi 0, %s58
    %s61 = sphi 0, %s60
    %s75 = sphi 0, %s61
    %s83 = sphi 0, %s85
    %s86 = sphi 0, %s83
    %s87 = sphi 0, %s86
    %s103 = sphi 0, %s87
    %s111 = sphi 0, %s113
    %s114 = sphi 0, %s111
    %s115 = sphi 0, %s114
    %s131 = sphi 0, %s115
  $region4: #{fused_relu_conv_bn_relu.2} parent=0 // loop_header_branch
    %13 = sbr.rel (%p11) target = $region8
  $region5: #{fused_relu_conv_bn_relu.2} parent=0 // loop_body
    %s15 = ssub.s32 %s10, 1
    %s16 = ssub.s32 %s10, 2
    %s23 = sadd.s32 1, %s18
    %p24 = scmp.ge.s32.totalorder %s23, 4
    %s25 = scalar_select %p24, 0, %s23
    %s26 = sadd.s32 1, %s17
    %s27 = scalar_select %p24, %s26, %s17
    %p28 = scmp.ge.s32.totalorder %s27, 1
    %s29 = scalar_select %p28, 0, %s27
    %s30 = ssub.s32 %s17, %s29
    %s31 = ssub.s32 %s18, %s25
    %s32 = sor.u32 %s30, %s31
    %p33 = scmp.eq.s32.totalorder %s32, 0
    %s35 = sadd.s32 %s34, 1
    %s36 = scalar_select %p33, %s34, %s35
    %p39 = pneg %p33
    %p40 = scmp.eq.s32.totalorder %s10, 3
    %p41 = por %p39, %p40
    %p42 = scmp.ne.s32.totalorder %s34, %s37
    %p43 = scmp.eq.s32.totalorder %s10, 0
    %p44 = por %p42, %p43
    %p45 = scmp.ne.s32.totalorder %s34, %s37
    %p46 = scmp.eq.s32.totalorder %s15, 3
    %p47 = por %p45, %p46
    %p48 = scmp.ne.s32.totalorder %s37, %s38
    %p49 = scmp.eq.s32.totalorder %s15, 0
    %p50 = por %p48, %p49
    %p51 = scmp.ne.s32.totalorder %s37, %s38
    %p52 = scmp.eq.s32.totalorder %s16, 3
    %p53 = por %p51, %p52
    %p55 = scmp.ne.s32.totalorder %s38, %s54
    %p56 = scmp.eq.s32.totalorder %s16, 0
    %p57 = por %p55, %p56
    %s59 = sadd.s32 %s58, 1
    %p62 = scmp.eq.s32.totalorder %s10, 3
    %p63 = scmp.ne.s32.totalorder %s58, %s60
    %p64 = scmp.eq.s32.totalorder %s10, 0
    %p65 = por %p63, %p64
    %p66 = scmp.ne.s32.totalorder %s58, %s60
    %p67 = scmp.eq.s32.totalorder %s15, 3
    %p68 = por %p66, %p67
    %p69 = scmp.ne.s32.totalorder %s60, %s61
    %p70 = scmp.eq.s32.totalorder %s15, 0
    %p71 = por %p69, %p70
    %p72 = scmp.ne.s32.totalorder %s60, %s61
    %p73 = scmp.eq.s32.totalorder %s16, 3
    %p74 = por %p72, %p73
    %p76 = scmp.ne.s32.totalorder %s61, %s75
    %p77 = scmp.eq.s32.totalorder %s16, 0
    %p78 = por %p76, %p77
    %s79 = ssub.s32 %s17, %s29
    %s80 = ssub.s32 %s18, %s25
    %s81 = sor.u32 %s79, %s80
    %p82 = scmp.eq.s32.totalorder %s81, 0
    %s84 = sadd.s32 %s83, 1
    %s85 = scalar_select %p82, %s83, %s84
    %p88 = pneg %p82
    %p89 = scmp.eq.s32.totalorder %s10, 3
    %p90 = por %p88, %p89
    %p91 = scmp.ne.s32.totalorder %s83, %s86
    %p92 = scmp.eq.s32.totalorder %s10, 0
    %p93 = por %p91, %p92
    %p94 = scmp.ne.s32.totalorder %s83, %s86
    %p95 = scmp.eq.s32.totalorder %s15, 3
    %p96 = por %p94, %p95
    %p97 = scmp.ne.s32.totalorder %s86, %s87
    %p98 = scmp.eq.s32.totalorder %s15, 0
    %p99 = por %p97, %p98
    %p100 = scmp.ne.s32.totalorder %s86, %s87
    %p101 = scmp.eq.s32.totalorder %s16, 3
    %p102 = por %p100, %p101
    %p104 = scmp.ne.s32.totalorder %s87, %s103
    %p105 = scmp.eq.s32.totalorder %s16, 0
    %p106 = por %p104, %p105
    %s107 = ssub.s32 %s17, %s29
    %s108 = ssub.s32 %s18, %s25
    %s109 = sor.u32 %s107, %s108
    %p110 = scmp.eq.s32.totalorder %s109, 0
    %s112 = sadd.s32 %s111, 1
    %s113 = scalar_select %p110, %s111, %s112
    %p116 = pneg %p110
    %p117 = scmp.eq.s32.totalorder %s10, 3
    %p118 = por %p116, %p117
    %p119 = scmp.ne.s32.totalorder %s111, %s114
    %p120 = scmp.eq.s32.totalorder %s10, 0
    %p121 = por %p119, %p120
    %p122 = scmp.ne.s32.totalorder %s111, %s114
    %p123 = scmp.eq.s32.totalorder %s15, 3
    %p124 = por %p122, %p123
    %p125 = scmp.ne.s32.totalorder %s114, %s115
    %p126 = scmp.eq.s32.totalorder %s15, 0
    %p127 = por %p125, %p126
    %p128 = scmp.ne.s32.totalorder %s114, %s115
    %p129 = scmp.eq.s32.totalorder %s16, 3
    %p130 = por %p128, %p129
    %p132 = scmp.ne.s32.totalorder %s115, %s131
    %p133 = scmp.eq.s32.totalorder %s16, 0
    %p134 = por %p132, %p133
    %p135 = scmp.le.s32.totalorder 1, %s10
    %p136 = scmp.lt.s32.totalorder %s10, 5
    %p137 = pnand %p135, %p136
    %p138 = pneg %p137
    // Predicated region
    $region9: #{fused_relu_conv_bn_relu.2} parent=5 // pred_check
      _
    $region10: #{fused_relu_conv_bn_relu.2} parent=5 // pred_check_branch
      %140 = sbr.rel (%p137) target = $region12
    $region11: #{fused_relu_conv_bn_relu.2} parent=5 // pred_region
      %s141 = ssub.s32 %s10, 1
      // Predicated region
      $region13: #{fused_relu_conv_bn_relu.2} parent=11 // pred_check
        %p142 = pneg %p71
      $region14: #{fused_relu_conv_bn_relu.2} parent=11 // pred_check_branch
        %144 = sbr.rel (%p142) target = $region16
      $region15: #{fused_relu_conv_bn_relu.2} parent=11 // pred_region
        _
      $region16: #{fused_relu_conv_bn_relu.2} parent=11 // pred_fallthru
        _
    $region12: #{fused_relu_conv_bn_relu.2} parent=5 // pred_fallthru
      _
    %p145 = scmp.lt.s32.totalorder %s10, 4
    // Predicated region
    $region17: #{fused_relu_conv_bn_relu.2} parent=5 // pred_check
      %p146 = pneg %p145
    $region18: #{fused_relu_conv_bn_relu.2} parent=5 // pred_check_branch
      %148 = sbr.rel (%p146) target = $region20
    $region19: #{fused_relu_conv_bn_relu.2} parent=5 // pred_region
      // Predicated region
      $region21: #{fused_relu_conv_bn_relu.2} parent=19 // pred_check
        %p149 = pneg %p44
      $region22: #{fused_relu_conv_bn_relu.2} parent=19 // pred_check_branch
        %151 = sbr.rel (%p149) target = $region24
      $region23: #{fused_relu_conv_bn_relu.2} parent=19 // pred_region
        %p152 = scmp.lt.s32.totalorder %s17, 0
        %s153 = scalar_select %p152, %s17, 0
        %p154 = scmp.lt.s32.totalorder %s18, 3
        %s155 = scalar_select %p154, %s18, 3
        %s156 = smul.addr %s155, 32
        %s157 = smul.addr %s153, 128
        %s158 = sadd.s32 %s156, %s157
        %s159 = smul.addr %s158, 8
        %s160 = scalar_lea.vmem %s0, %s159
      $region24: #{fused_relu_conv_bn_relu.2} parent=19 // pred_fallthru
        _
    $region20: #{fused_relu_conv_bn_relu.2} parent=5 // pred_fallthru
      _
    %p161 = scmp.le.s32.totalorder 1, %s10
    %p162 = scmp.lt.s32.totalorder %s10, 5
    %p163 = pnand %p161, %p162
    %p164 = pneg %p163
    // Predicated region
    $region25: #{fused_relu_conv_bn_relu.2} parent=5 // pred_check
      _
    $region26: #{fused_relu_conv_bn_relu.2} parent=5 // pred_check_branch
      %166 = sbr.rel (%p163) target = $region28
    $region27: #{fused_relu_conv_bn_relu.2} parent=5 // pred_region
      %s167 = ssub.s32 %s10, 1
      %p168 = scmp.lt.s32.totalorder %s19, 0
      %s169 = scalar_select %p168, %s19, 0
      %p170 = scmp.lt.s32.totalorder %s20, 3
      %s171 = scalar_select %p170, %s20, 3
      %s172 = smul.addr %s171, 32
      %s173 = smul.addr %s169, 128
      %s174 = sadd.s32 %s172, %s173
      %s175 = smul.addr %s174, 8
      %s176 = scalar_lea.vmem %s0, %s175
      %p177 = pneg %p50
      %p178 = pneg %p47
      %p179 = pneg %p71
      %p180 = pneg %p68
      %p181 = pneg %p99
      %p182 = pneg %p96
      %p183 = scmp.lt.s32.totalorder %s19, 0
      %s184 = scalar_select %p183, %s19, 0
      %p185 = scmp.lt.s32.totalorder %s20, 3
      %s186 = scalar_select %p185, %s20, 3
      %s187 = smul.addr %s186, 25
      %s188 = smul.addr %s184, 100
      %s189 = sadd.s32 %s187, %s188
      %s190 = smul.addr %s189, 8
      %s191 = scalar_lea.vmem %s2, %s190
      %p192 = pneg %p127
      %p193 = pneg %p124
      %p194 = scmp.lt.s32.totalorder %s19, 0
      %s195 = scalar_select %p194, %s19, 0
      %p196 = scmp.lt.s32.totalorder %s20, 3
      %s197 = scalar_select %p196, %s20, 3
      %s198 = smul.addr %s195, 4
      %s199 = sadd.s32 %s197, %s198
      %s200 = smul.addr %s199, 2
      %s201 = scalar_lea.vmem %s3, %s200
      %p202 = scmp.lt.s32.totalorder %s19, 0
      %s203 = scalar_select %p202, %s19, 0
      %p204 = scmp.lt.s32.totalorder %s20, 3
      %s205 = scalar_select %p204, %s20, 3
      %s206 = smul.addr %s205, 32
      %s207 = smul.addr %s203, 128
      %s208 = sadd.s32 %s206, %s207
      %s209 = smul.addr %s208, 8
      %s210 = scalar_lea.vmem %s0, %s209
      %p211 = scmp.lt.s32.totalorder %s19, 0
      %s212 = scalar_select %p211, %s19, 0
      %p213 = scmp.lt.s32.totalorder %s20, 3
      %s214 = scalar_select %p213, %s20, 3
      %s215 = smul.addr %s214, 25
      %s216 = smul.addr %s212, 100
      %s217 = sadd.s32 %s215, %s216
      %s218 = smul.addr %s217, 8
      %s219 = scalar_lea.vmem %s2, %s218
      %p220 = scmp.lt.s32.totalorder %s19, 0
      %s221 = scalar_select %p220, %s19, 0
      %p222 = scmp.lt.s32.totalorder %s20, 3
      %s223 = scalar_select %p222, %s20, 3
      %s224 = smul.addr %s221, 4
      %s225 = sadd.s32 %s223, %s224
      %s226 = smul.addr %s225, 2
      %s227 = scalar_lea.vmem %s3, %s226
      %v228 = vld [vmem:[%s210] sm:$0xff]
      %v229 = vld [vmem:[%s210 + $0x8] sm:$0xff]
      %v230 = vld [vmem:[%s210 + $0x10] sm:$0xff]
      %v231 = vld [vmem:[%s210 + $0x18] sm:$0xff]
      %v232 = vld [vmem:[%s210 + $0x20] sm:$0xff]
      %v233 = vld [vmem:[%s210 + $0x28] sm:$0xff]
      %v234 = vld [vmem:[%s210 + $0x30] sm:$0xff]
      %v235 = vld [vmem:[%s210 + $0x38] sm:$0xff]
      %v236 = vld [vmem:[%s210 + $0x40] sm:$0xff]
      %v237 = vld [vmem:[%s210 + $0x48] sm:$0xff]
      %v238 = vld [vmem:[%s210 + $0x50] sm:$0xff]
      %v239 = vld [vmem:[%s210 + $0x58] sm:$0xff]
      %v240 = vld [vmem:[%s210 + $0x60] sm:$0xff]
      %v241 = vld [vmem:[%s210 + $0x68] sm:$0xff]
      %v242 = vld [vmem:[%s210 + $0x70] sm:$0xff]
      %v243 = vld [vmem:[%s210 + $0x78] sm:$0xff]
      %v244 = vld [vmem:[%s210 + $0x80] sm:$0xff]
      %v245 = vld [vmem:[%s210 + $0x88] sm:$0xff]
      %v246 = vld [vmem:[%s210 + $0x90] sm:$0xff]
      %v247 = vld [vmem:[%s210 + $0x98] sm:$0xff]
      %v248 = vld [vmem:[%s210 + $0xa0] sm:$0xff]
      %v249 = vld [vmem:[%s210 + $0xa8] sm:$0xff]
      %v250 = vld [vmem:[%s210 + $0xb0] sm:$0xff]
      %v251 = vld [vmem:[%s210 + $0xb8] sm:$0xff]
      %v252 = vld [vmem:[%s210 + $0xc0] sm:$0xff]
      %v253 = vld [vmem:[%s210 + $0xc8] sm:$0xff]
      %v254 = vld [vmem:[%s210 + $0xd0] sm:$0xff]
      %v255 = vld [vmem:[%s210 + $0xd8] sm:$0xff]
      %v256 = vld [vmem:[%s210 + $0xe0] sm:$0xff]
      %v257 = vld [vmem:[%s210 + $0xe8] sm:$0xff]
      %v258 = vld [vmem:[%s210 + $0xf0] sm:$0xff]
      %v259 = vld [vmem:[%s210 + $0xf8] sm:$0x3]
      %v260 = vmax.f32 %v228, 0.0
      %v261 = vmax.f32 %v229, 0.0
      %v262 = vmax.f32 %v230, 0.0
      %v263 = vmax.f32 %v231, 0.0
      %v264 = vmax.f32 %v232, 0.0
      %v265 = vmax.f32 %v233, 0.0
      %v266 = vmax.f32 %v234, 0.0
      %v267 = vmax.f32 %v235, 0.0
      %v268 = vmax.f32 %v236, 0.0
      %v269 = vmax.f32 %v237, 0.0
      %v270 = vmax.f32 %v238, 0.0
      %v271 = vmax.f32 %v239, 0.0
      %v272 = vmax.f32 %v240, 0.0
      %v273 = vmax.f32 %v241, 0.0
      %v274 = vmax.f32 %v242, 0.0
      %v275 = vmax.f32 %v243, 0.0
      %v276 = vmax.f32 %v244, 0.0
      %v277 = vmax.f32 %v245, 0.0
      %v278 = vmax.f32 %v246, 0.0
      %v279 = vmax.f32 %v247, 0.0
      %v280 = vmax.f32 %v248, 0.0
      %v281 = vmax.f32 %v249, 0.0
      %v282 = vmax.f32 %v250, 0.0
      %v283 = vmax.f32 %v251, 0.0
      %v284 = vmax.f32 %v252, 0.0
      %v285 = vmax.f32 %v253, 0.0
      %v286 = vmax.f32 %v254, 0.0
      %v287 = vmax.f32 %v255, 0.0
      %v288 = vmax.f32 %v256, 0.0
      %v289 = vmax.f32 %v257, 0.0
      %v290 = vmax.f32 %v258, 0.0
      %v291 = vmax.f32 %v259, 0.0
      %v292 = vlaneseq
      %v293 = vshrl.u32 %v292, 7
      %v294 = vadd.s32 %v293, 8
      %v295 = vadd.s32 %v293, 16
      %v296 = vadd.s32 %v293, 24
      %v297 = vadd.s32 %v293, 32
      %v298 = vadd.s32 %v293, 40
      %v299 = vadd.s32 %v293, 48
      %v300 = vadd.s32 %v293, 56
      %v301 = vadd.s32 %v293, 64
      %v302 = vadd.s32 %v293, 72
      %v303 = vadd.s32 %v293, 80
      %v304 = vadd.s32 %v293, 88
      %v305 = vadd.s32 %v293, 96
      %v306 = vadd.s32 %v293, 104
      %v307 = vadd.s32 %v293, 112
      %v308 = vadd.s32 %v293, 120
      %v309 = vadd.s32 %v293, 128
      %v310 = vadd.s32 %v293, 136
      %v311 = vadd.s32 %v293, 144
      %v312 = vadd.s32 %v293, 152
      %v313 = vadd.s32 %v293, 160
      %v314 = vadd.s32 %v293, 168
      %v315 = vadd.s32 %v293, 176
      %v316 = vadd.s32 %v293, 184
      %v317 = vadd.s32 %v293, 192
      %v318 = vadd.s32 %v293, 200
      %v319 = vadd.s32 %v293, 208
      %v320 = vadd.s32 %v293, 216
      %v321 = vadd.s32 %v293, 224
      %v322 = vadd.s32 %v293, 232
      %v323 = vadd.s32 %v293, 240
      %v324 = vadd.s32 %v293, 248
      %vm325 = vcmp.lt.s32.totalorder %v293, 0
      %v326 = vsub.s32 0, %v293
      %v327 = vsel %vm325, %v326, %v293
      %v328 = vmul.u32.u64.compose %v327, 2748779070
      %v329 = vextract.low.u32 %v328
      %v330 = vextract.high.u32 %v328
      %v331 = vshrl.u32 %v330, 4
      %v332 = vmul.u32 %v331, 25
      %v333 = vsub.s32 %v327, %v332
      %v334 = vsub.s32 0, %v333
      %v335 = vsel %vm325, %v334, %v333
      %vm336 = vcmp.lt.s32.totalorder %v294, 0
      %v337 = vsub.s32 0, %v294
      %v338 = vsel %vm336, %v337, %v294
      %v339 = vmul.u32.u64.compose %v338, 2748779070
      %v340 = vextract.low.u32 %v339
      %v341 = vextract.high.u32 %v339
      %v342 = vshrl.u32 %v341, 4
      %v343 = vmul.u32 %v342, 25
      %v344 = vsub.s32 %v338, %v343
      %v345 = vsub.s32 0, %v344
      %v346 = vsel %vm336, %v345, %v344
      %vm347 = vcmp.lt.s32.totalorder %v295, 0
      %v348 = vsub.s32 0, %v295
      %v349 = vsel %vm347, %v348, %v295
      %v350 = vmul.u32.u64.compose %v349, 2748779070
      %v351 = vextract.low.u32 %v350
      %v352 = vextract.high.u32 %v350
      %v353 = vshrl.u32 %v352, 4
      %v354 = vmul.u32 %v353, 25
      %v355 = vsub.s32 %v349, %v354
      %v356 = vsub.s32 0, %v355
      %v357 = vsel %vm347, %v356, %v355
      %vm358 = vcmp.lt.s32.totalorder %v296, 0
      %v359 = vsub.s32 0, %v296
      %v360 = vsel %vm358, %v359, %v296
      %v361 = vmul.u32.u64.compose %v360, 2748779070
      %v362 = vextract.low.u32 %v361
      %v363 = vextract.high.u32 %v361
      %v364 = vshrl.u32 %v363, 4
      %v365 = vmul.u32 %v364, 25
      %v366 = vsub.s32 %v360, %v365
      %v367 = vsub.s32 0, %v366
      %v368 = vsel %vm358, %v367, %v366
      %vm369 = vcmp.lt.s32.totalorder %v297, 0
      %v370 = vsub.s32 0, %v297
      %v371 = vsel %vm369, %v370, %v297
      %v372 = vmul.u32.u64.compose %v371, 2748779070
      %v373 = vextract.low.u32 %v372
      %v374 = vextract.high.u32 %v372
      %v375 = vshrl.u32 %v374, 4
      %v376 = vmul.u32 %v375, 25
      %v377 = vsub.s32 %v371, %v376
      %v378 = vsub.s32 0, %v377
      %v379 = vsel %vm369, %v378, %v377
      %vm380 = vcmp.lt.s32.totalorder %v298, 0
      %v381 = vsub.s32 0, %v298
      %v382 = vsel %vm380, %v381, %v298
      %v383 = vmul.u32.u64.compose %v382, 2748779070
      %v384 = vextract.low.u32 %v383
      %v385 = vextract.high.u32 %v383
      %v386 = vshrl.u32 %v385, 4
      %v387 = vmul.u32 %v386, 25
      %v388 = vsub.s32 %v382, %v387
      %v389 = vsub.s32 0, %v388
      %v390 = vsel %vm380, %v389, %v388
      %vm391 = vcmp.lt.s32.totalorder %v299, 0
      %v392 = vsub.s32 0, %v299
      %v393 = vsel %vm391, %v392, %v299
      %v394 = vmul.u32.u64.compose %v393, 2748779070
      %v395 = vextract.low.u32 %v394
      %v396 = vextract.high.u32 %v394
      %v397 = vshrl.u32 %v396, 4
      %v398 = vmul.u32 %v397, 25
      %v399 = vsub.s32 %v393, %v398
      %v400 = vsub.s32 0, %v399
      %v401 = vsel %vm391, %v400, %v399
      %vm402 = vcmp.lt.s32.totalorder %v300, 0
      %v403 = vsub.s32 0, %v300
      %v404 = vsel %vm402, %v403, %v300
      %v405 = vmul.u32.u64.compose %v404, 2748779070
      %v406 = vextract.low.u32 %v405
      %v407 = vextract.high.u32 %v405
      %v408 = vshrl.u32 %v407, 4
      %v409 = vmul.u32 %v408, 25
      %v410 = vsub.s32 %v404, %v409
      %v411 = vsub.s32 0, %v410
      %v412 = vsel %vm402, %v411, %v410
      %vm413 = vcmp.lt.s32.totalorder %v301, 0
      %v414 = vsub.s32 0, %v301
      %v415 = vsel %vm413, %v414, %v301
      %v416 = vmul.u32.u64.compose %v415, 2748779070
      %v417 = vextract.low.u32 %v416
      %v418 = vextract.high.u32 %v416
      %v419 = vshrl.u32 %v418, 4
      %v420 = vmul.u32 %v419, 25
      %v421 = vsub.s32 %v415, %v420
      %v422 = vsub.s32 0, %v421
      %v423 = vsel %vm413, %v422, %v421
      %vm424 = vcmp.lt.s32.totalorder %v302, 0
      %v425 = vsub.s32 0, %v302
      %v426 = vsel %vm424, %v425, %v302
      %v427 = vmul.u32.u64.compose %v426, 2748779070
      %v428 = vextract.low.u32 %v427
      %v429 = vextract.high.u32 %v427
      %v430 = vshrl.u32 %v429, 4
      %v431 = vmul.u32 %v430, 25
      %v432 = vsub.s32 %v426, %v431
      %v433 = vsub.s32 0, %v432
      %v434 = vsel %vm424, %v433, %v432
      %vm435 = vcmp.lt.s32.totalorder %v303, 0
      %v436 = vsub.s32 0, %v303
      %v437 = vsel %vm435, %v436, %v303
      %v438 = vmul.u32.u64.compose %v437, 2748779070
      %v439 = vextract.low.u32 %v438
      %v440 = vextract.high.u32 %v438
      %v441 = vshrl.u32 %v440, 4
      %v442 = vmul.u32 %v441, 25
      %v443 = vsub.s32 %v437, %v442
      %v444 = vsub.s32 0, %v443
      %v445 = vsel %vm435, %v444, %v443
      %vm446 = vcmp.lt.s32.totalorder %v304, 0
      %v447 = vsub.s32 0, %v304
      %v448 = vsel %vm446, %v447, %v304
      %v449 = vmul.u32.u64.compose %v448, 2748779070
      %v450 = vextract.low.u32 %v449
      %v451 = vextract.high.u32 %v449
      %v452 = vshrl.u32 %v451, 4
      %v453 = vmul.u32 %v452, 25
      %v454 = vsub.s32 %v448, %v453
      %v455 = vsub.s32 0, %v454
      %v456 = vsel %vm446, %v455, %v454
      %vm457 = vcmp.lt.s32.totalorder %v305, 0
      %v458 = vsub.s32 0, %v305
      %v459 = vsel %vm457, %v458, %v305
      %v460 = vmul.u32.u64.compose %v459, 2748779070
      %v461 = vextract.low.u32 %v460
      %v462 = vextract.high.u32 %v460
      %v463 = vshrl.u32 %v462, 4
      %v464 = vmul.u32 %v463, 25
      %v465 = vsub.s32 %v459, %v464
      %v466 = vsub.s32 0, %v465
      %v467 = vsel %vm457, %v466, %v465
      %vm468 = vcmp.lt.s32.totalorder %v306, 0
      %v469 = vsub.s32 0, %v306
      %v470 = vsel %vm468, %v469, %v306
      %v471 = vmul.u32.u64.compose %v470, 2748779070
      %v472 = vextract.low.u32 %v471
      %v473 = vextract.high.u32 %v471
      %v474 = vshrl.u32 %v473, 4
      %v475 = vmul.u32 %v474, 25
      %v476 = vsub.s32 %v470, %v475
      %v477 = vsub.s32 0, %v476
      %v478 = vsel %vm468, %v477, %v476
      %vm479 = vcmp.lt.s32.totalorder %v307, 0
      %v480 = vsub.s32 0, %v307
      %v481 = vsel %vm479, %v480, %v307
      %v482 = vmul.u32.u64.compose %v481, 2748779070
      %v483 = vextract.low.u32 %v482
      %v484 = vextract.high.u32 %v482
      %v485 = vshrl.u32 %v484, 4
      %v486 = vmul.u32 %v485, 25
      %v487 = vsub.s32 %v481, %v486
      %v488 = vsub.s32 0, %v487
      %v489 = vsel %vm479, %v488, %v487
      %vm490 = vcmp.lt.s32.totalorder %v308, 0
      %v491 = vsub.s32 0, %v308
      %v492 = vsel %vm490, %v491, %v308
      %v493 = vmul.u32.u64.compose %v492, 2748779070
      %v494 = vextract.low.u32 %v493
      %v495 = vextract.high.u32 %v493
      %v496 = vshrl.u32 %v495, 4
      %v497 = vmul.u32 %v496, 25
      %v498 = vsub.s32 %v492, %v497
      %v499 = vsub.s32 0, %v498
      %v500 = vsel %vm490, %v499, %v498
      %vm501 = vcmp.lt.s32.totalorder %v309, 0
      %v502 = vsub.s32 0, %v309
      %v503 = vsel %vm501, %v502, %v309
      %v504 = vmul.u32.u64.compose %v503, 2748779070
      %v505 = vextract.low.u32 %v504
      %v506 = vextract.high.u32 %v504
      %v507 = vshrl.u32 %v506, 4
      %v508 = vmul.u32 %v507, 25
      %v509 = vsub.s32 %v503, %v508
      %v510 = vsub.s32 0, %v509
      %v511 = vsel %vm501, %v510, %v509
      %vm512 = vcmp.lt.s32.totalorder %v310, 0
      %v513 = vsub.s32 0, %v310
      %v514 = vsel %vm512, %v513, %v310
      %v515 = vmul.u32.u64.compose %v514, 2748779070
      %v516 = vextract.low.u32 %v515
      %v517 = vextract.high.u32 %v515
      %v518 = vshrl.u32 %v517, 4
      %v519 = vmul.u32 %v518, 25
      %v520 = vsub.s32 %v514, %v519
      %v521 = vsub.s32 0, %v520
      %v522 = vsel %vm512, %v521, %v520
      %vm523 = vcmp.lt.s32.totalorder %v311, 0
      %v524 = vsub.s32 0, %v311
      %v525 = vsel %vm523, %v524, %v311
      %v526 = vmul.u32.u64.compose %v525, 2748779070
      %v527 = vextract.low.u32 %v526
      %v528 = vextract.high.u32 %v526
      %v529 = vshrl.u32 %v528, 4
      %v530 = vmul.u32 %v529, 25
      %v531 = vsub.s32 %v525, %v530
      %v532 = vsub.s32 0, %v531
      %v533 = vsel %vm523, %v532, %v531
      %vm534 = vcmp.lt.s32.totalorder %v312, 0
      %v535 = vsub.s32 0, %v312
      %v536 = vsel %vm534, %v535, %v312
      %v537 = vmul.u32.u64.compose %v536, 2748779070
      %v538 = vextract.low.u32 %v537
      %v539 = vextract.high.u32 %v537
      %v540 = vshrl.u32 %v539, 4
      %v541 = vmul.u32 %v540, 25
      %v542 = vsub.s32 %v536, %v541
      %v543 = vsub.s32 0, %v542
      %v544 = vsel %vm534, %v543, %v542
      %vm545 = vcmp.lt.s32.totalorder %v313, 0
      %v546 = vsub.s32 0, %v313
      %v547 = vsel %vm545, %v546, %v313
      %v548 = vmul.u32.u64.compose %v547, 2748779070
      %v549 = vextract.low.u32 %v548
      %v550 = vextract.high.u32 %v548
      %v551 = vshrl.u32 %v550, 4
      %v552 = vmul.u32 %v551, 25
      %v553 = vsub.s32 %v547, %v552
      %v554 = vsub.s32 0, %v553
      %v555 = vsel %vm545, %v554, %v553
      %vm556 = vcmp.lt.s32.totalorder %v314, 0
      %v557 = vsub.s32 0, %v314
      %v558 = vsel %vm556, %v557, %v314
      %v559 = vmul.u32.u64.compose %v558, 2748779070
      %v560 = vextract.low.u32 %v559
      %v561 = vextract.high.u32 %v559
      %v562 = vshrl.u32 %v561, 4
      %v563 = vmul.u32 %v562, 25
      %v564 = vsub.s32 %v558, %v563
      %v565 = vsub.s32 0, %v564
      %v566 = vsel %vm556, %v565, %v564
      %vm567 = vcmp.lt.s32.totalorder %v315, 0
      %v568 = vsub.s32 0, %v315
      %v569 = vsel %vm567, %v568, %v315
      %v570 = vmul.u32.u64.compose %v569, 2748779070
      %v571 = vextract.low.u32 %v570
      %v572 = vextract.high.u32 %v570
      %v573 = vshrl.u32 %v572, 4
      %v574 = vmul.u32 %v573, 25
      %v575 = vsub.s32 %v569, %v574
      %v576 = vsub.s32 0, %v575
      %v577 = vsel %vm567, %v576, %v575
      %vm578 = vcmp.lt.s32.totalorder %v316, 0
      %v579 = vsub.s32 0, %v316
      %v580 = vsel %vm578, %v579, %v316
      %v581 = vmul.u32.u64.compose %v580, 2748779070
      %v582 = vextract.low.u32 %v581
      %v583 = vextract.high.u32 %v581
      %v584 = vshrl.u32 %v583, 4
      %v585 = vmul.u32 %v584, 25
      %v586 = vsub.s32 %v580, %v585
      %v587 = vsub.s32 0, %v586
      %v588 = vsel %vm578, %v587, %v586
      %vm589 = vcmp.lt.s32.totalorder %v317, 0
      %v590 = vsub.s32 0, %v317
      %v591 = vsel %vm589, %v590, %v317
      %v592 = vmul.u32.u64.compose %v591, 2748779070
      %v593 = vextract.low.u32 %v592
      %v594 = vextract.high.u32 %v592
      %v595 = vshrl.u32 %v594, 4
      %v596 = vmul.u32 %v595, 25
      %v597 = vsub.s32 %v591, %v596
      %v598 = vsub.s32 0, %v597
      %v599 = vsel %vm589, %v598, %v597
      %vm600 = vcmp.lt.s32.totalorder %v318, 0
      %v601 = vsub.s32 0, %v318
      %v602 = vsel %vm600, %v601, %v318
      %v603 = vmul.u32.u64.compose %v602, 2748779070
      %v604 = vextract.low.u32 %v603
      %v605 = vextract.high.u32 %v603
      %v606 = vshrl.u32 %v605, 4
      %v607 = vmul.u32 %v606, 25
      %v608 = vsub.s32 %v602, %v607
      %v609 = vsub.s32 0, %v608
      %v610 = vsel %vm600, %v609, %v608
      %vm611 = vcmp.lt.s32.totalorder %v319, 0
      %v612 = vsub.s32 0, %v319
      %v613 = vsel %vm611, %v612, %v319
      %v614 = vmul.u32.u64.compose %v613, 2748779070
      %v615 = vextract.low.u32 %v614
      %v616 = vextract.high.u32 %v614
      %v617 = vshrl.u32 %v616, 4
      %v618 = vmul.u32 %v617, 25
      %v619 = vsub.s32 %v613, %v618
      %v620 = vsub.s32 0, %v619
      %v621 = vsel %vm611, %v620, %v619
      %vm622 = vcmp.lt.s32.totalorder %v320, 0
      %v623 = vsub.s32 0, %v320
      %v624 = vsel %vm622, %v623, %v320
      %v625 = vmul.u32.u64.compose %v624, 2748779070
      %v626 = vextract.low.u32 %v625
      %v627 = vextract.high.u32 %v625
      %v628 = vshrl.u32 %v627, 4
      %v629 = vmul.u32 %v628, 25
      %v630 = vsub.s32 %v624, %v629
      %v631 = vsub.s32 0, %v630
      %v632 = vsel %vm622, %v631, %v630
      %vm633 = vcmp.lt.s32.totalorder %v321, 0
      %v634 = vsub.s32 0, %v321
      %v635 = vsel %vm633, %v634, %v321
      %v636 = vmul.u32.u64.compose %v635, 2748779070
      %v637 = vextract.low.u32 %v636
      %v638 = vextract.high.u32 %v636
      %v639 = vshrl.u32 %v638, 4
      %v640 = vmul.u32 %v639, 25
      %v641 = vsub.s32 %v635, %v640
      %v642 = vsub.s32 0, %v641
      %v643 = vsel %vm633, %v642, %v641
      %vm644 = vcmp.lt.s32.totalorder %v322, 0
      %v645 = vsub.s32 0, %v322
      %v646 = vsel %vm644, %v645, %v322
      %v647 = vmul.u32.u64.compose %v646, 2748779070
      %v648 = vextract.low.u32 %v647
      %v649 = vextract.high.u32 %v647
      %v650 = vshrl.u32 %v649, 4
      %v651 = vmul.u32 %v650, 25
      %v652 = vsub.s32 %v646, %v651
      %v653 = vsub.s32 0, %v652
      %v654 = vsel %vm644, %v653, %v652
      %vm655 = vcmp.lt.s32.totalorder %v323, 0
      %v656 = vsub.s32 0, %v323
      %v657 = vsel %vm655, %v656, %v323
      %v658 = vmul.u32.u64.compose %v657, 2748779070
      %v659 = vextract.low.u32 %v658
      %v660 = vextract.high.u32 %v658
      %v661 = vshrl.u32 %v660, 4
      %v662 = vmul.u32 %v661, 25
      %v663 = vsub.s32 %v657, %v662
      %v664 = vsub.s32 0, %v663
      %v665 = vsel %vm655, %v664, %v663
      %vm666 = vcmp.lt.s32.totalorder %v324, 0
      %v667 = vsub.s32 0, %v324
      %v668 = vsel %vm666, %v667, %v324
      %v669 = vmul.u32.u64.compose %v668, 2748779070
      %v670 = vextract.low.u32 %v669
      %v671 = vextract.high.u32 %v669
      %v672 = vshrl.u32 %v671, 4
      %v673 = vmul.u32 %v672, 25
      %v674 = vsub.s32 %v668, %v673
      %v675 = vsub.s32 0, %v674
      %v676 = vsel %vm666, %v675, %v674
      %vm677 = vcmp.ne.s32.totalorder %v335, 0
      %vm678 = vcmp.ne.s32.totalorder %v346, 0
      %vm679 = vcmp.ne.s32.totalorder %v357, 0
      %vm680 = vcmp.ne.s32.totalorder %v368, 0
      %vm681 = vcmp.ne.s32.totalorder %v379, 0
      %vm682 = vcmp.ne.s32.totalorder %v390, 0
      %vm683 = vcmp.ne.s32.totalorder %v401, 0
      %vm684 = vcmp.ne.s32.totalorder %v412, 0
      %vm685 = vcmp.ne.s32.totalorder %v423, 0
      %vm686 = vcmp.ne.s32.totalorder %v434, 0
      %vm687 = vcmp.ne.s32.totalorder %v445, 0
      %vm688 = vcmp.ne.s32.totalorder %v456, 0
      %vm689 = vcmp.ne.s32.totalorder %v467, 0
      %vm690 = vcmp.ne.s32.totalorder %v478, 0
      %vm691 = vcmp.ne.s32.totalorder %v489, 0
      %vm692 = vcmp.ne.s32.totalorder %v500, 0
      %vm693 = vcmp.ne.s32.totalorder %v511, 0
      %vm694 = vcmp.ne.s32.totalorder %v522, 0
      %vm695 = vcmp.ne.s32.totalorder %v533, 0
      %vm696 = vcmp.ne.s32.totalorder %v544, 0
      %vm697 = vcmp.ne.s32.totalorder %v555, 0
      %vm698 = vcmp.ne.s32.totalorder %v566, 0
      %vm699 = vcmp.ne.s32.totalorder %v577, 0
      %vm700 = vcmp.ne.s32.totalorder %v588, 0
      %vm701 = vcmp.ne.s32.totalorder %v599, 0
      %vm702 = vcmp.ne.s32.totalorder %v610, 0
      %vm703 = vcmp.ne.s32.totalorder %v621, 0
      %vm704 = vcmp.ne.s32.totalorder %v632, 0
      %vm705 = vcmp.ne.s32.totalorder %v643, 0
      %vm706 = vcmp.ne.s32.totalorder %v654, 0
      %vm707 = vcmp.ne.s32.totalorder %v665, 0
      %vm708 = vcmp.ne.s32.totalorder %v676, 0
      %vm709 = vcmp.lt.s32.totalorder %v335, 0
      %vm710 = vcmp.lt.s32.totalorder %v346, 0
      %vm711 = vcmp.lt.s32.totalorder %v357, 0
      %vm712 = vcmp.lt.s32.totalorder %v368, 0
      %vm713 = vcmp.lt.s32.totalorder %v379, 0
      %vm714 = vcmp.lt.s32.totalorder %v390, 0
      %vm715 = vcmp.lt.s32.totalorder %v401, 0
      %vm716 = vcmp.lt.s32.totalorder %v412, 0
      %vm717 = vcmp.lt.s32.totalorder %v423, 0
      %vm718 = vcmp.lt.s32.totalorder %v434, 0
      %vm719 = vcmp.lt.s32.totalorder %v445, 0
      %vm720 = vcmp.lt.s32.totalorder %v456, 0
      %vm721 = vcmp.lt.s32.totalorder %v467, 0
      %vm722 = vcmp.lt.s32.totalorder %v478, 0
      %vm723 = vcmp.lt.s32.totalorder %v489, 0
      %vm724 = vcmp.lt.s32.totalorder %v500, 0
      %vm725 = vcmp.lt.s32.totalorder %v511, 0
      %vm726 = vcmp.lt.s32.totalorder %v522, 0
      %vm727 = vcmp.lt.s32.totalorder %v533, 0
      %vm728 = vcmp.lt.s32.totalorder %v544, 0
      %vm729 = vcmp.lt.s32.totalorder %v555, 0
      %vm730 = vcmp.lt.s32.totalorder %v566, 0
      %vm731 = vcmp.lt.s32.totalorder %v577, 0
      %vm732 = vcmp.lt.s32.totalorder %v588, 0
      %vm733 = vcmp.lt.s32.totalorder %v599, 0
      %vm734 = vcmp.lt.s32.totalorder %v610, 0
      %vm735 = vcmp.lt.s32.totalorder %v621, 0
      %vm736 = vcmp.lt.s32.totalorder %v632, 0
      %vm737 = vcmp.lt.s32.totalorder %v643, 0
      %vm738 = vcmp.lt.s32.totalorder %v654, 0
      %vm739 = vcmp.lt.s32.totalorder %v665, 0
      %vm740 = vcmp.lt.s32.totalorder %v676, 0
      %vm741 = vmand %vm709, %vm677
      %vm742 = vmand %vm710, %vm678
      %vm743 = vmand %vm711, %vm679
      %vm744 = vmand %vm712, %vm680
      %vm745 = vmand %vm713, %vm681
      %vm746 = vmand %vm714, %vm682
      %vm747 = vmand %vm715, %vm683
      %vm748 = vmand %vm716, %vm684
      %vm749 = vmand %vm717, %vm685
      %vm750 = vmand %vm718, %vm686
      %vm751 = vmand %vm719, %vm687
      %vm752 = vmand %vm720, %vm688
      %vm753 = vmand %vm721, %vm689
      %vm754 = vmand %vm722, %vm690
      %vm755 = vmand %vm723, %vm691
      %vm756 = vmand %vm724, %vm692
      %vm757 = vmand %vm725, %vm693
      %vm758 = vmand %vm726, %vm694
      %vm759 = vmand %vm727, %vm695
      %vm760 = vmand %vm728, %vm696
      %vm761 = vmand %vm729, %vm697
      %vm762 = vmand %vm730, %vm698
      %vm763 = vmand %vm731, %vm699
      %vm764 = vmand %vm732, %vm700
      %vm765 = vmand %vm733, %vm701
      %vm766 = vmand %vm734, %vm702
      %vm767 = vmand %vm735, %vm703
      %vm768 = vmand %vm736, %vm704
      %vm769 = vmand %vm737, %vm705
      %vm770 = vmand %vm738, %vm706
      %vm771 = vmand %vm739, %vm707
      %vm772 = vmand %vm740, %vm708
      %v773 = vadd.s32 %v335, 25
      %v774 = vadd.s32 %v346, 25
      %v775 = vadd.s32 %v357, 25
      %v776 = vadd.s32 %v368, 25
      %v777 = vadd.s32 %v379, 25
      %v778 = vadd.s32 %v390, 25
      %v779 = vadd.s32 %v401, 25
      %v780 = vadd.s32 %v412, 25
      %v781 = vadd.s32 %v423, 25
      %v782 = vadd.s32 %v434, 25
      %v783 = vadd.s32 %v445, 25
      %v784 = vadd.s32 %v456, 25
      %v785 = vadd.s32 %v467, 25
      %v786 = vadd.s32 %v478, 25
      %v787 = vadd.s32 %v489, 25
      %v788 = vadd.s32 %v500, 25
      %v789 = vadd.s32 %v511, 25
      %v790 = vadd.s32 %v522, 25
      %v791 = vadd.s32 %v533, 25
      %v792 = vadd.s32 %v544, 25
      %v793 = vadd.s32 %v555, 25
      %v794 = vadd.s32 %v566, 25
      %v795 = vadd.s32 %v577, 25
      %v796 = vadd.s32 %v588, 25
      %v797 = vadd.s32 %v599, 25
      %v798 = vadd.s32 %v610, 25
      %v799 = vadd.s32 %v621, 25
      %v800 = vadd.s32 %v632, 25
      %v801 = vadd.s32 %v643, 25
      %v802 = vadd.s32 %v654, 25
      %v803 = vadd.s32 %v665, 25
      %v804 = vadd.s32 %v676, 25
      %v805 = vsel %vm741, %v773, %v335
      %v806 = vsel %vm742, %v774, %v346
      %v807 = vsel %vm743, %v775, %v357
      %v808 = vsel %vm744, %v776, %v368
      %v809 = vsel %vm745, %v777, %v379
      %v810 = vsel %vm746, %v778, %v390
      %v811 = vsel %vm747, %v779, %v401
      %v812 = vsel %vm748, %v780, %v412
      %v813 = vsel %vm749, %v781, %v423
      %v814 = vsel %vm750, %v782, %v434
      %v815 = vsel %vm751, %v783, %v445
      %v816 = vsel %vm752, %v784, %v456
      %v817 = vsel %vm753, %v785, %v467
      %v818 = vsel %vm754, %v786, %v478
      %v819 = vsel %vm755, %v787, %v489
      %v820 = vsel %vm756, %v788, %v500
      %v821 = vsel %vm757, %v789, %v511
      %v822 = vsel %vm758, %v790, %v522
      %v823 = vsel %vm759, %v791, %v533
      %v824 = vsel %vm760, %v792, %v544
      %v825 = vsel %vm761, %v793, %v555
      %v826 = vsel %vm762, %v794, %v566
      %v827 = vsel %vm763, %v795, %v577
      %v828 = vsel %vm764, %v796, %v588
      %v829 = vsel %vm765, %v797, %v599
      %v830 = vsel %vm766, %v798, %v610
      %v831 = vsel %vm767, %v799, %v621
      %v832 = vsel %vm768, %v800, %v632
      %v833 = vsel %vm769, %v801, %v643
      %v834 = vsel %vm770, %v802, %v654
      %v835 = vsel %vm771, %v803, %v665
      %v836 = vsel %vm772, %v804, %v676
      %vm837 = vcmp.eq.s32.totalorder %v805, 0
      %vm838 = vcmp.eq.s32.totalorder %v806, 0
      %vm839 = vcmp.eq.s32.totalorder %v807, 0
      %vm840 = vcmp.eq.s32.totalorder %v808, 0
      %vm841 = vcmp.eq.s32.totalorder %v809, 0
      %vm842 = vcmp.eq.s32.totalorder %v810, 0
      %vm843 = vcmp.eq.s32.totalorder %v811, 0
      %vm844 = vcmp.eq.s32.totalorder %v812, 0
      %vm845 = vcmp.eq.s32.totalorder %v813, 0
      %vm846 = vcmp.eq.s32.totalorder %v814, 0
      %vm847 = vcmp.eq.s32.totalorder %v815, 0
      %vm848 = vcmp.eq.s32.totalorder %v816, 0
      %vm849 = vcmp.eq.s32.totalorder %v817, 0
      %vm850 = vcmp.eq.s32.totalorder %v818, 0
      %vm851 = vcmp.eq.s32.totalorder %v819, 0
      %vm852 = vcmp.eq.s32.totalorder %v820, 0
      %vm853 = vcmp.eq.s32.totalorder %v821, 0
      %vm854 = vcmp.eq.s32.totalorder %v822, 0
      %vm855 = vcmp.eq.s32.totalorder %v823, 0
      %vm856 = vcmp.eq.s32.totalorder %v824, 0
      %vm857 = vcmp.eq.s32.totalorder %v825, 0
      %vm858 = vcmp.eq.s32.totalorder %v826, 0
      %vm859 = vcmp.eq.s32.totalorder %v827, 0
      %vm860 = vcmp.eq.s32.totalorder %v828, 0
      %vm861 = vcmp.eq.s32.totalorder %v829, 0
      %vm862 = vcmp.eq.s32.totalorder %v830, 0
      %vm863 = vcmp.eq.s32.totalorder %v831, 0
      %vm864 = vcmp.eq.s32.totalorder %v832, 0
      %vm865 = vcmp.eq.s32.totalorder %v833, 0
      %vm866 = vcmp.eq.s32.totalorder %v834, 0
      %vm867 = vcmp.eq.s32.totalorder %v835, 0
      %vm868 = vcmp.eq.s32.totalorder %v836, 0
      %vm901 = vcmask 1040384
      %v902 = vrot.slane %v260, 7
      %v903 = vrot.slane %v261, 7
      %v904 = vsel %vm901, %v902, %v903
      %v905 = vrot.slane %v262, 7
      %v906 = vsel %vm901, %v903, %v905
      %v907 = vrot.slane %v263, 7
      %v908 = vsel %vm901, %v905, %v907
      %v909 = vrot.slane %v264, 7
      %v910 = vsel %vm901, %v907, %v909
      %v911 = vrot.slane %v265, 7
      %v912 = vsel %vm901, %v909, %v911
      %v913 = vrot.slane %v266, 7
      %v914 = vsel %vm901, %v911, %v913
      %v915 = vrot.slane %v267, 7
      %v916 = vsel %vm901, %v913, %v915
      %v917 = vrot.slane %v268, 7
      %v918 = vsel %vm901, %v915, %v917
      %v919 = vrot.slane %v269, 7
      %v920 = vsel %vm901, %v917, %v919
      %v921 = vrot.slane %v270, 7
      %v922 = vsel %vm901, %v919, %v921
      %v923 = vrot.slane %v271, 7
      %v924 = vsel %vm901, %v921, %v923
      %v925 = vrot.slane %v272, 7
      %v926 = vsel %vm901, %v923, %v925
      %v927 = vrot.slane %v273, 7
      %v928 = vsel %vm901, %v925, %v927
      %v929 = vrot.slane %v274, 7
      %v930 = vsel %vm901, %v927, %v929
      %v931 = vrot.slane %v275, 7
      %v932 = vsel %vm901, %v929, %v931
      %v933 = vrot.slane %v276, 7
      %v934 = vsel %vm901, %v931, %v933
      %v935 = vrot.slane %v277, 7
      %v936 = vsel %vm901, %v933, %v935
      %v937 = vrot.slane %v278, 7
      %v938 = vsel %vm901, %v935, %v937
      %v939 = vrot.slane %v279, 7
      %v940 = vsel %vm901, %v937, %v939
      %v941 = vrot.slane %v280, 7
      %v942 = vsel %vm901, %v939, %v941
      %v943 = vrot.slane %v281, 7
      %v944 = vsel %vm901, %v941, %v943
      %v945 = vrot.slane %v282, 7
      %v946 = vsel %vm901, %v943, %v945
      %v947 = vrot.slane %v283, 7
      %v948 = vsel %vm901, %v945, %v947
      %v949 = vrot.slane %v284, 7
      %v950 = vsel %vm901, %v947, %v949
      %v951 = vrot.slane %v285, 7
      %v952 = vsel %vm901, %v949, %v951
      %v953 = vrot.slane %v286, 7
      %v954 = vsel %vm901, %v951, %v953
      %v955 = vrot.slane %v287, 7
      %v956 = vsel %vm901, %v953, %v955
      %v957 = vrot.slane %v288, 7
      %v958 = vsel %vm901, %v955, %v957
      %v959 = vrot.slane %v289, 7
      %v960 = vsel %vm901, %v957, %v959
      %v961 = vrot.slane %v290, 7
      %v962 = vsel %vm901, %v959, %v961
      %v963 = vrot.slane %v291, 7
      %v964 = vsel %vm901, %v961, %v963
      %v997 = vsel %vm901, 0.0, %v902
      %v998 = vsel %vm837, 1, 0
      %v999 = vsel %vm838, 1, 0
      %v1000 = vsel %vm839, 1, 0
      %v1001 = vsel %vm840, 1, 0
      %v1002 = vsel %vm841, 1, 0
      %v1003 = vsel %vm842, 1, 0
      %v1004 = vsel %vm843, 1, 0
      %v1005 = vsel %vm844, 1, 0
      %v1006 = vsel %vm845, 1, 0
      %v1007 = vsel %vm846, 1, 0
      %v1008 = vsel %vm847, 1, 0
      %v1009 = vsel %vm848, 1, 0
      %v1010 = vsel %vm849, 1, 0
      %v1011 = vsel %vm850, 1, 0
      %v1012 = vsel %vm851, 1, 0
      %v1013 = vsel %vm852, 1, 0
      %v1014 = vsel %vm853, 1, 0
      %v1015 = vsel %vm854, 1, 0
      %v1016 = vsel %vm855, 1, 0
      %v1017 = vsel %vm856, 1, 0
      %v1018 = vsel %vm857, 1, 0
      %v1019 = vsel %vm858, 1, 0
      %v1020 = vsel %vm859, 1, 0
      %v1021 = vsel %vm860, 1, 0
      %v1022 = vsel %vm861, 1, 0
      %v1023 = vsel %vm862, 1, 0
      %v1024 = vsel %vm863, 1, 0
      %v1025 = vsel %vm864, 1, 0
      %v1026 = vsel %vm865, 1, 0
      %v1027 = vsel %vm866, 1, 0
      %v1028 = vsel %vm867, 1, 0
      %v1029 = vsel %vm868, 1, 0
      %vm1030 = vcmp.eq.s32.totalorder %v998, 1
      %vm1031 = vcmp.eq.s32.totalorder %v999, 1
      %vm1032 = vcmp.eq.s32.totalorder %v1000, 1
      %vm1033 = vcmp.eq.s32.totalorder %v1001, 1
      %vm1034 = vcmp.eq.s32.totalorder %v1002, 1
      %vm1035 = vcmp.eq.s32.totalorder %v1003, 1
      %vm1036 = vcmp.eq.s32.totalorder %v1004, 1
      %vm1037 = vcmp.eq.s32.totalorder %v1005, 1
      %vm1038 = vcmp.eq.s32.totalorder %v1006, 1
      %vm1039 = vcmp.eq.s32.totalorder %v1007, 1
      %vm1040 = vcmp.eq.s32.totalorder %v1008, 1
      %vm1041 = vcmp.eq.s32.totalorder %v1009, 1
      %vm1042 = vcmp.eq.s32.totalorder %v1010, 1
      %vm1043 = vcmp.eq.s32.totalorder %v1011, 1
      %vm1044 = vcmp.eq.s32.totalorder %v1012, 1
      %vm1045 = vcmp.eq.s32.totalorder %v1013, 1
      %vm1046 = vcmp.eq.s32.totalorder %v1014, 1
      %vm1047 = vcmp.eq.s32.totalorder %v1015, 1
      %vm1048 = vcmp.eq.s32.totalorder %v1016, 1
      %vm1049 = vcmp.eq.s32.totalorder %v1017, 1
      %vm1050 = vcmp.eq.s32.totalorder %v1018, 1
      %vm1051 = vcmp.eq.s32.totalorder %v1019, 1
      %vm1052 = vcmp.eq.s32.totalorder %v1020, 1
      %vm1053 = vcmp.eq.s32.totalorder %v1021, 1
      %vm1054 = vcmp.eq.s32.totalorder %v1022, 1
      %vm1055 = vcmp.eq.s32.totalorder %v1023, 1
      %vm1056 = vcmp.eq.s32.totalorder %v1024, 1
      %vm1057 = vcmp.eq.s32.totalorder %v1025, 1
      %vm1058 = vcmp.eq.s32.totalorder %v1026, 1
      %vm1059 = vcmp.eq.s32.totalorder %v1027, 1
      %vm1060 = vcmp.eq.s32.totalorder %v1028, 1
      %vm1061 = vcmp.eq.s32.totalorder %v1029, 1
      %v1062 = vsel %vm1030, 0.0, %v997
      %v1063 = vsel %vm1031, 0.0, %v904
      %v1064 = vsel %vm1032, 0.0, %v906
      %v1065 = vsel %vm1033, 0.0, %v908
      %v1066 = vsel %vm1034, 0.0, %v910
      %v1067 = vsel %vm1035, 0.0, %v912
      %v1068 = vsel %vm1036, 0.0, %v914
      %v1069 = vsel %vm1037, 0.0, %v916
      %v1070 = vsel %vm1038, 0.0, %v918
      %v1071 = vsel %vm1039, 0.0, %v920
      %v1072 = vsel %vm1040, 0.0, %v922
      %v1073 = vsel %vm1041, 0.0, %v924
      %v1074 = vsel %vm1042, 0.0, %v926
      %v1075 = vsel %vm1043, 0.0, %v928
      %v1076 = vsel %vm1044, 0.0, %v930
      %v1077 = vsel %vm1045, 0.0, %v932
      %v1078 = vsel %vm1046, 0.0, %v934
      %v1079 = vsel %vm1047, 0.0, %v936
      %v1080 = vsel %vm1048, 0.0, %v938
      %v1081 = vsel %vm1049, 0.0, %v940
      %v1082 = vsel %vm1050, 0.0, %v942
      %v1083 = vsel %vm1051, 0.0, %v944
      %v1084 = vsel %vm1052, 0.0, %v946
      %v1085 = vsel %vm1053, 0.0, %v948
      %v1086 = vsel %vm1054, 0.0, %v950
      %v1087 = vsel %vm1055, 0.0, %v952
      %v1088 = vsel %vm1056, 0.0, %v954
      %v1089 = vsel %vm1057, 0.0, %v956
      %v1090 = vsel %vm1058, 0.0, %v958
      %v1091 = vsel %vm1059, 0.0, %v960
      %v1092 = vsel %vm1060, 0.0, %v962
      %v1093 = vsel %vm1061, 0.0, %v964
      %vm1094 = vcmp.eq.s32.totalorder %v805, 24
      %vm1095 = vcmp.eq.s32.totalorder %v806, 24
      %vm1096 = vcmp.eq.s32.totalorder %v807, 24
      %vm1097 = vcmp.eq.s32.totalorder %v808, 24
      %vm1098 = vcmp.eq.s32.totalorder %v809, 24
      %vm1099 = vcmp.eq.s32.totalorder %v810, 24
      %vm1100 = vcmp.eq.s32.totalorder %v811, 24
      %vm1101 = vcmp.eq.s32.totalorder %v812, 24
      %vm1102 = vcmp.eq.s32.totalorder %v813, 24
      %vm1103 = vcmp.eq.s32.totalorder %v814, 24
      %vm1104 = vcmp.eq.s32.totalorder %v815, 24
      %vm1105 = vcmp.eq.s32.totalorder %v816, 24
      %vm1106 = vcmp.eq.s32.totalorder %v817, 24
      %vm1107 = vcmp.eq.s32.totalorder %v818, 24
      %vm1108 = vcmp.eq.s32.totalorder %v819, 24
      %vm1109 = vcmp.eq.s32.totalorder %v820, 24
      %vm1110 = vcmp.eq.s32.totalorder %v821, 24
      %vm1111 = vcmp.eq.s32.totalorder %v822, 24
      %vm1112 = vcmp.eq.s32.totalorder %v823, 24
      %vm1113 = vcmp.eq.s32.totalorder %v824, 24
      %vm1114 = vcmp.eq.s32.totalorder %v825, 24
      %vm1115 = vcmp.eq.s32.totalorder %v826, 24
      %vm1116 = vcmp.eq.s32.totalorder %v827, 24
      %vm1117 = vcmp.eq.s32.totalorder %v828, 24
      %vm1118 = vcmp.eq.s32.totalorder %v829, 24
      %vm1119 = vcmp.eq.s32.totalorder %v830, 24
      %vm1120 = vcmp.eq.s32.totalorder %v831, 24
      %vm1121 = vcmp.eq.s32.totalorder %v832, 24
      %vm1122 = vcmp.eq.s32.totalorder %v833, 24
      %vm1123 = vcmp.eq.s32.totalorder %v834, 24
      %vm1124 = vcmp.eq.s32.totalorder %v835, 24
      %vm1125 = vcmp.eq.s32.totalorder %v836, 24
      %vm1126 = vcmask 1046528
      %v1127 = vrot.slane %v260, 1
      %v1128 = vrot.slane %v261, 1
      %v1129 = vsel %vm1126, %v1127, %v1128
      %v1130 = vrot.slane %v262, 1
      %v1131 = vsel %vm1126, %v1128, %v1130
      %v1132 = vrot.slane %v263, 1
      %v1133 = vsel %vm1126, %v1130, %v1132
      %v1134 = vrot.slane %v264, 1
      %v1135 = vsel %vm1126, %v1132, %v1134
      %v1136 = vrot.slane %v265, 1
      %v1137 = vsel %vm1126, %v1134, %v1136
      %v1138 = vrot.slane %v266, 1
      %v1139 = vsel %vm1126, %v1136, %v1138
      %v1140 = vrot.slane %v267, 1
      %v1141 = vsel %vm1126, %v1138, %v1140
      %v1142 = vrot.slane %v268, 1
      %v1143 = vsel %vm1126, %v1140, %v1142
      %v1144 = vrot.slane %v269, 1
      %v1145 = vsel %vm1126, %v1142, %v1144
      %v1146 = vrot.slane %v270, 1
      %v1147 = vsel %vm1126, %v1144, %v1146
      %v1148 = vrot.slane %v271, 1
      %v1149 = vsel %vm1126, %v1146, %v1148
      %v1150 = vrot.slane %v272, 1
      %v1151 = vsel %vm1126, %v1148, %v1150
      %v1152 = vrot.slane %v273, 1
      %v1153 = vsel %vm1126, %v1150, %v1152
      %v1154 = vrot.slane %v274, 1
      %v1155 = vsel %vm1126, %v1152, %v1154
      %v1156 = vrot.slane %v275, 1
      %v1157 = vsel %vm1126, %v1154, %v1156
      %v1158 = vrot.slane %v276, 1
      %v1159 = vsel %vm1126, %v1156, %v1158
      %v1160 = vrot.slane %v277, 1
      %v1161 = vsel %vm1126, %v1158, %v1160
      %v1162 = vrot.slane %v278, 1
      %v1163 = vsel %vm1126, %v1160, %v1162
      %v1164 = vrot.slane %v279, 1
      %v1165 = vsel %vm1126, %v1162, %v1164
      %v1166 = vrot.slane %v280, 1
      %v1167 = vsel %vm1126, %v1164, %v1166
      %v1168 = vrot.slane %v281, 1
      %v1169 = vsel %vm1126, %v1166, %v1168
      %v1170 = vrot.slane %v282, 1
      %v1171 = vsel %vm1126, %v1168, %v1170
      %v1172 = vrot.slane %v283, 1
      %v1173 = vsel %vm1126, %v1170, %v1172
      %v1174 = vrot.slane %v284, 1
      %v1175 = vsel %vm1126, %v1172, %v1174
      %v1176 = vrot.slane %v285, 1
      %v1177 = vsel %vm1126, %v1174, %v1176
      %v1178 = vrot.slane %v286, 1
      %v1179 = vsel %vm1126, %v1176, %v1178
      %v1180 = vrot.slane %v287, 1
      %v1181 = vsel %vm1126, %v1178, %v1180
      %v1182 = vrot.slane %v288, 1
      %v1183 = vsel %vm1126, %v1180, %v1182
      %v1184 = vrot.slane %v289, 1
      %v1185 = vsel %vm1126, %v1182, %v1184
      %v1186 = vrot.slane %v290, 1
      %v1187 = vsel %vm1126, %v1184, %v1186
      %v1188 = vrot.slane %v291, 1
      %v1189 = vsel %vm1126, %v1186, %v1188
      %v1222 = vsel %vm901, %v1188, 0.0
      %v1223 = vsel %vm1094, 1, 0
      %v1224 = vsel %vm1095, 1, 0
      %v1225 = vsel %vm1096, 1, 0
      %v1226 = vsel %vm1097, 1, 0
      %v1227 = vsel %vm1098, 1, 0
      %v1228 = vsel %vm1099, 1, 0
      %v1229 = vsel %vm1100, 1, 0
      %v1230 = vsel %vm1101, 1, 0
      %v1231 = vsel %vm1102, 1, 0
      %v1232 = vsel %vm1103, 1, 0
      %v1233 = vsel %vm1104, 1, 0
      %v1234 = vsel %vm1105, 1, 0
      %v1235 = vsel %vm1106, 1, 0
      %v1236 = vsel %vm1107, 1, 0
      %v1237 = vsel %vm1108, 1, 0
      %v1238 = vsel %vm1109, 1, 0
      %v1239 = vsel %vm1110, 1, 0
      %v1240 = vsel %vm1111, 1, 0
      %v1241 = vsel %vm1112, 1, 0
      %v1242 = vsel %vm1113, 1, 0
      %v1243 = vsel %vm1114, 1, 0
      %v1244 = vsel %vm1115, 1, 0
      %v1245 = vsel %vm1116, 1, 0
      %v1246 = vsel %vm1117, 1, 0
      %v1247 = vsel %vm1118, 1, 0
      %v1248 = vsel %vm1119, 1, 0
      %v1249 = vsel %vm1120, 1, 0
      %v1250 = vsel %vm1121, 1, 0
      %v1251 = vsel %vm1122, 1, 0
      %v1252 = vsel %vm1123, 1, 0
      %v1253 = vsel %vm1124, 1, 0
      %v1254 = vsel %vm1125, 1, 0
      %vm1255 = vcmp.eq.s32.totalorder %v1223, 1
      %vm1256 = vcmp.eq.s32.totalorder %v1224, 1
      %vm1257 = vcmp.eq.s32.totalorder %v1225, 1
      %vm1258 = vcmp.eq.s32.totalorder %v1226, 1
      %vm1259 = vcmp.eq.s32.totalorder %v1227, 1
      %vm1260 = vcmp.eq.s32.totalorder %v1228, 1
      %vm1261 = vcmp.eq.s32.totalorder %v1229, 1
      %vm1262 = vcmp.eq.s32.totalorder %v1230, 1
      %vm1263 = vcmp.eq.s32.totalorder %v1231, 1
      %vm1264 = vcmp.eq.s32.totalorder %v1232, 1
      %vm1265 = vcmp.eq.s32.totalorder %v1233, 1
      %vm1266 = vcmp.eq.s32.totalorder %v1234, 1
      %vm1267 = vcmp.eq.s32.totalorder %v1235, 1
      %vm1268 = vcmp.eq.s32.totalorder %v1236, 1
      %vm1269 = vcmp.eq.s32.totalorder %v1237, 1
      %vm1270 = vcmp.eq.s32.totalorder %v1238, 1
      %vm1271 = vcmp.eq.s32.totalorder %v1239, 1
      %vm1272 = vcmp.eq.s32.totalorder %v1240, 1
      %vm1273 = vcmp.eq.s32.totalorder %v1241, 1
      %vm1274 = vcmp.eq.s32.totalorder %v1242, 1
      %vm1275 = vcmp.eq.s32.totalorder %v1243, 1
      %vm1276 = vcmp.eq.s32.totalorder %v1244, 1
      %vm1277 = vcmp.eq.s32.totalorder %v1245, 1
      %vm1278 = vcmp.eq.s32.totalorder %v1246, 1
      %vm1279 = vcmp.eq.s32.totalorder %v1247, 1
      %vm1280 = vcmp.eq.s32.totalorder %v1248, 1
      %vm1281 = vcmp.eq.s32.totalorder %v1249, 1
      %vm1282 = vcmp.eq.s32.totalorder %v1250, 1
      %vm1283 = vcmp.eq.s32.totalorder %v1251, 1
      %vm1284 = vcmp.eq.s32.totalorder %v1252, 1
      %vm1285 = vcmp.eq.s32.totalorder %v1253, 1
      %vm1286 = vcmp.eq.s32.totalorder %v1254, 1
      %v1287 = vsel %vm1255, 0.0, %v1129
      %v1288 = vsel %vm1256, 0.0, %v1131
      %v1289 = vsel %vm1257, 0.0, %v1133
      %v1290 = vsel %vm1258, 0.0, %v1135
      %v1291 = vsel %vm1259, 0.0, %v1137
      %v1292 = vsel %vm1260, 0.0, %v1139
      %v1293 = vsel %vm1261, 0.0, %v1141
      %v1294 = vsel %vm1262, 0.0, %v1143
      %v1295 = vsel %vm1263, 0.0, %v1145
      %v1296 = vsel %vm1264, 0.0, %v1147
      %v1297 = vsel %vm1265, 0.0, %v1149
      %v1298 = vsel %vm1266, 0.0, %v1151
      %v1299 = vsel %vm1267, 0.0, %v1153
      %v1300 = vsel %vm1268, 0.0, %v1155
      %v1301 = vsel %vm1269, 0.0, %v1157
      %v1302 = vsel %vm1270, 0.0, %v1159
      %v1303 = vsel %vm1271, 0.0, %v1161
      %v1304 = vsel %vm1272, 0.0, %v1163
      %v1305 = vsel %vm1273, 0.0, %v1165
      %v1306 = vsel %vm1274, 0.0, %v1167
      %v1307 = vsel %vm1275, 0.0, %v1169
      %v1308 = vsel %vm1276, 0.0, %v1171
      %v1309 = vsel %vm1277, 0.0, %v1173
      %v1310 = vsel %vm1278, 0.0, %v1175
      %v1311 = vsel %vm1279, 0.0, %v1177
      %v1312 = vsel %vm1280, 0.0, %v1179
      %v1313 = vsel %vm1281, 0.0, %v1181
      %v1314 = vsel %vm1282, 0.0, %v1183
      %v1315 = vsel %vm1283, 0.0, %v1185
      %v1316 = vsel %vm1284, 0.0, %v1187
      %v1317 = vsel %vm1285, 0.0, %v1189
      %v1318 = vsel %vm1286, 0.0, %v1222
      %v1319 = vld [vmem:[%s1] sm:$0xff]
      %v1320 = vld [vmem:[%s1 + $0x8] sm:$0xff]
      %v1321 = vld [vmem:[%s1 + $0x10] sm:$0xff]
      %v1322 = vld [vmem:[%s1 + $0x18] sm:$0xff]
      %v1323 = vld [vmem:[%s1 + $0x20] sm:$0xff]
      %v1324 = vld [vmem:[%s1 + $0x28] sm:$0xff]
      %v1325 = vld [vmem:[%s1 + $0x30] sm:$0xff]
      %v1326 = vld [vmem:[%s1 + $0x38] sm:$0xff]
      %s1327 = scalar_lea.vmem %s1, 64
      %v1328 = vld [vmem:[%s1327] sm:$0xff]
      %v1329 = vld [vmem:[%s1327 + $0x8] sm:$0xff]
      %v1330 = vld [vmem:[%s1327 + $0x10] sm:$0xff]
      %v1331 = vld [vmem:[%s1327 + $0x18] sm:$0xff]
      %v1332 = vld [vmem:[%s1327 + $0x20] sm:$0xff]
      %v1333 = vld [vmem:[%s1327 + $0x28] sm:$0xff]
      %v1334 = vld [vmem:[%s1327 + $0x30] sm:$0xff]
      %v1335 = vld [vmem:[%s1327 + $0x38] sm:$0xff]
      %vm1336 = vcmask 523264
      %v1337 = vsel %vm1336, %v260, 0
      %v1339 = vsel %vm1336, %v261, 0
      %v1341 = vsel %vm1336, %v262, 0
      %v1343 = vsel %vm1336, %v263, 0
      %v1345 = vsel %vm1336, %v264, 0
      %v1347 = vsel %vm1336, %v265, 0
      %v1349 = vsel %vm1336, %v266, 0
      %v1351 = vsel %vm1336, %v267, 0
      %v1353 = vsel %vm1336, %v268, 0
      %v1355 = vsel %vm1336, %v269, 0
      %v1357 = vsel %vm1336, %v270, 0
      %v1359 = vsel %vm1336, %v271, 0
      %v1361 = vsel %vm1336, %v272, 0
      %v1363 = vsel %vm1336, %v273, 0
      %v1365 = vsel %vm1336, %v274, 0
      %v1367 = vsel %vm1336, %v275, 0
      %v1369 = vsel %vm1336, %v276, 0
      %v1371 = vsel %vm1336, %v277, 0
      %v1373 = vsel %vm1336, %v278, 0
      %v1375 = vsel %vm1336, %v279, 0
      %v1377 = vsel %vm1336, %v280, 0
      %v1379 = vsel %vm1336, %v281, 0
      %v1381 = vsel %vm1336, %v282, 0
      %v1383 = vsel %vm1336, %v283, 0
      %v1385 = vsel %vm1336, %v284, 0
      %1387 = vmatprep.subr.mxu0 0.0
      %1388 = vmatpush1.msra.mxu0 0.0
      %1389 = vmatprep.subr.mxu0 0.0
      %1390 = vmatpush1.msra.mxu0 0.0
      %1391 = vmatprep.subr.mxu0 0.0
      %1392 = vmatpush1.msra.mxu0 0.0
      %1393 = vmatprep.subr.mxu0 0.0
      %1394 = vmatpush1.msra.mxu0 0.0
      %1395 = vmatprep.subr.mxu0 0.0
      %1396 = vmatpush1.msra.mxu0 0.0
      %1397 = vmatprep.subr.mxu0 0.0
      %1398 = vmatpush1.msra.mxu0 0.0
      %1399 = vmatprep.subr.mxu0 0.0
      %1400 = vmatpush1.msra.mxu0 0.0
      %1401 = vmatprep.subr.mxu0 0.0
      %1402 = vmatpush1.msra.mxu0 0.0
      %1403 = vmatprep.subr.mxu0 0.0
      %1404 = vmatpush1.msra.mxu0 %v1335
      %1405 = vmatprep.subr.mxu0 0.0
      %1406 = vmatpush1.msra.mxu0 %v1334
      %1407 = vmatprep.subr.mxu0 0.0
      %1408 = vmatpush1.msra.mxu0 %v1333
      %1409 = vmatprep.subr.mxu0 0.0
      %1410 = vmatpush1.msra.mxu0 %v1332
      %1411 = vmatprep.subr.mxu0 0.0
      %1412 = vmatpush1.msra.mxu0 %v1331
      %1413 = vmatprep.subr.mxu0 0.0
      %1414 = vmatpush1.msra.mxu0 %v1330
      %1415 = vmatprep.subr.mxu0 0.0
      %1416 = vmatpush1.msra.mxu0 %v1329
      %1417 = vmatprep.subr.mxu0 0.0
      %1418 = vmatpush1.msra.mxu0 %v1328
      %1419 = vmatprep.subr.mxu0 0.0
      %1420 = vmatpush2.msra.mxu0 0.0
      %1421 = vmatprep.subr.mxu0 0.0
      %1422 = vmatpush2.msra.mxu0 0.0
      %1423 = vmatprep.subr.mxu0 0.0
      %1424 = vmatpush2.msra.mxu0 0.0
      %1425 = vmatprep.subr.mxu0 0.0
      %1426 = vmatpush2.msra.mxu0 0.0
      %1427 = vmatprep.subr.mxu0 0.0
      %1428 = vmatpush2.msra.mxu0 0.0
      %1429 = vmatprep.subr.mxu0 0.0
      %1430 = vmatpush2.msra.mxu0 0.0
      %1431 = vmatprep.subr.mxu0 0.0
      %1432 = vmatpush2.msra.mxu0 0.0
      %1433 = vmatprep.subr.mxu0 0.0
      %1434 = vmatpush2.msra.mxu0 0.0
      %1435 = vmatprep.subr.mxu0 0.0
      %1436 = vmatpush2.msra.mxu0 0.0
      %1437 = vmatprep.subr.mxu0 0.0
      %1438 = vmatpush2.msra.mxu0 0.0
      %1439 = vmatprep.subr.mxu0 0.0
      %1440 = vmatpush2.msra.mxu0 0.0
      %1441 = vmatprep.subr.mxu0 0.0
      %1442 = vmatpush2.msra.mxu0 0.0
      %1443 = vmatprep.subr.mxu0 0.0
      %1444 = vmatpush2.msra.mxu0 0.0
      %1445 = vmatprep.subr.mxu0 0.0
      %1446 = vmatpush2.msra.mxu0 0.0
      %1447 = vmatprep.subr.mxu0 0.0
      %1448 = vmatpush2.msra.mxu0 0.0
      %1449 = vmatprep.subr.mxu0 0.0
      %1450 = vmatpush2.msra.mxu0 0.0
      %1451 = vmatprep.mubr.f32.mxu0 0.0
      %1452 = vmatmul.mubr.f32.gmra.mxu0 %v1337
      %v1453 = vpop.f32.mrf.mxu0
      %v1454 = vadd.f32 0.0, %v1453
      %v1455 = vpop.f32.mrf.mxu0
      %1456 = vmatprep.mubr.f32.mxu0 0.0
      %1457 = vmatmul.mubr.f32.gmra.mxu0 %v1339
      %v1458 = vpop.f32.mrf.mxu0
      %v1459 = vadd.f32 0.0, %v1458
      %v1460 = vpop.f32.mrf.mxu0
      %1461 = vmatprep.mubr.f32.mxu0 0.0
      %1462 = vmatmul.mubr.f32.gmra.mxu0 %v1341
      %v1463 = vpop.f32.mrf.mxu0
      %v1464 = vadd.f32 0.0, %v1463
      %v1465 = vpop.f32.mrf.mxu0
      %1466 = vmatprep.mubr.f32.mxu0 0.0
      %1467 = vmatmul.mubr.f32.gmra.mxu0 %v1343
      %v1468 = vpop.f32.mrf.mxu0
      %v1469 = vadd.f32 0.0, %v1468
      %v1470 = vpop.f32.mrf.mxu0
      %1471 = vmatprep.mubr.f32.mxu0 0.0
      %1472 = vmatmul.mubr.f32.gmra.mxu0 %v1345
      %v1473 = vpop.f32.mrf.mxu0
      %v1474 = vadd.f32 0.0, %v1473
      %v1475 = vpop.f32.mrf.mxu0
      %1476 = vmatprep.mubr.f32.mxu0 0.0
      %1477 = vmatmul.mubr.f32.gmra.mxu0 %v1347
      %v1478 = vpop.f32.mrf.mxu0
      %v1479 = vadd.f32 0.0, %v1478
      %v1480 = vpop.f32.mrf.mxu0
      %1481 = vmatprep.mubr.f32.mxu0 0.0
      %1482 = vmatmul.mubr.f32.gmra.mxu0 %v1349
      %v1483 = vpop.f32.mrf.mxu0
      %v1484 = vadd.f32 0.0, %v1483
      %v1485 = vpop.f32.mrf.mxu0
      %1486 = vmatprep.mubr.f32.mxu0 0.0
      %1487 = vmatmul.mubr.f32.gmra.mxu0 %v1351
      %v1488 = vpop.f32.mrf.mxu0
      %v1489 = vadd.f32 0.0, %v1488
      %v1490 = vpop.f32.mrf.mxu0
      %1491 = vmatprep.mubr.f32.mxu0 0.0
      %1492 = vmatmul.mubr.f32.gmra.mxu0 %v1353
      %v1493 = vpop.f32.mrf.mxu0
      %v1494 = vadd.f32 0.0, %v1493
      %v1495 = vpop.f32.mrf.mxu0
      %1496 = vmatprep.mubr.f32.mxu0 0.0
      %1497 = vmatmul.mubr.f32.gmra.mxu0 %v1355
      %v1498 = vpop.f32.mrf.mxu0
      %v1499 = vadd.f32 0.0, %v1498
      %v1500 = vpop.f32.mrf.mxu0
      %1501 = vmatprep.mubr.f32.mxu0 0.0
      %1502 = vmatmul.mubr.f32.gmra.mxu0 %v1357
      %v1503 = vpop.f32.mrf.mxu0
      %v1504 = vadd.f32 0.0, %v1503
      %v1505 = vpop.f32.mrf.mxu0
      %1506 = vmatprep.mubr.f32.mxu0 0.0
      %1507 = vmatmul.mubr.f32.gmra.mxu0 %v1359
      %v1508 = vpop.f32.mrf.mxu0
      %v1509 = vadd.f32 0.0, %v1508
      %v1510 = vpop.f32.mrf.mxu0
      %1511 = vmatprep.mubr.f32.mxu0 0.0
      %1512 = vmatmul.mubr.f32.gmra.mxu0 %v1361
      %v1513 = vpop.f32.mrf.mxu0
      %v1514 = vadd.f32 0.0, %v1513
      %v1515 = vpop.f32.mrf.mxu0
      %1516 = vmatprep.mubr.f32.mxu0 0.0
      %1517 = vmatmul.mubr.f32.gmra.mxu0 %v1363
      %v1518 = vpop.f32.mrf.mxu0
      %v1519 = vadd.f32 0.0, %v1518
      %v1520 = vpop.f32.mrf.mxu0
      %1521 = vmatprep.mubr.f32.mxu0 0.0
      %1522 = vmatmul.mubr.f32.gmra.mxu0 %v1365
      %v1523 = vpop.f32.mrf.mxu0
      %v1524 = vadd.f32 0.0, %v1523
      %v1525 = vpop.f32.mrf.mxu0
      %1526 = vmatprep.mubr.f32.mxu0 0.0
      %1527 = vmatmul.mubr.f32.gmra.mxu0 %v1367
      %v1528 = vpop.f32.mrf.mxu0
      %v1529 = vadd.f32 0.0, %v1528
      %v1530 = vpop.f32.mrf.mxu0
      %1531 = vmatprep.mubr.f32.mxu0 0.0
      %1532 = vmatmul.mubr.f32.gmra.mxu0 %v1369
      %v1533 = vpop.f32.mrf.mxu0
      %v1534 = vadd.f32 0.0, %v1533
      %v1535 = vpop.f32.mrf.mxu0
      %1536 = vmatprep.mubr.f32.mxu0 0.0
      %1537 = vmatmul.mubr.f32.gmra.mxu0 %v1371
      %v1538 = vpop.f32.mrf.mxu0
      %v1539 = vadd.f32 0.0, %v1538
      %v1540 = vpop.f32.mrf.mxu0
      %1541 = vmatprep.mubr.f32.mxu0 0.0
      %1542 = vmatmul.mubr.f32.gmra.mxu0 %v1373
      %v1543 = vpop.f32.mrf.mxu0
      %v1544 = vadd.f32 0.0, %v1543
      %v1545 = vpop.f32.mrf.mxu0
      %1546 = vmatprep.mubr.f32.mxu0 0.0
      %1547 = vmatmul.mubr.f32.gmra.mxu0 %v1375
      %v1548 = vpop.f32.mrf.mxu0
      %v1549 = vadd.f32 0.0, %v1548
      %v1550 = vpop.f32.mrf.mxu0
      %1551 = vmatprep.mubr.f32.mxu0 0.0
      %1552 = vmatmul.mubr.f32.gmra.mxu0 %v1377
      %v1553 = vpop.f32.mrf.mxu0
      %v1554 = vadd.f32 0.0, %v1553
      %v1555 = vpop.f32.mrf.mxu0
      %1556 = vmatprep.mubr.f32.mxu0 0.0
      %1557 = vmatmul.mubr.f32.gmra.mxu0 %v1379
      %v1558 = vpop.f32.mrf.mxu0
      %v1559 = vadd.f32 0.0, %v1558
      %v1560 = vpop.f32.mrf.mxu0
      %1561 = vmatprep.mubr.f32.mxu0 0.0
      %1562 = vmatmul.mubr.f32.gmra.mxu0 %v1381
      %v1563 = vpop.f32.mrf.mxu0
      %v1564 = vadd.f32 0.0, %v1563
      %v1565 = vpop.f32.mrf.mxu0
      %1566 = vmatprep.mubr.f32.mxu0 0.0
      %1567 = vmatmul.mubr.f32.gmra.mxu0 %v1383
      %v1568 = vpop.f32.mrf.mxu0
      %v1569 = vadd.f32 0.0, %v1568
      %v1570 = vpop.f32.mrf.mxu0
      %1571 = vmatprep.mubr.f32.mxu0 0.0
      %1572 = vmatmul.mubr.f32.gmra.mxu0 %v1385
      %v1573 = vpop.f32.mrf.mxu0
      %v1574 = vadd.f32 0.0, %v1573
      %v1575 = vpop.f32.mrf.mxu0
      %1576 = vdwg.mxu0
      %v1578 = vsel %vm1336, %v1062, 0
      %v1581 = vsel %vm1336, %v1063, 0
      %v1584 = vsel %vm1336, %v1064, 0
      %v1587 = vsel %vm1336, %v1065, 0
      %v1590 = vsel %vm1336, %v1066, 0
      %v1593 = vsel %vm1336, %v1067, 0
      %v1596 = vsel %vm1336, %v1068, 0
      %v1599 = vsel %vm1336, %v1069, 0
      %v1602 = vsel %vm1336, %v1070, 0
      %v1605 = vsel %vm1336, %v1071, 0
      %v1608 = vsel %vm1336, %v1072, 0
      %v1611 = vsel %vm1336, %v1073, 0
      %v1614 = vsel %vm1336, %v1074, 0
      %v1617 = vsel %vm1336, %v1075, 0
      %v1620 = vsel %vm1336, %v1076, 0
      %v1623 = vsel %vm1336, %v1077, 0
      %v1626 = vsel %vm1336, %v1078, 0
      %v1629 = vsel %vm1336, %v1079, 0
      %v1632 = vsel %vm1336, %v1080, 0
      %v1635 = vsel %vm1336, %v1081, 0
      %v1638 = vsel %vm1336, %v1082, 0
      %v1641 = vsel %vm1336, %v1083, 0
      %v1644 = vsel %vm1336, %v1084, 0
      %v1647 = vsel %vm1336, %v1085, 0
      %v1650 = vsel %vm1336, %v1086, 0
      %1652 = vmatprep.subr.mxu0 0.0
      %1653 = vmatpush1.msra.mxu0 0.0
      %1654 = vmatprep.subr.mxu0 0.0
      %1655 = vmatpush1.msra.mxu0 0.0
      %1656 = vmatprep.subr.mxu0 0.0
      %1657 = vmatpush1.msra.mxu0 0.0
      %1658 = vmatprep.subr.mxu0 0.0
      %1659 = vmatpush1.msra.mxu0 0.0
      %1660 = vmatprep.subr.mxu0 0.0
      %1661 = vmatpush1.msra.mxu0 0.0
      %1662 = vmatprep.subr.mxu0 0.0
      %1663 = vmatpush1.msra.mxu0 0.0
      %1664 = vmatprep.subr.mxu0 0.0
      %1665 = vmatpush1.msra.mxu0 0.0
      %1666 = vmatprep.subr.mxu0 0.0
      %1667 = vmatpush1.msra.mxu0 0.0
      %1668 = vmatprep.subr.mxu0 0.0
      %1669 = vmatpush1.msra.mxu0 %v1326
      %1670 = vmatprep.subr.mxu0 0.0
      %1671 = vmatpush1.msra.mxu0 %v1325
      %1672 = vmatprep.subr.mxu0 0.0
      %1673 = vmatpush1.msra.mxu0 %v1324
      %1674 = vmatprep.subr.mxu0 0.0
      %1675 = vmatpush1.msra.mxu0 %v1323
      %1676 = vmatprep.subr.mxu0 0.0
      %1677 = vmatpush1.msra.mxu0 %v1322
      %1678 = vmatprep.subr.mxu0 0.0
      %1679 = vmatpush1.msra.mxu0 %v1321
      %1680 = vmatprep.subr.mxu0 0.0
      %1681 = vmatpush1.msra.mxu0 %v1320
      %1682 = vmatprep.subr.mxu0 0.0
      %1683 = vmatpush1.msra.mxu0 %v1319
      %1684 = vmatprep.subr.mxu0 0.0
      %1685 = vmatpush2.msra.mxu0 0.0
      %1686 = vmatprep.subr.mxu0 0.0
      %1687 = vmatpush2.msra.mxu0 0.0
      %1688 = vmatprep.subr.mxu0 0.0
      %1689 = vmatpush2.msra.mxu0 0.0
      %1690 = vmatprep.subr.mxu0 0.0
      %1691 = vmatpush2.msra.mxu0 0.0
      %1692 = vmatprep.subr.mxu0 0.0
      %1693 = vmatpush2.msra.mxu0 0.0
      %1694 = vmatprep.subr.mxu0 0.0
      %1695 = vmatpush2.msra.mxu0 0.0
      %1696 = vmatprep.subr.mxu0 0.0
      %1697 = vmatpush2.msra.mxu0 0.0
      %1698 = vmatprep.subr.mxu0 0.0
      %1699 = vmatpush2.msra.mxu0 0.0
      %1700 = vmatprep.subr.mxu0 0.0
      %1701 = vmatpush2.msra.mxu0 0.0
      %1702 = vmatprep.subr.mxu0 0.0
      %1703 = vmatpush2.msra.mxu0 0.0
      %1704 = vmatprep.subr.mxu0 0.0
      %1705 = vmatpush2.msra.mxu0 0.0
      %1706 = vmatprep.subr.mxu0 0.0
      %1707 = vmatpush2.msra.mxu0 0.0
      %1708 = vmatprep.subr.mxu0 0.0
      %1709 = vmatpush2.msra.mxu0 0.0
      %1710 = vmatprep.subr.mxu0 0.0
      %1711 = vmatpush2.msra.mxu0 0.0
      %1712 = vmatprep.subr.mxu0 0.0
      %1713 = vmatpush2.msra.mxu0 0.0
      %1714 = vmatprep.subr.mxu0 0.0
      %1715 = vmatpush2.msra.mxu0 0.0
      %1716 = vmatprep.mubr.f32.mxu0 0.0
      %1717 = vmatmul.mubr.f32.gmra.mxu0 %v1578
      %v1718 = vpop.f32.mrf.mxu0
      %v1719 = vadd.f32 %v1454, %v1718
      %v1720 = vpop.f32.mrf.mxu0
      %1721 = vmatprep.mubr.f32.mxu0 0.0
      %1722 = vmatmul.mubr.f32.gmra.mxu0 %v1581
      %v1723 = vpop.f32.mrf.mxu0
      %v1724 = vadd.f32 %v1459, %v1723
      %v1725 = vpop.f32.mrf.mxu0
      %1726 = vmatprep.mubr.f32.mxu0 0.0
      %1727 = vmatmul.mubr.f32.gmra.mxu0 %v1584
      %v1728 = vpop.f32.mrf.mxu0
      %v1729 = vadd.f32 %v1464, %v1728
      %v1730 = vpop.f32.mrf.mxu0
      %1731 = vmatprep.mubr.f32.mxu0 0.0
      %1732 = vmatmul.mubr.f32.gmra.mxu0 %v1587
      %v1733 = vpop.f32.mrf.mxu0
      %v1734 = vadd.f32 %v1469, %v1733
      %v1735 = vpop.f32.mrf.mxu0
      %1736 = vmatprep.mubr.f32.mxu0 0.0
      %1737 = vmatmul.mubr.f32.gmra.mxu0 %v1590
      %v1738 = vpop.f32.mrf.mxu0
      %v1739 = vadd.f32 %v1474, %v1738
      %v1740 = vpop.f32.mrf.mxu0
      %1741 = vmatprep.mubr.f32.mxu0 0.0
      %1742 = vmatmul.mubr.f32.gmra.mxu0 %v1593
      %v1743 = vpop.f32.mrf.mxu0
      %v1744 = vadd.f32 %v1479, %v1743
      %v1745 = vpop.f32.mrf.mxu0
      %1746 = vmatprep.mubr.f32.mxu0 0.0
      %1747 = vmatmul.mubr.f32.gmra.mxu0 %v1596
      %v1748 = vpop.f32.mrf.mxu0
      %v1749 = vadd.f32 %v1484, %v1748
      %v1750 = vpop.f32.mrf.mxu0
      %1751 = vmatprep.mubr.f32.mxu0 0.0
      %1752 = vmatmul.mubr.f32.gmra.mxu0 %v1599
      %v1753 = vpop.f32.mrf.mxu0
      %v1754 = vadd.f32 %v1489, %v1753
      %v1755 = vpop.f32.mrf.mxu0
      %1756 = vmatprep.mubr.f32.mxu0 0.0
      %1757 = vmatmul.mubr.f32.gmra.mxu0 %v1602
      %v1758 = vpop.f32.mrf.mxu0
      %v1759 = vadd.f32 %v1494, %v1758
      %v1760 = vpop.f32.mrf.mxu0
      %1761 = vmatprep.mubr.f32.mxu0 0.0
      %1762 = vmatmul.mubr.f32.gmra.mxu0 %v1605
      %v1763 = vpop.f32.mrf.mxu0
      %v1764 = vadd.f32 %v1499, %v1763
      %v1765 = vpop.f32.mrf.mxu0
      %1766 = vmatprep.mubr.f32.mxu0 0.0
      %1767 = vmatmul.mubr.f32.gmra.mxu0 %v1608
      %v1768 = vpop.f32.mrf.mxu0
      %v1769 = vadd.f32 %v1504, %v1768
      %v1770 = vpop.f32.mrf.mxu0
      %1771 = vmatprep.mubr.f32.mxu0 0.0
      %1772 = vmatmul.mubr.f32.gmra.mxu0 %v1611
      %v1773 = vpop.f32.mrf.mxu0
      %v1774 = vadd.f32 %v1509, %v1773
      %v1775 = vpop.f32.mrf.mxu0
      %1776 = vmatprep.mubr.f32.mxu0 0.0
      %1777 = vmatmul.mubr.f32.gmra.mxu0 %v1614
      %v1778 = vpop.f32.mrf.mxu0
      %v1779 = vadd.f32 %v1514, %v1778
      %v1780 = vpop.f32.mrf.mxu0
      %1781 = vmatprep.mubr.f32.mxu0 0.0
      %1782 = vmatmul.mubr.f32.gmra.mxu0 %v1617
      %v1783 = vpop.f32.mrf.mxu0
      %v1784 = vadd.f32 %v1519, %v1783
      %v1785 = vpop.f32.mrf.mxu0
      %1786 = vmatprep.mubr.f32.mxu0 0.0
      %1787 = vmatmul.mubr.f32.gmra.mxu0 %v1620
      %v1788 = vpop.f32.mrf.mxu0
      %v1789 = vadd.f32 %v1524, %v1788
      %v1790 = vpop.f32.mrf.mxu0
      %1791 = vmatprep.mubr.f32.mxu0 0.0
      %1792 = vmatmul.mubr.f32.gmra.mxu0 %v1623
      %v1793 = vpop.f32.mrf.mxu0
      %v1794 = vadd.f32 %v1529, %v1793
      %v1795 = vpop.f32.mrf.mxu0
      %1796 = vmatprep.mubr.f32.mxu0 0.0
      %1797 = vmatmul.mubr.f32.gmra.mxu0 %v1626
      %v1798 = vpop.f32.mrf.mxu0
      %v1799 = vadd.f32 %v1534, %v1798
      %v1800 = vpop.f32.mrf.mxu0
      %1801 = vmatprep.mubr.f32.mxu0 0.0
      %1802 = vmatmul.mubr.f32.gmra.mxu0 %v1629
      %v1803 = vpop.f32.mrf.mxu0
      %v1804 = vadd.f32 %v1539, %v1803
      %v1805 = vpop.f32.mrf.mxu0
      %1806 = vmatprep.mubr.f32.mxu0 0.0
      %1807 = vmatmul.mubr.f32.gmra.mxu0 %v1632
      %v1808 = vpop.f32.mrf.mxu0
      %v1809 = vadd.f32 %v1544, %v1808
      %v1810 = vpop.f32.mrf.mxu0
      %1811 = vmatprep.mubr.f32.mxu0 0.0
      %1812 = vmatmul.mubr.f32.gmra.mxu0 %v1635
      %v1813 = vpop.f32.mrf.mxu0
      %v1814 = vadd.f32 %v1549, %v1813
      %v1815 = vpop.f32.mrf.mxu0
      %1816 = vmatprep.mubr.f32.mxu0 0.0
      %1817 = vmatmul.mubr.f32.gmra.mxu0 %v1638
      %v1818 = vpop.f32.mrf.mxu0
      %v1819 = vadd.f32 %v1554, %v1818
      %v1820 = vpop.f32.mrf.mxu0
      %1821 = vmatprep.mubr.f32.mxu0 0.0
      %1822 = vmatmul.mubr.f32.gmra.mxu0 %v1641
      %v1823 = vpop.f32.mrf.mxu0
      %v1824 = vadd.f32 %v1559, %v1823
      %v1825 = vpop.f32.mrf.mxu0
      %1826 = vmatprep.mubr.f32.mxu0 0.0
      %1827 = vmatmul.mubr.f32.gmra.mxu0 %v1644
      %v1828 = vpop.f32.mrf.mxu0
      %v1829 = vadd.f32 %v1564, %v1828
      %v1830 = vpop.f32.mrf.mxu0
      %1831 = vmatprep.mubr.f32.mxu0 0.0
      %1832 = vmatmul.mubr.f32.gmra.mxu0 %v1647
      %v1833 = vpop.f32.mrf.mxu0
      %v1834 = vadd.f32 %v1569, %v1833
      %v1835 = vpop.f32.mrf.mxu0
      %1836 = vmatprep.mubr.f32.mxu0 0.0
      %1837 = vmatmul.mubr.f32.gmra.mxu0 %v1650
      %v1838 = vpop.f32.mrf.mxu0
      %v1839 = vadd.f32 %v1574, %v1838
      %v1840 = vpop.f32.mrf.mxu0
      %1841 = vdwg.mxu0
      %s1842 = scalar_lea.vmem %s1, 128
      %v1843 = vld [vmem:[%s1842] sm:$0xff]
      %v1844 = vld [vmem:[%s1842 + $0x8] sm:$0xff]
      %v1845 = vld [vmem:[%s1842 + $0x10] sm:$0xff]
      %v1846 = vld [vmem:[%s1842 + $0x18] sm:$0xff]
      %v1847 = vld [vmem:[%s1842 + $0x20] sm:$0xff]
      %v1848 = vld [vmem:[%s1842 + $0x28] sm:$0xff]
      %v1849 = vld [vmem:[%s1842 + $0x30] sm:$0xff]
      %v1850 = vld [vmem:[%s1842 + $0x38] sm:$0xff]
      %v1852 = vsel %vm1336, %v1287, 0
      %v1855 = vsel %vm1336, %v1288, 0
      %v1858 = vsel %vm1336, %v1289, 0
      %v1861 = vsel %vm1336, %v1290, 0
      %v1864 = vsel %vm1336, %v1291, 0
      %v1867 = vsel %vm1336, %v1292, 0
      %v1870 = vsel %vm1336, %v1293, 0
      %v1873 = vsel %vm1336, %v1294, 0
      %v1876 = vsel %vm1336, %v1295, 0
      %v1879 = vsel %vm1336, %v1296, 0
      %v1882 = vsel %vm1336, %v1297, 0
      %v1885 = vsel %vm1336, %v1298, 0
      %v1888 = vsel %vm1336, %v1299, 0
      %v1891 = vsel %vm1336, %v1300, 0
      %v1894 = vsel %vm1336, %v1301, 0
      %v1897 = vsel %vm1336, %v1302, 0
      %v1900 = vsel %vm1336, %v1303, 0
      %v1903 = vsel %vm1336, %v1304, 0
      %v1906 = vsel %vm1336, %v1305, 0
      %v1909 = vsel %vm1336, %v1306, 0
      %v1912 = vsel %vm1336, %v1307, 0
      %v1915 = vsel %vm1336, %v1308, 0
      %v1918 = vsel %vm1336, %v1309, 0
      %v1921 = vsel %vm1336, %v1310, 0
      %v1924 = vsel %vm1336, %v1311, 0
      %1926 = vmatprep.subr.mxu0 0.0
      %1927 = vmatpush1.msra.mxu0 0.0
      %1928 = vmatprep.subr.mxu0 0.0
      %1929 = vmatpush1.msra.mxu0 0.0
      %1930 = vmatprep.subr.mxu0 0.0
      %1931 = vmatpush1.msra.mxu0 0.0
      %1932 = vmatprep.subr.mxu0 0.0
      %1933 = vmatpush1.msra.mxu0 0.0
      %1934 = vmatprep.subr.mxu0 0.0
      %1935 = vmatpush1.msra.mxu0 0.0
      %1936 = vmatprep.subr.mxu0 0.0
      %1937 = vmatpush1.msra.mxu0 0.0
      %1938 = vmatprep.subr.mxu0 0.0
      %1939 = vmatpush1.msra.mxu0 0.0
      %1940 = vmatprep.subr.mxu0 0.0
      %1941 = vmatpush1.msra.mxu0 0.0
      %1942 = vmatprep.subr.mxu0 0.0
      %1943 = vmatpush1.msra.mxu0 %v1850
      %1944 = vmatprep.subr.mxu0 0.0
      %1945 = vmatpush1.msra.mxu0 %v1849
      %1946 = vmatprep.subr.mxu0 0.0
      %1947 = vmatpush1.msra.mxu0 %v1848
      %1948 = vmatprep.subr.mxu0 0.0
      %1949 = vmatpush1.msra.mxu0 %v1847
      %1950 = vmatprep.subr.mxu0 0.0
      %1951 = vmatpush1.msra.mxu0 %v1846
      %1952 = vmatprep.subr.mxu0 0.0
      %1953 = vmatpush1.msra.mxu0 %v1845
      %1954 = vmatprep.subr.mxu0 0.0
      %1955 = vmatpush1.msra.mxu0 %v1844
      %1956 = vmatprep.subr.mxu0 0.0
      %1957 = vmatpush1.msra.mxu0 %v1843
      %1958 = vmatprep.subr.mxu0 0.0
      %1959 = vmatpush2.msra.mxu0 0.0
      %1960 = vmatprep.subr.mxu0 0.0
      %1961 = vmatpush2.msra.mxu0 0.0
      %1962 = vmatprep.subr.mxu0 0.0
      %1963 = vmatpush2.msra.mxu0 0.0
      %1964 = vmatprep.subr.mxu0 0.0
      %1965 = vmatpush2.msra.mxu0 0.0
      %1966 = vmatprep.subr.mxu0 0.0
      %1967 = vmatpush2.msra.mxu0 0.0
      %1968 = vmatprep.subr.mxu0 0.0
      %1969 = vmatpush2.msra.mxu0 0.0
      %1970 = vmatprep.subr.mxu0 0.0
      %1971 = vmatpush2.msra.mxu0 0.0
      %1972 = vmatprep.subr.mxu0 0.0
      %1973 = vmatpush2.msra.mxu0 0.0
      %1974 = vmatprep.subr.mxu0 0.0
      %1975 = vmatpush2.msra.mxu0 0.0
      %1976 = vmatprep.subr.mxu0 0.0
      %1977 = vmatpush2.msra.mxu0 0.0
      %1978 = vmatprep.subr.mxu0 0.0
      %1979 = vmatpush2.msra.mxu0 0.0
      %1980 = vmatprep.subr.mxu0 0.0
      %1981 = vmatpush2.msra.mxu0 0.0
      %1982 = vmatprep.subr.mxu0 0.0
      %1983 = vmatpush2.msra.mxu0 0.0
      %1984 = vmatprep.subr.mxu0 0.0
      %1985 = vmatpush2.msra.mxu0 0.0
      %1986 = vmatprep.subr.mxu0 0.0
      %1987 = vmatpush2.msra.mxu0 0.0
      %1988 = vmatprep.subr.mxu0 0.0
      %1989 = vmatpush2.msra.mxu0 0.0
      %1990 = vmatprep.mubr.f32.mxu0 0.0
      %1991 = vmatmul.mubr.f32.gmra.mxu0 %v1852
      %v1992 = vpop.f32.mrf.mxu0
      %v1993 = vadd.f32 0.0, %v1992
      %v1994 = vpop.f32.mrf.mxu0
      %1995 = vmatprep.mubr.f32.mxu0 0.0
      %1996 = vmatmul.mubr.f32.gmra.mxu0 %v1855
      %v1997 = vpop.f32.mrf.mxu0
      %v1998 = vadd.f32 0.0, %v1997
      %v1999 = vpop.f32.mrf.mxu0
      %2000 = vmatprep.mubr.f32.mxu0 0.0
      %2001 = vmatmul.mubr.f32.gmra.mxu0 %v1858
      %v2002 = vpop.f32.mrf.mxu0
      %v2003 = vadd.f32 0.0, %v2002
      %v2004 = vpop.f32.mrf.mxu0
      %2005 = vmatprep.mubr.f32.mxu0 0.0
      %2006 = vmatmul.mubr.f32.gmra.mxu0 %v1861
      %v2007 = vpop.f32.mrf.mxu0
      %v2008 = vadd.f32 0.0, %v2007
      %v2009 = vpop.f32.mrf.mxu0
      %2010 = vmatprep.mubr.f32.mxu0 0.0
      %2011 = vmatmul.mubr.f32.gmra.mxu0 %v1864
      %v2012 = vpop.f32.mrf.mxu0
      %v2013 = vadd.f32 0.0, %v2012
      %v2014 = vpop.f32.mrf.mxu0
      %2015 = vmatprep.mubr.f32.mxu0 0.0
      %2016 = vmatmul.mubr.f32.gmra.mxu0 %v1867
      %v2017 = vpop.f32.mrf.mxu0
      %v2018 = vadd.f32 0.0, %v2017
      %v2019 = vpop.f32.mrf.mxu0
      %2020 = vmatprep.mubr.f32.mxu0 0.0
      %2021 = vmatmul.mubr.f32.gmra.mxu0 %v1870
      %v2022 = vpop.f32.mrf.mxu0
      %v2023 = vadd.f32 0.0, %v2022
      %v2024 = vpop.f32.mrf.mxu0
      %2025 = vmatprep.mubr.f32.mxu0 0.0
      %2026 = vmatmul.mubr.f32.gmra.mxu0 %v1873
      %v2027 = vpop.f32.mrf.mxu0
      %v2028 = vadd.f32 0.0, %v2027
      %v2029 = vpop.f32.mrf.mxu0
      %2030 = vmatprep.mubr.f32.mxu0 0.0
      %2031 = vmatmul.mubr.f32.gmra.mxu0 %v1876
      %v2032 = vpop.f32.mrf.mxu0
      %v2033 = vadd.f32 0.0, %v2032
      %v2034 = vpop.f32.mrf.mxu0
      %2035 = vmatprep.mubr.f32.mxu0 0.0
      %2036 = vmatmul.mubr.f32.gmra.mxu0 %v1879
      %v2037 = vpop.f32.mrf.mxu0
      %v2038 = vadd.f32 0.0, %v2037
      %v2039 = vpop.f32.mrf.mxu0
      %2040 = vmatprep.mubr.f32.mxu0 0.0
      %2041 = vmatmul.mubr.f32.gmra.mxu0 %v1882
      %v2042 = vpop.f32.mrf.mxu0
      %v2043 = vadd.f32 0.0, %v2042
      %v2044 = vpop.f32.mrf.mxu0
      %2045 = vmatprep.mubr.f32.mxu0 0.0
      %2046 = vmatmul.mubr.f32.gmra.mxu0 %v1885
      %v2047 = vpop.f32.mrf.mxu0
      %v2048 = vadd.f32 0.0, %v2047
      %v2049 = vpop.f32.mrf.mxu0
      %2050 = vmatprep.mubr.f32.mxu0 0.0
      %2051 = vmatmul.mubr.f32.gmra.mxu0 %v1888
      %v2052 = vpop.f32.mrf.mxu0
      %v2053 = vadd.f32 0.0, %v2052
      %v2054 = vpop.f32.mrf.mxu0
      %2055 = vmatprep.mubr.f32.mxu0 0.0
      %2056 = vmatmul.mubr.f32.gmra.mxu0 %v1891
      %v2057 = vpop.f32.mrf.mxu0
      %v2058 = vadd.f32 0.0, %v2057
      %v2059 = vpop.f32.mrf.mxu0
      %2060 = vmatprep.mubr.f32.mxu0 0.0
      %2061 = vmatmul.mubr.f32.gmra.mxu0 %v1894
      %v2062 = vpop.f32.mrf.mxu0
      %v2063 = vadd.f32 0.0, %v2062
      %v2064 = vpop.f32.mrf.mxu0
      %2065 = vmatprep.mubr.f32.mxu0 0.0
      %2066 = vmatmul.mubr.f32.gmra.mxu0 %v1897
      %v2067 = vpop.f32.mrf.mxu0
      %v2068 = vadd.f32 0.0, %v2067
      %v2069 = vpop.f32.mrf.mxu0
      %2070 = vmatprep.mubr.f32.mxu0 0.0
      %2071 = vmatmul.mubr.f32.gmra.mxu0 %v1900
      %v2072 = vpop.f32.mrf.mxu0
      %v2073 = vadd.f32 0.0, %v2072
      %v2074 = vpop.f32.mrf.mxu0
      %2075 = vmatprep.mubr.f32.mxu0 0.0
      %2076 = vmatmul.mubr.f32.gmra.mxu0 %v1903
      %v2077 = vpop.f32.mrf.mxu0
      %v2078 = vadd.f32 0.0, %v2077
      %v2079 = vpop.f32.mrf.mxu0
      %2080 = vmatprep.mubr.f32.mxu0 0.0
      %2081 = vmatmul.mubr.f32.gmra.mxu0 %v1906
      %v2082 = vpop.f32.mrf.mxu0
      %v2083 = vadd.f32 0.0, %v2082
      %v2084 = vpop.f32.mrf.mxu0
      %2085 = vmatprep.mubr.f32.mxu0 0.0
      %2086 = vmatmul.mubr.f32.gmra.mxu0 %v1909
      %v2087 = vpop.f32.mrf.mxu0
      %v2088 = vadd.f32 0.0, %v2087
      %v2089 = vpop.f32.mrf.mxu0
      %2090 = vmatprep.mubr.f32.mxu0 0.0
      %2091 = vmatmul.mubr.f32.gmra.mxu0 %v1912
      %v2092 = vpop.f32.mrf.mxu0
      %v2093 = vadd.f32 0.0, %v2092
      %v2094 = vpop.f32.mrf.mxu0
      %2095 = vmatprep.mubr.f32.mxu0 0.0
      %2096 = vmatmul.mubr.f32.gmra.mxu0 %v1915
      %v2097 = vpop.f32.mrf.mxu0
      %v2098 = vadd.f32 0.0, %v2097
      %v2099 = vpop.f32.mrf.mxu0
      %2100 = vmatprep.mubr.f32.mxu0 0.0
      %2101 = vmatmul.mubr.f32.gmra.mxu0 %v1918
      %v2102 = vpop.f32.mrf.mxu0
      %v2103 = vadd.f32 0.0, %v2102
      %v2104 = vpop.f32.mrf.mxu0
      %2105 = vmatprep.mubr.f32.mxu0 0.0
      %2106 = vmatmul.mubr.f32.gmra.mxu0 %v1921
      %v2107 = vpop.f32.mrf.mxu0
      %v2108 = vadd.f32 0.0, %v2107
      %v2109 = vpop.f32.mrf.mxu0
      %2110 = vmatprep.mubr.f32.mxu0 0.0
      %2111 = vmatmul.mubr.f32.gmra.mxu0 %v1924
      %v2112 = vpop.f32.mrf.mxu0
      %v2113 = vadd.f32 0.0, %v2112
      %v2114 = vpop.f32.mrf.mxu0
      %2115 = vdwg.mxu0
      %v2116 = vadd.f32 %v1719, %v1993
      %v2117 = vadd.f32 %v1724, %v1998
      %v2118 = vadd.f32 %v1729, %v2003
      %v2119 = vadd.f32 %v1734, %v2008
      %v2120 = vadd.f32 %v1739, %v2013
      %v2121 = vadd.f32 %v1744, %v2018
      %v2122 = vadd.f32 %v1749, %v2023
      %v2123 = vadd.f32 %v1754, %v2028
      %v2124 = vadd.f32 %v1759, %v2033
      %v2125 = vadd.f32 %v1764, %v2038
      %v2126 = vadd.f32 %v1769, %v2043
      %v2127 = vadd.f32 %v1774, %v2048
      %v2128 = vadd.f32 %v1779, %v2053
      %v2129 = vadd.f32 %v1784, %v2058
      %v2130 = vadd.f32 %v1789, %v2063
      %v2131 = vadd.f32 %v1794, %v2068
      %v2132 = vadd.f32 %v1799, %v2073
      %v2133 = vadd.f32 %v1804, %v2078
      %v2134 = vadd.f32 %v1809, %v2083
      %v2135 = vadd.f32 %v1814, %v2088
      %v2136 = vadd.f32 %v1819, %v2093
      %v2137 = vadd.f32 %v1824, %v2098
      %v2138 = vadd.f32 %v1829, %v2103
      %v2139 = vadd.f32 %v1834, %v2108
      %v2140 = vadd.f32 %v1839, %v2113
      %s2141 = scalar_lea.vmem %s1, 192
      %v2142 = vld [vmem:[%s2141] sm:$0xff]
      %v2143 = vld [vmem:[%s2141 + $0x8] sm:$0xff]
      %v2144 = vld [vmem:[%s2141 + $0x10] sm:$0xff]
      %v2145 = vld [vmem:[%s2141 + $0x18] sm:$0xff]
      %v2146 = vld [vmem:[%s2141 + $0x20] sm:$0xff]
      %v2147 = vld [vmem:[%s2141 + $0x28] sm:$0xff]
      %v2148 = vld [vmem:[%s2141 + $0x30] sm:$0xff]
      %v2149 = vld [vmem:[%s2141 + $0x38] sm:$0xff]
      %v2154 = vrot.slane %v1065, 1
      %v2155 = vrot.slane %v1066, 1
      %v2156 = vsel %vm1126, %v2154, %v2155
      %v2157 = vrot.slane %v1067, 1
      %v2158 = vsel %vm1126, %v2155, %v2157
      %v2159 = vrot.slane %v1068, 1
      %v2160 = vsel %vm1126, %v2157, %v2159
      %v2161 = vrot.slane %v1069, 1
      %v2162 = vsel %vm1126, %v2159, %v2161
      %v2163 = vrot.slane %v1070, 1
      %v2164 = vsel %vm1126, %v2161, %v2163
      %v2165 = vrot.slane %v1071, 1
      %v2166 = vsel %vm1126, %v2163, %v2165
      %v2167 = vrot.slane %v1072, 1
      %v2168 = vsel %vm1126, %v2165, %v2167
      %v2169 = vrot.slane %v1073, 1
      %v2170 = vsel %vm1126, %v2167, %v2169
      %v2171 = vrot.slane %v1074, 1
      %v2172 = vsel %vm1126, %v2169, %v2171
      %v2173 = vrot.slane %v1075, 1
      %v2174 = vsel %vm1126, %v2171, %v2173
      %v2175 = vrot.slane %v1076, 1
      %v2176 = vsel %vm1126, %v2173, %v2175
      %v2177 = vrot.slane %v1077, 1
      %v2178 = vsel %vm1126, %v2175, %v2177
      %v2179 = vrot.slane %v1078, 1
      %v2180 = vsel %vm1126, %v2177, %v2179
      %v2181 = vrot.slane %v1079, 1
      %v2182 = vsel %vm1126, %v2179, %v2181
      %v2183 = vrot.slane %v1080, 1
      %v2184 = vsel %vm1126, %v2181, %v2183
      %v2185 = vrot.slane %v1081, 1
      %v2186 = vsel %vm1126, %v2183, %v2185
      %v2187 = vrot.slane %v1082, 1
      %v2188 = vsel %vm1126, %v2185, %v2187
      %v2189 = vrot.slane %v1083, 1
      %v2190 = vsel %vm1126, %v2187, %v2189
      %v2191 = vrot.slane %v1084, 1
      %v2192 = vsel %vm1126, %v2189, %v2191
      %v2193 = vrot.slane %v1085, 1
      %v2194 = vsel %vm1126, %v2191, %v2193
      %v2195 = vrot.slane %v1086, 1
      %v2196 = vsel %vm1126, %v2193, %v2195
      %v2197 = vrot.slane %v1087, 1
      %v2198 = vsel %vm1126, %v2195, %v2197
      %v2199 = vrot.slane %v1088, 1
      %v2200 = vsel %vm1126, %v2197, %v2199
      %v2201 = vrot.slane %v1089, 1
      %v2202 = vsel %vm1126, %v2199, %v2201
      %v2203 = vrot.slane %v1090, 1
      %v2204 = vsel %vm1126, %v2201, %v2203
      %v2205 = vsel %vm1336, %v2156, 0
      %v2207 = vsel %vm1336, %v2158, 0
      %v2209 = vsel %vm1336, %v2160, 0
      %v2211 = vsel %vm1336, %v2162, 0
      %v2213 = vsel %vm1336, %v2164, 0
      %v2215 = vsel %vm1336, %v2166, 0
      %v2217 = vsel %vm1336, %v2168, 0
      %v2219 = vsel %vm1336, %v2170, 0
      %v2221 = vsel %vm1336, %v2172, 0
      %v2223 = vsel %vm1336, %v2174, 0
      %v2225 = vsel %vm1336, %v2176, 0
      %v2227 = vsel %vm1336, %v2178, 0
      %v2229 = vsel %vm1336, %v2180, 0
      %v2231 = vsel %vm1336, %v2182, 0
      %v2233 = vsel %vm1336, %v2184, 0
      %v2235 = vsel %vm1336, %v2186, 0
      %v2237 = vsel %vm1336, %v2188, 0
      %v2239 = vsel %vm1336, %v2190, 0
      %v2241 = vsel %vm1336, %v2192, 0
      %v2243 = vsel %vm1336, %v2194, 0
      %v2245 = vsel %vm1336, %v2196, 0
      %v2247 = vsel %vm1336, %v2198, 0
      %v2249 = vsel %vm1336, %v2200, 0
      %v2251 = vsel %vm1336, %v2202, 0
      %v2253 = vsel %vm1336, %v2204, 0
      %2255 = vmatprep.subr.mxu0 0.0
      %2256 = vmatpush1.msra.mxu0 0.0
      %2257 = vmatprep.subr.mxu0 0.0
      %2258 = vmatpush1.msra.mxu0 0.0
      %2259 = vmatprep.subr.mxu0 0.0
      %2260 = vmatpush1.msra.mxu0 0.0
      %2261 = vmatprep.subr.mxu0 0.0
      %2262 = vmatpush1.msra.mxu0 0.0
      %2263 = vmatprep.subr.mxu0 0.0
      %2264 = vmatpush1.msra.mxu0 0.0
      %2265 = vmatprep.subr.mxu0 0.0
      %2266 = vmatpush1.msra.mxu0 0.0
      %2267 = vmatprep.subr.mxu0 0.0
      %2268 = vmatpush1.msra.mxu0 0.0
      %2269 = vmatprep.subr.mxu0 0.0
      %2270 = vmatpush1.msra.mxu0 0.0
      %2271 = vmatprep.subr.mxu0 0.0
      %2272 = vmatpush1.msra.mxu0 %v2149
      %2273 = vmatprep.subr.mxu0 0.0
      %2274 = vmatpush1.msra.mxu0 %v2148
      %2275 = vmatprep.subr.mxu0 0.0
      %2276 = vmatpush1.msra.mxu0 %v2147
      %2277 = vmatprep.subr.mxu0 0.0
      %2278 = vmatpush1.msra.mxu0 %v2146
      %2279 = vmatprep.subr.mxu0 0.0
      %2280 = vmatpush1.msra.mxu0 %v2145
      %2281 = vmatprep.subr.mxu0 0.0
      %2282 = vmatpush1.msra.mxu0 %v2144
      %2283 = vmatprep.subr.mxu0 0.0
      %2284 = vmatpush1.msra.mxu0 %v2143
      %2285 = vmatprep.subr.mxu0 0.0
      %2286 = vmatpush1.msra.mxu0 %v2142
      %2287 = vmatprep.subr.mxu0 0.0
      %2288 = vmatpush2.msra.mxu0 0.0
      %2289 = vmatprep.subr.mxu0 0.0
      %2290 = vmatpush2.msra.mxu0 0.0
      %2291 = vmatprep.subr.mxu0 0.0
      %2292 = vmatpush2.msra.mxu0 0.0
      %2293 = vmatprep.subr.mxu0 0.0
      %2294 = vmatpush2.msra.mxu0 0.0
      %2295 = vmatprep.subr.mxu0 0.0
      %2296 = vmatpush2.msra.mxu0 0.0
      %2297 = vmatprep.subr.mxu0 0.0
      %2298 = vmatpush2.msra.mxu0 0.0
      %2299 = vmatprep.subr.mxu0 0.0
      %2300 = vmatpush2.msra.mxu0 0.0
      %2301 = vmatprep.subr.mxu0 0.0
      %2302 = vmatpush2.msra.mxu0 0.0
      %2303 = vmatprep.subr.mxu0 0.0
      %2304 = vmatpush2.msra.mxu0 0.0
      %2305 = vmatprep.subr.mxu0 0.0
      %2306 = vmatpush2.msra.mxu0 0.0
      %2307 = vmatprep.subr.mxu0 0.0
      %2308 = vmatpush2.msra.mxu0 0.0
      %2309 = vmatprep.subr.mxu0 0.0
      %2310 = vmatpush2.msra.mxu0 0.0
      %2311 = vmatprep.subr.mxu0 0.0
      %2312 = vmatpush2.msra.mxu0 0.0
      %2313 = vmatprep.subr.mxu0 0.0
      %2314 = vmatpush2.msra.mxu0 0.0
      %2315 = vmatprep.subr.mxu0 0.0
      %2316 = vmatpush2.msra.mxu0 0.0
      %2317 = vmatprep.subr.mxu0 0.0
      %2318 = vmatpush2.msra.mxu0 0.0
      %2319 = vmatprep.mubr.f32.mxu0 0.0
      %2320 = vmatmul.mubr.f32.gmra.mxu0 %v2205
      %v2321 = vpop.f32.mrf.mxu0
      %v2322 = vadd.f32 0.0, %v2321
      %v2323 = vpop.f32.mrf.mxu0
      %2324 = vmatprep.mubr.f32.mxu0 0.0
      %2325 = vmatmul.mubr.f32.gmra.mxu0 %v2207
      %v2326 = vpop.f32.mrf.mxu0
      %v2327 = vadd.f32 0.0, %v2326
      %v2328 = vpop.f32.mrf.mxu0
      %2329 = vmatprep.mubr.f32.mxu0 0.0
      %2330 = vmatmul.mubr.f32.gmra.mxu0 %v2209
      %v2331 = vpop.f32.mrf.mxu0
      %v2332 = vadd.f32 0.0, %v2331
      %v2333 = vpop.f32.mrf.mxu0
      %2334 = vmatprep.mubr.f32.mxu0 0.0
      %2335 = vmatmul.mubr.f32.gmra.mxu0 %v2211
      %v2336 = vpop.f32.mrf.mxu0
      %v2337 = vadd.f32 0.0, %v2336
      %v2338 = vpop.f32.mrf.mxu0
      %2339 = vmatprep.mubr.f32.mxu0 0.0
      %2340 = vmatmul.mubr.f32.gmra.mxu0 %v2213
      %v2341 = vpop.f32.mrf.mxu0
      %v2342 = vadd.f32 0.0, %v2341
      %v2343 = vpop.f32.mrf.mxu0
      %2344 = vmatprep.mubr.f32.mxu0 0.0
      %2345 = vmatmul.mubr.f32.gmra.mxu0 %v2215
      %v2346 = vpop.f32.mrf.mxu0
      %v2347 = vadd.f32 0.0, %v2346
      %v2348 = vpop.f32.mrf.mxu0
      %2349 = vmatprep.mubr.f32.mxu0 0.0
      %2350 = vmatmul.mubr.f32.gmra.mxu0 %v2217
      %v2351 = vpop.f32.mrf.mxu0
      %v2352 = vadd.f32 0.0, %v2351
      %v2353 = vpop.f32.mrf.mxu0
      %2354 = vmatprep.mubr.f32.mxu0 0.0
      %2355 = vmatmul.mubr.f32.gmra.mxu0 %v2219
      %v2356 = vpop.f32.mrf.mxu0
      %v2357 = vadd.f32 0.0, %v2356
      %v2358 = vpop.f32.mrf.mxu0
      %2359 = vmatprep.mubr.f32.mxu0 0.0
      %2360 = vmatmul.mubr.f32.gmra.mxu0 %v2221
      %v2361 = vpop.f32.mrf.mxu0
      %v2362 = vadd.f32 0.0, %v2361
      %v2363 = vpop.f32.mrf.mxu0
      %2364 = vmatprep.mubr.f32.mxu0 0.0
      %2365 = vmatmul.mubr.f32.gmra.mxu0 %v2223
      %v2366 = vpop.f32.mrf.mxu0
      %v2367 = vadd.f32 0.0, %v2366
      %v2368 = vpop.f32.mrf.mxu0
      %2369 = vmatprep.mubr.f32.mxu0 0.0
      %2370 = vmatmul.mubr.f32.gmra.mxu0 %v2225
      %v2371 = vpop.f32.mrf.mxu0
      %v2372 = vadd.f32 0.0, %v2371
      %v2373 = vpop.f32.mrf.mxu0
      %2374 = vmatprep.mubr.f32.mxu0 0.0
      %2375 = vmatmul.mubr.f32.gmra.mxu0 %v2227
      %v2376 = vpop.f32.mrf.mxu0
      %v2377 = vadd.f32 0.0, %v2376
      %v2378 = vpop.f32.mrf.mxu0
      %2379 = vmatprep.mubr.f32.mxu0 0.0
      %2380 = vmatmul.mubr.f32.gmra.mxu0 %v2229
      %v2381 = vpop.f32.mrf.mxu0
      %v2382 = vadd.f32 0.0, %v2381
      %v2383 = vpop.f32.mrf.mxu0
      %2384 = vmatprep.mubr.f32.mxu0 0.0
      %2385 = vmatmul.mubr.f32.gmra.mxu0 %v2231
      %v2386 = vpop.f32.mrf.mxu0
      %v2387 = vadd.f32 0.0, %v2386
      %v2388 = vpop.f32.mrf.mxu0
      %2389 = vmatprep.mubr.f32.mxu0 0.0
      %2390 = vmatmul.mubr.f32.gmra.mxu0 %v2233
      %v2391 = vpop.f32.mrf.mxu0
      %v2392 = vadd.f32 0.0, %v2391
      %v2393 = vpop.f32.mrf.mxu0
      %2394 = vmatprep.mubr.f32.mxu0 0.0
      %2395 = vmatmul.mubr.f32.gmra.mxu0 %v2235
      %v2396 = vpop.f32.mrf.mxu0
      %v2397 = vadd.f32 0.0, %v2396
      %v2398 = vpop.f32.mrf.mxu0
      %2399 = vmatprep.mubr.f32.mxu0 0.0
      %2400 = vmatmul.mubr.f32.gmra.mxu0 %v2237
      %v2401 = vpop.f32.mrf.mxu0
      %v2402 = vadd.f32 0.0, %v2401
      %v2403 = vpop.f32.mrf.mxu0
      %2404 = vmatprep.mubr.f32.mxu0 0.0
      %2405 = vmatmul.mubr.f32.gmra.mxu0 %v2239
      %v2406 = vpop.f32.mrf.mxu0
      %v2407 = vadd.f32 0.0, %v2406
      %v2408 = vpop.f32.mrf.mxu0
      %2409 = vmatprep.mubr.f32.mxu0 0.0
      %2410 = vmatmul.mubr.f32.gmra.mxu0 %v2241
      %v2411 = vpop.f32.mrf.mxu0
      %v2412 = vadd.f32 0.0, %v2411
      %v2413 = vpop.f32.mrf.mxu0
      %2414 = vmatprep.mubr.f32.mxu0 0.0
      %2415 = vmatmul.mubr.f32.gmra.mxu0 %v2243
      %v2416 = vpop.f32.mrf.mxu0
      %v2417 = vadd.f32 0.0, %v2416
      %v2418 = vpop.f32.mrf.mxu0
      %2419 = vmatprep.mubr.f32.mxu0 0.0
      %2420 = vmatmul.mubr.f32.gmra.mxu0 %v2245
      %v2421 = vpop.f32.mrf.mxu0
      %v2422 = vadd.f32 0.0, %v2421
      %v2423 = vpop.f32.mrf.mxu0
      %2424 = vmatprep.mubr.f32.mxu0 0.0
      %2425 = vmatmul.mubr.f32.gmra.mxu0 %v2247
      %v2426 = vpop.f32.mrf.mxu0
      %v2427 = vadd.f32 0.0, %v2426
      %v2428 = vpop.f32.mrf.mxu0
      %2429 = vmatprep.mubr.f32.mxu0 0.0
      %2430 = vmatmul.mubr.f32.gmra.mxu0 %v2249
      %v2431 = vpop.f32.mrf.mxu0
      %v2432 = vadd.f32 0.0, %v2431
      %v2433 = vpop.f32.mrf.mxu0
      %2434 = vmatprep.mubr.f32.mxu0 0.0
      %2435 = vmatmul.mubr.f32.gmra.mxu0 %v2251
      %v2436 = vpop.f32.mrf.mxu0
      %v2437 = vadd.f32 0.0, %v2436
      %v2438 = vpop.f32.mrf.mxu0
      %2439 = vmatprep.mubr.f32.mxu0 0.0
      %2440 = vmatmul.mubr.f32.gmra.mxu0 %v2253
      %v2441 = vpop.f32.mrf.mxu0
      %v2442 = vadd.f32 0.0, %v2441
      %v2443 = vpop.f32.mrf.mxu0
      %2444 = vdwg.mxu0
      %v2445 = vadd.f32 %v2116, %v2322
      %v2446 = vadd.f32 %v2117, %v2327
      %v2447 = vadd.f32 %v2118, %v2332
      %v2448 = vadd.f32 %v2119, %v2337
      %v2449 = vadd.f32 %v2120, %v2342
      %v2450 = vadd.f32 %v2121, %v2347
      %v2451 = vadd.f32 %v2122, %v2352
      %v2452 = vadd.f32 %v2123, %v2357
      %v2453 = vadd.f32 %v2124, %v2362
      %v2454 = vadd.f32 %v2125, %v2367
      %v2455 = vadd.f32 %v2126, %v2372
      %v2456 = vadd.f32 %v2127, %v2377
      %v2457 = vadd.f32 %v2128, %v2382
      %v2458 = vadd.f32 %v2129, %v2387
      %v2459 = vadd.f32 %v2130, %v2392
      %v2460 = vadd.f32 %v2131, %v2397
      %v2461 = vadd.f32 %v2132, %v2402
      %v2462 = vadd.f32 %v2133, %v2407
      %v2463 = vadd.f32 %v2134, %v2412
      %v2464 = vadd.f32 %v2135, %v2417
      %v2465 = vadd.f32 %v2136, %v2422
      %v2466 = vadd.f32 %v2137, %v2427
      %v2467 = vadd.f32 %v2138, %v2432
      %v2468 = vadd.f32 %v2139, %v2437
      %v2469 = vadd.f32 %v2140, %v2442
      %s2470 = scalar_lea.vmem %s1, 256
      %v2471 = vld [vmem:[%s2470] sm:$0xff]
      %v2472 = vld [vmem:[%s2470 + $0x8] sm:$0xff]
      %v2473 = vld [vmem:[%s2470 + $0x10] sm:$0xff]
      %v2474 = vld [vmem:[%s2470 + $0x18] sm:$0xff]
      %v2475 = vld [vmem:[%s2470 + $0x20] sm:$0xff]
      %v2476 = vld [vmem:[%s2470 + $0x28] sm:$0xff]
      %v2477 = vld [vmem:[%s2470 + $0x30] sm:$0xff]
      %v2478 = vld [vmem:[%s2470 + $0x38] sm:$0xff]
      %v2479 = vsel %vm1336, %v1135, 0
      %v2481 = vsel %vm1336, %v1137, 0
      %v2483 = vsel %vm1336, %v1139, 0
      %v2485 = vsel %vm1336, %v1141, 0
      %v2487 = vsel %vm1336, %v1143, 0
      %v2489 = vsel %vm1336, %v1145, 0
      %v2491 = vsel %vm1336, %v1147, 0
      %v2493 = vsel %vm1336, %v1149, 0
      %v2495 = vsel %vm1336, %v1151, 0
      %v2497 = vsel %vm1336, %v1153, 0
      %v2499 = vsel %vm1336, %v1155, 0
      %v2501 = vsel %vm1336, %v1157, 0
      %v2503 = vsel %vm1336, %v1159, 0
      %v2505 = vsel %vm1336, %v1161, 0
      %v2507 = vsel %vm1336, %v1163, 0
      %v2509 = vsel %vm1336, %v1165, 0
      %v2511 = vsel %vm1336, %v1167, 0
      %v2513 = vsel %vm1336, %v1169, 0
      %v2515 = vsel %vm1336, %v1171, 0
      %v2517 = vsel %vm1336, %v1173, 0
      %v2519 = vsel %vm1336, %v1175, 0
      %v2521 = vsel %vm1336, %v1177, 0
      %v2523 = vsel %vm1336, %v1179, 0
      %v2525 = vsel %vm1336, %v1181, 0
      %v2527 = vsel %vm1336, %v1183, 0
      %2529 = vmatprep.subr.mxu0 0.0
      %2530 = vmatpush1.msra.mxu0 0.0
      %2531 = vmatprep.subr.mxu0 0.0
      %2532 = vmatpush1.msra.mxu0 0.0
      %2533 = vmatprep.subr.mxu0 0.0
      %2534 = vmatpush1.msra.mxu0 0.0
      %2535 = vmatprep.subr.mxu0 0.0
      %2536 = vmatpush1.msra.mxu0 0.0
      %2537 = vmatprep.subr.mxu0 0.0
      %2538 = vmatpush1.msra.mxu0 0.0
      %2539 = vmatprep.subr.mxu0 0.0
      %2540 = vmatpush1.msra.mxu0 0.0
      %2541 = vmatprep.subr.mxu0 0.0
      %2542 = vmatpush1.msra.mxu0 0.0
      %2543 = vmatprep.subr.mxu0 0.0
      %2544 = vmatpush1.msra.mxu0 0.0
      %2545 = vmatprep.subr.mxu0 0.0
      %2546 = vmatpush1.msra.mxu0 %v2478
      %2547 = vmatprep.subr.mxu0 0.0
      %2548 = vmatpush1.msra.mxu0 %v2477
      %2549 = vmatprep.subr.mxu0 0.0
      %2550 = vmatpush1.msra.mxu0 %v2476
      %2551 = vmatprep.subr.mxu0 0.0
      %2552 = vmatpush1.msra.mxu0 %v2475
      %2553 = vmatprep.subr.mxu0 0.0
      %2554 = vmatpush1.msra.mxu0 %v2474
      %2555 = vmatprep.subr.mxu0 0.0
      %2556 = vmatpush1.msra.mxu0 %v2473
      %2557 = vmatprep.subr.mxu0 0.0
      %2558 = vmatpush1.msra.mxu0 %v2472
      %2559 = vmatprep.subr.mxu0 0.0
      %2560 = vmatpush1.msra.mxu0 %v2471
      %2561 = vmatprep.subr.mxu0 0.0
      %2562 = vmatpush2.msra.mxu0 0.0
      %2563 = vmatprep.subr.mxu0 0.0
      %2564 = vmatpush2.msra.mxu0 0.0
      %2565 = vmatprep.subr.mxu0 0.0
      %2566 = vmatpush2.msra.mxu0 0.0
      %2567 = vmatprep.subr.mxu0 0.0
      %2568 = vmatpush2.msra.mxu0 0.0
      %2569 = vmatprep.subr.mxu0 0.0
      %2570 = vmatpush2.msra.mxu0 0.0
      %2571 = vmatprep.subr.mxu0 0.0
      %2572 = vmatpush2.msra.mxu0 0.0
      %2573 = vmatprep.subr.mxu0 0.0
      %2574 = vmatpush2.msra.mxu0 0.0
      %2575 = vmatprep.subr.mxu0 0.0
      %2576 = vmatpush2.msra.mxu0 0.0
      %2577 = vmatprep.subr.mxu0 0.0
      %2578 = vmatpush2.msra.mxu0 0.0
      %2579 = vmatprep.subr.mxu0 0.0
      %2580 = vmatpush2.msra.mxu0 0.0
      %2581 = vmatprep.subr.mxu0 0.0
      %2582 = vmatpush2.msra.mxu0 0.0
      %2583 = vmatprep.subr.mxu0 0.0
      %2584 = vmatpush2.msra.mxu0 0.0
      %2585 = vmatprep.subr.mxu0 0.0
      %2586 = vmatpush2.msra.mxu0 0.0
      %2587 = vmatprep.subr.mxu0 0.0
      %2588 = vmatpush2.msra.mxu0 0.0
      %2589 = vmatprep.subr.mxu0 0.0
      %2590 = vmatpush2.msra.mxu0 0.0
      %2591 = vmatprep.subr.mxu0 0.0
      %2592 = vmatpush2.msra.mxu0 0.0
      %2593 = vmatprep.mubr.f32.mxu0 0.0
      %2594 = vmatmul.mubr.f32.gmra.mxu0 %v2479
      %v2595 = vpop.f32.mrf.mxu0
      %v2596 = vadd.f32 0.0, %v2595
      %v2597 = vpop.f32.mrf.mxu0
      %2598 = vmatprep.mubr.f32.mxu0 0.0
      %2599 = vmatmul.mubr.f32.gmra.mxu0 %v2481
      %v2600 = vpop.f32.mrf.mxu0
      %v2601 = vadd.f32 0.0, %v2600
      %v2602 = vpop.f32.mrf.mxu0
      %2603 = vmatprep.mubr.f32.mxu0 0.0
      %2604 = vmatmul.mubr.f32.gmra.mxu0 %v2483
      %v2605 = vpop.f32.mrf.mxu0
      %v2606 = vadd.f32 0.0, %v2605
      %v2607 = vpop.f32.mrf.mxu0
      %2608 = vmatprep.mubr.f32.mxu0 0.0
      %2609 = vmatmul.mubr.f32.gmra.mxu0 %v2485
      %v2610 = vpop.f32.mrf.mxu0
      %v2611 = vadd.f32 0.0, %v2610
      %v2612 = vpop.f32.mrf.mxu0
      %2613 = vmatprep.mubr.f32.mxu0 0.0
      %2614 = vmatmul.mubr.f32.gmra.mxu0 %v2487
      %v2615 = vpop.f32.mrf.mxu0
      %v2616 = vadd.f32 0.0, %v2615
      %v2617 = vpop.f32.mrf.mxu0
      %2618 = vmatprep.mubr.f32.mxu0 0.0
      %2619 = vmatmul.mubr.f32.gmra.mxu0 %v2489
      %v2620 = vpop.f32.mrf.mxu0
      %v2621 = vadd.f32 0.0, %v2620
      %v2622 = vpop.f32.mrf.mxu0
      %2623 = vmatprep.mubr.f32.mxu0 0.0
      %2624 = vmatmul.mubr.f32.gmra.mxu0 %v2491
      %v2625 = vpop.f32.mrf.mxu0
      %v2626 = vadd.f32 0.0, %v2625
      %v2627 = vpop.f32.mrf.mxu0
      %2628 = vmatprep.mubr.f32.mxu0 0.0
      %2629 = vmatmul.mubr.f32.gmra.mxu0 %v2493
      %v2630 = vpop.f32.mrf.mxu0
      %v2631 = vadd.f32 0.0, %v2630
      %v2632 = vpop.f32.mrf.mxu0
      %2633 = vmatprep.mubr.f32.mxu0 0.0
      %2634 = vmatmul.mubr.f32.gmra.mxu0 %v2495
      %v2635 = vpop.f32.mrf.mxu0
      %v2636 = vadd.f32 0.0, %v2635
      %v2637 = vpop.f32.mrf.mxu0
      %2638 = vmatprep.mubr.f32.mxu0 0.0
      %2639 = vmatmul.mubr.f32.gmra.mxu0 %v2497
      %v2640 = vpop.f32.mrf.mxu0
      %v2641 = vadd.f32 0.0, %v2640
      %v2642 = vpop.f32.mrf.mxu0
      %2643 = vmatprep.mubr.f32.mxu0 0.0
      %2644 = vmatmul.mubr.f32.gmra.mxu0 %v2499
      %v2645 = vpop.f32.mrf.mxu0
      %v2646 = vadd.f32 0.0, %v2645
      %v2647 = vpop.f32.mrf.mxu0
      %2648 = vmatprep.mubr.f32.mxu0 0.0
      %2649 = vmatmul.mubr.f32.gmra.mxu0 %v2501
      %v2650 = vpop.f32.mrf.mxu0
      %v2651 = vadd.f32 0.0, %v2650
      %v2652 = vpop.f32.mrf.mxu0
      %2653 = vmatprep.mubr.f32.mxu0 0.0
      %2654 = vmatmul.mubr.f32.gmra.mxu0 %v2503
      %v2655 = vpop.f32.mrf.mxu0
      %v2656 = vadd.f32 0.0, %v2655
      %v2657 = vpop.f32.mrf.mxu0
      %2658 = vmatprep.mubr.f32.mxu0 0.0
      %2659 = vmatmul.mubr.f32.gmra.mxu0 %v2505
      %v2660 = vpop.f32.mrf.mxu0
      %v2661 = vadd.f32 0.0, %v2660
      %v2662 = vpop.f32.mrf.mxu0
      %2663 = vmatprep.mubr.f32.mxu0 0.0
      %2664 = vmatmul.mubr.f32.gmra.mxu0 %v2507
      %v2665 = vpop.f32.mrf.mxu0
      %v2666 = vadd.f32 0.0, %v2665
      %v2667 = vpop.f32.mrf.mxu0
      %2668 = vmatprep.mubr.f32.mxu0 0.0
      %2669 = vmatmul.mubr.f32.gmra.mxu0 %v2509
      %v2670 = vpop.f32.mrf.mxu0
      %v2671 = vadd.f32 0.0, %v2670
      %v2672 = vpop.f32.mrf.mxu0
      %2673 = vmatprep.mubr.f32.mxu0 0.0
      %2674 = vmatmul.mubr.f32.gmra.mxu0 %v2511
      %v2675 = vpop.f32.mrf.mxu0
      %v2676 = vadd.f32 0.0, %v2675
      %v2677 = vpop.f32.mrf.mxu0
      %2678 = vmatprep.mubr.f32.mxu0 0.0
      %2679 = vmatmul.mubr.f32.gmra.mxu0 %v2513
      %v2680 = vpop.f32.mrf.mxu0
      %v2681 = vadd.f32 0.0, %v2680
      %v2682 = vpop.f32.mrf.mxu0
      %2683 = vmatprep.mubr.f32.mxu0 0.0
      %2684 = vmatmul.mubr.f32.gmra.mxu0 %v2515
      %v2685 = vpop.f32.mrf.mxu0
      %v2686 = vadd.f32 0.0, %v2685
      %v2687 = vpop.f32.mrf.mxu0
      %2688 = vmatprep.mubr.f32.mxu0 0.0
      %2689 = vmatmul.mubr.f32.gmra.mxu0 %v2517
      %v2690 = vpop.f32.mrf.mxu0
      %v2691 = vadd.f32 0.0, %v2690
      %v2692 = vpop.f32.mrf.mxu0
      %2693 = vmatprep.mubr.f32.mxu0 0.0
      %2694 = vmatmul.mubr.f32.gmra.mxu0 %v2519
      %v2695 = vpop.f32.mrf.mxu0
      %v2696 = vadd.f32 0.0, %v2695
      %v2697 = vpop.f32.mrf.mxu0
      %2698 = vmatprep.mubr.f32.mxu0 0.0
      %2699 = vmatmul.mubr.f32.gmra.mxu0 %v2521
      %v2700 = vpop.f32.mrf.mxu0
      %v2701 = vadd.f32 0.0, %v2700
      %v2702 = vpop.f32.mrf.mxu0
      %2703 = vmatprep.mubr.f32.mxu0 0.0
      %2704 = vmatmul.mubr.f32.gmra.mxu0 %v2523
      %v2705 = vpop.f32.mrf.mxu0
      %v2706 = vadd.f32 0.0, %v2705
      %v2707 = vpop.f32.mrf.mxu0
      %2708 = vmatprep.mubr.f32.mxu0 0.0
      %2709 = vmatmul.mubr.f32.gmra.mxu0 %v2525
      %v2710 = vpop.f32.mrf.mxu0
      %v2711 = vadd.f32 0.0, %v2710
      %v2712 = vpop.f32.mrf.mxu0
      %2713 = vmatprep.mubr.f32.mxu0 0.0
      %2714 = vmatmul.mubr.f32.gmra.mxu0 %v2527
      %v2715 = vpop.f32.mrf.mxu0
      %v2716 = vadd.f32 0.0, %v2715
      %v2717 = vpop.f32.mrf.mxu0
      %2718 = vdwg.mxu0
      %v2719 = vadd.f32 %v2445, %v2596
      %v2720 = vadd.f32 %v2446, %v2601
      %v2721 = vadd.f32 %v2447, %v2606
      %v2722 = vadd.f32 %v2448, %v2611
      %v2723 = vadd.f32 %v2449, %v2616
      %v2724 = vadd.f32 %v2450, %v2621
      %v2725 = vadd.f32 %v2451, %v2626
      %v2726 = vadd.f32 %v2452, %v2631
      %v2727 = vadd.f32 %v2453, %v2636
      %v2728 = vadd.f32 %v2454, %v2641
      %v2729 = vadd.f32 %v2455, %v2646
      %v2730 = vadd.f32 %v2456, %v2651
      %v2731 = vadd.f32 %v2457, %v2656
      %v2732 = vadd.f32 %v2458, %v2661
      %v2733 = vadd.f32 %v2459, %v2666
      %v2734 = vadd.f32 %v2460, %v2671
      %v2735 = vadd.f32 %v2461, %v2676
      %v2736 = vadd.f32 %v2462, %v2681
      %v2737 = vadd.f32 %v2463, %v2686
      %v2738 = vadd.f32 %v2464, %v2691
      %v2739 = vadd.f32 %v2465, %v2696
      %v2740 = vadd.f32 %v2466, %v2701
      %v2741 = vadd.f32 %v2467, %v2706
      %v2742 = vadd.f32 %v2468, %v2711
      %v2743 = vadd.f32 %v2469, %v2716
      %s2744 = scalar_lea.vmem %s1, 320
      %v2745 = vld [vmem:[%s2744] sm:$0xff]
      %v2746 = vld [vmem:[%s2744 + $0x8] sm:$0xff]
      %v2747 = vld [vmem:[%s2744 + $0x10] sm:$0xff]
      %v2748 = vld [vmem:[%s2744 + $0x18] sm:$0xff]
      %v2749 = vld [vmem:[%s2744 + $0x20] sm:$0xff]
      %v2750 = vld [vmem:[%s2744 + $0x28] sm:$0xff]
      %v2751 = vld [vmem:[%s2744 + $0x30] sm:$0xff]
      %v2752 = vld [vmem:[%s2744 + $0x38] sm:$0xff]
      %v2757 = vrot.slane %v1290, 1
      %v2758 = vrot.slane %v1291, 1
      %v2759 = vsel %vm1126, %v2757, %v2758
      %v2760 = vrot.slane %v1292, 1
      %v2761 = vsel %vm1126, %v2758, %v2760
      %v2762 = vrot.slane %v1293, 1
      %v2763 = vsel %vm1126, %v2760, %v2762
      %v2764 = vrot.slane %v1294, 1
      %v2765 = vsel %vm1126, %v2762, %v2764
      %v2766 = vrot.slane %v1295, 1
      %v2767 = vsel %vm1126, %v2764, %v2766
      %v2768 = vrot.slane %v1296, 1
      %v2769 = vsel %vm1126, %v2766, %v2768
      %v2770 = vrot.slane %v1297, 1
      %v2771 = vsel %vm1126, %v2768, %v2770
      %v2772 = vrot.slane %v1298, 1
      %v2773 = vsel %vm1126, %v2770, %v2772
      %v2774 = vrot.slane %v1299, 1
      %v2775 = vsel %vm1126, %v2772, %v2774
      %v2776 = vrot.slane %v1300, 1
      %v2777 = vsel %vm1126, %v2774, %v2776
      %v2778 = vrot.slane %v1301, 1
      %v2779 = vsel %vm1126, %v2776, %v2778
      %v2780 = vrot.slane %v1302, 1
      %v2781 = vsel %vm1126, %v2778, %v2780
      %v2782 = vrot.slane %v1303, 1
      %v2783 = vsel %vm1126, %v2780, %v2782
      %v2784 = vrot.slane %v1304, 1
      %v2785 = vsel %vm1126, %v2782, %v2784
      %v2786 = vrot.slane %v1305, 1
      %v2787 = vsel %vm1126, %v2784, %v2786
      %v2788 = vrot.slane %v1306, 1
      %v2789 = vsel %vm1126, %v2786, %v2788
      %v2790 = vrot.slane %v1307, 1
      %v2791 = vsel %vm1126, %v2788, %v2790
      %v2792 = vrot.slane %v1308, 1
      %v2793 = vsel %vm1126, %v2790, %v2792
      %v2794 = vrot.slane %v1309, 1
      %v2795 = vsel %vm1126, %v2792, %v2794
      %v2796 = vrot.slane %v1310, 1
      %v2797 = vsel %vm1126, %v2794, %v2796
      %v2798 = vrot.slane %v1311, 1
      %v2799 = vsel %vm1126, %v2796, %v2798
      %v2800 = vrot.slane %v1312, 1
      %v2801 = vsel %vm1126, %v2798, %v2800
      %v2802 = vrot.slane %v1313, 1
      %v2803 = vsel %vm1126, %v2800, %v2802
      %v2804 = vrot.slane %v1314, 1
      %v2805 = vsel %vm1126, %v2802, %v2804
      %v2806 = vrot.slane %v1315, 1
      %v2807 = vsel %vm1126, %v2804, %v2806
      %v2808 = vsel %vm1336, %v2759, 0
      %v2810 = vsel %vm1336, %v2761, 0
      %v2812 = vsel %vm1336, %v2763, 0
      %v2814 = vsel %vm1336, %v2765, 0
      %v2816 = vsel %vm1336, %v2767, 0
      %v2818 = vsel %vm1336, %v2769, 0
      %v2820 = vsel %vm1336, %v2771, 0
      %v2822 = vsel %vm1336, %v2773, 0
      %v2824 = vsel %vm1336, %v2775, 0
      %v2826 = vsel %vm1336, %v2777, 0
      %v2828 = vsel %vm1336, %v2779, 0
      %v2830 = vsel %vm1336, %v2781, 0
      %v2832 = vsel %vm1336, %v2783, 0
      %v2834 = vsel %vm1336, %v2785, 0
      %v2836 = vsel %vm1336, %v2787, 0
      %v2838 = vsel %vm1336, %v2789, 0
      %v2840 = vsel %vm1336, %v2791, 0
      %v2842 = vsel %vm1336, %v2793, 0
      %v2844 = vsel %vm1336, %v2795, 0
      %v2846 = vsel %vm1336, %v2797, 0
      %v2848 = vsel %vm1336, %v2799, 0
      %v2850 = vsel %vm1336, %v2801, 0
      %v2852 = vsel %vm1336, %v2803, 0
      %v2854 = vsel %vm1336, %v2805, 0
      %v2856 = vsel %vm1336, %v2807, 0
      %2858 = vmatprep.subr.mxu0 0.0
      %2859 = vmatpush1.msra.mxu0 0.0
      %2860 = vmatprep.subr.mxu0 0.0
      %2861 = vmatpush1.msra.mxu0 0.0
      %2862 = vmatprep.subr.mxu0 0.0
      %2863 = vmatpush1.msra.mxu0 0.0
      %2864 = vmatprep.subr.mxu0 0.0
      %2865 = vmatpush1.msra.mxu0 0.0
      %2866 = vmatprep.subr.mxu0 0.0
      %2867 = vmatpush1.msra.mxu0 0.0
      %2868 = vmatprep.subr.mxu0 0.0
      %2869 = vmatpush1.msra.mxu0 0.0
      %2870 = vmatprep.subr.mxu0 0.0
      %2871 = vmatpush1.msra.mxu0 0.0
      %2872 = vmatprep.subr.mxu0 0.0
      %2873 = vmatpush1.msra.mxu0 0.0
      %2874 = vmatprep.subr.mxu0 0.0
      %2875 = vmatpush1.msra.mxu0 %v2752
      %2876 = vmatprep.subr.mxu0 0.0
      %2877 = vmatpush1.msra.mxu0 %v2751
      %2878 = vmatprep.subr.mxu0 0.0
      %2879 = vmatpush1.msra.mxu0 %v2750
      %2880 = vmatprep.subr.mxu0 0.0
      %2881 = vmatpush1.msra.mxu0 %v2749
      %2882 = vmatprep.subr.mxu0 0.0
      %2883 = vmatpush1.msra.mxu0 %v2748
      %2884 = vmatprep.subr.mxu0 0.0
      %2885 = vmatpush1.msra.mxu0 %v2747
      %2886 = vmatprep.subr.mxu0 0.0
      %2887 = vmatpush1.msra.mxu0 %v2746
      %2888 = vmatprep.subr.mxu0 0.0
      %2889 = vmatpush1.msra.mxu0 %v2745
      %2890 = vmatprep.subr.mxu0 0.0
      %2891 = vmatpush2.msra.mxu0 0.0
      %2892 = vmatprep.subr.mxu0 0.0
      %2893 = vmatpush2.msra.mxu0 0.0
      %2894 = vmatprep.subr.mxu0 0.0
      %2895 = vmatpush2.msra.mxu0 0.0
      %2896 = vmatprep.subr.mxu0 0.0
      %2897 = vmatpush2.msra.mxu0 0.0
      %2898 = vmatprep.subr.mxu0 0.0
      %2899 = vmatpush2.msra.mxu0 0.0
      %2900 = vmatprep.subr.mxu0 0.0
      %2901 = vmatpush2.msra.mxu0 0.0
      %2902 = vmatprep.subr.mxu0 0.0
      %2903 = vmatpush2.msra.mxu0 0.0
      %2904 = vmatprep.subr.mxu0 0.0
      %2905 = vmatpush2.msra.mxu0 0.0
      %2906 = vmatprep.subr.mxu0 0.0
      %2907 = vmatpush2.msra.mxu0 0.0
      %2908 = vmatprep.subr.mxu0 0.0
      %2909 = vmatpush2.msra.mxu0 0.0
      %2910 = vmatprep.subr.mxu0 0.0
      %2911 = vmatpush2.msra.mxu0 0.0
      %2912 = vmatprep.subr.mxu0 0.0
      %2913 = vmatpush2.msra.mxu0 0.0
      %2914 = vmatprep.subr.mxu0 0.0
      %2915 = vmatpush2.msra.mxu0 0.0
      %2916 = vmatprep.subr.mxu0 0.0
      %2917 = vmatpush2.msra.mxu0 0.0
      %2918 = vmatprep.subr.mxu0 0.0
      %2919 = vmatpush2.msra.mxu0 0.0
      %2920 = vmatprep.subr.mxu0 0.0
      %2921 = vmatpush2.msra.mxu0 0.0
      %2922 = vmatprep.mubr.f32.mxu0 0.0
      %2923 = vmatmul.mubr.f32.gmra.mxu0 %v2808
      %v2924 = vpop.f32.mrf.mxu0
      %v2925 = vadd.f32 0.0, %v2924
      %v2926 = vpop.f32.mrf.mxu0
      %2927 = vmatprep.mubr.f32.mxu0 0.0
      %2928 = vmatmul.mubr.f32.gmra.mxu0 %v2810
      %v2929 = vpop.f32.mrf.mxu0
      %v2930 = vadd.f32 0.0, %v2929
      %v2931 = vpop.f32.mrf.mxu0
      %2932 = vmatprep.mubr.f32.mxu0 0.0
      %2933 = vmatmul.mubr.f32.gmra.mxu0 %v2812
      %v2934 = vpop.f32.mrf.mxu0
      %v2935 = vadd.f32 0.0, %v2934
      %v2936 = vpop.f32.mrf.mxu0
      %2937 = vmatprep.mubr.f32.mxu0 0.0
      %2938 = vmatmul.mubr.f32.gmra.mxu0 %v2814
      %v2939 = vpop.f32.mrf.mxu0
      %v2940 = vadd.f32 0.0, %v2939
      %v2941 = vpop.f32.mrf.mxu0
      %2942 = vmatprep.mubr.f32.mxu0 0.0
      %2943 = vmatmul.mubr.f32.gmra.mxu0 %v2816
      %v2944 = vpop.f32.mrf.mxu0
      %v2945 = vadd.f32 0.0, %v2944
      %v2946 = vpop.f32.mrf.mxu0
      %2947 = vmatprep.mubr.f32.mxu0 0.0
      %2948 = vmatmul.mubr.f32.gmra.mxu0 %v2818
      %v2949 = vpop.f32.mrf.mxu0
      %v2950 = vadd.f32 0.0, %v2949
      %v2951 = vpop.f32.mrf.mxu0
      %2952 = vmatprep.mubr.f32.mxu0 0.0
      %2953 = vmatmul.mubr.f32.gmra.mxu0 %v2820
      %v2954 = vpop.f32.mrf.mxu0
      %v2955 = vadd.f32 0.0, %v2954
      %v2956 = vpop.f32.mrf.mxu0
      %2957 = vmatprep.mubr.f32.mxu0 0.0
      %2958 = vmatmul.mubr.f32.gmra.mxu0 %v2822
      %v2959 = vpop.f32.mrf.mxu0
      %v2960 = vadd.f32 0.0, %v2959
      %v2961 = vpop.f32.mrf.mxu0
      %2962 = vmatprep.mubr.f32.mxu0 0.0
      %2963 = vmatmul.mubr.f32.gmra.mxu0 %v2824
      %v2964 = vpop.f32.mrf.mxu0
      %v2965 = vadd.f32 0.0, %v2964
      %v2966 = vpop.f32.mrf.mxu0
      %2967 = vmatprep.mubr.f32.mxu0 0.0
      %2968 = vmatmul.mubr.f32.gmra.mxu0 %v2826
      %v2969 = vpop.f32.mrf.mxu0
      %v2970 = vadd.f32 0.0, %v2969
      %v2971 = vpop.f32.mrf.mxu0
      %2972 = vmatprep.mubr.f32.mxu0 0.0
      %2973 = vmatmul.mubr.f32.gmra.mxu0 %v2828
      %v2974 = vpop.f32.mrf.mxu0
      %v2975 = vadd.f32 0.0, %v2974
      %v2976 = vpop.f32.mrf.mxu0
      %2977 = vmatprep.mubr.f32.mxu0 0.0
      %2978 = vmatmul.mubr.f32.gmra.mxu0 %v2830
      %v2979 = vpop.f32.mrf.mxu0
      %v2980 = vadd.f32 0.0, %v2979
      %v2981 = vpop.f32.mrf.mxu0
      %2982 = vmatprep.mubr.f32.mxu0 0.0
      %2983 = vmatmul.mubr.f32.gmra.mxu0 %v2832
      %v2984 = vpop.f32.mrf.mxu0
      %v2985 = vadd.f32 0.0, %v2984
      %v2986 = vpop.f32.mrf.mxu0
      %2987 = vmatprep.mubr.f32.mxu0 0.0
      %2988 = vmatmul.mubr.f32.gmra.mxu0 %v2834
      %v2989 = vpop.f32.mrf.mxu0
      %v2990 = vadd.f32 0.0, %v2989
      %v2991 = vpop.f32.mrf.mxu0
      %2992 = vmatprep.mubr.f32.mxu0 0.0
      %2993 = vmatmul.mubr.f32.gmra.mxu0 %v2836
      %v2994 = vpop.f32.mrf.mxu0
      %v2995 = vadd.f32 0.0, %v2994
      %v2996 = vpop.f32.mrf.mxu0
      %2997 = vmatprep.mubr.f32.mxu0 0.0
      %2998 = vmatmul.mubr.f32.gmra.mxu0 %v2838
      %v2999 = vpop.f32.mrf.mxu0
      %v3000 = vadd.f32 0.0, %v2999
      %v3001 = vpop.f32.mrf.mxu0
      %3002 = vmatprep.mubr.f32.mxu0 0.0
      %3003 = vmatmul.mubr.f32.gmra.mxu0 %v2840
      %v3004 = vpop.f32.mrf.mxu0
      %v3005 = vadd.f32 0.0, %v3004
      %v3006 = vpop.f32.mrf.mxu0
      %3007 = vmatprep.mubr.f32.mxu0 0.0
      %3008 = vmatmul.mubr.f32.gmra.mxu0 %v2842
      %v3009 = vpop.f32.mrf.mxu0
      %v3010 = vadd.f32 0.0, %v3009
      %v3011 = vpop.f32.mrf.mxu0
      %3012 = vmatprep.mubr.f32.mxu0 0.0
      %3013 = vmatmul.mubr.f32.gmra.mxu0 %v2844
      %v3014 = vpop.f32.mrf.mxu0
      %v3015 = vadd.f32 0.0, %v3014
      %v3016 = vpop.f32.mrf.mxu0
      %3017 = vmatprep.mubr.f32.mxu0 0.0
      %3018 = vmatmul.mubr.f32.gmra.mxu0 %v2846
      %v3019 = vpop.f32.mrf.mxu0
      %v3020 = vadd.f32 0.0, %v3019
      %v3021 = vpop.f32.mrf.mxu0
      %3022 = vmatprep.mubr.f32.mxu0 0.0
      %3023 = vmatmul.mubr.f32.gmra.mxu0 %v2848
      %v3024 = vpop.f32.mrf.mxu0
      %v3025 = vadd.f32 0.0, %v3024
      %v3026 = vpop.f32.mrf.mxu0
      %3027 = vmatprep.mubr.f32.mxu0 0.0
      %3028 = vmatmul.mubr.f32.gmra.mxu0 %v2850
      %v3029 = vpop.f32.mrf.mxu0
      %v3030 = vadd.f32 0.0, %v3029
      %v3031 = vpop.f32.mrf.mxu0
      %3032 = vmatprep.mubr.f32.mxu0 0.0
      %3033 = vmatmul.mubr.f32.gmra.mxu0 %v2852
      %v3034 = vpop.f32.mrf.mxu0
      %v3035 = vadd.f32 0.0, %v3034
      %v3036 = vpop.f32.mrf.mxu0
      %3037 = vmatprep.mubr.f32.mxu0 0.0
      %3038 = vmatmul.mubr.f32.gmra.mxu0 %v2854
      %v3039 = vpop.f32.mrf.mxu0
      %v3040 = vadd.f32 0.0, %v3039
      %v3041 = vpop.f32.mrf.mxu0
      %3042 = vmatprep.mubr.f32.mxu0 0.0
      %3043 = vmatmul.mubr.f32.gmra.mxu0 %v2856
      %v3044 = vpop.f32.mrf.mxu0
      %v3045 = vadd.f32 0.0, %v3044
      %v3046 = vpop.f32.mrf.mxu0
      %3047 = vdwg.mxu0
      %v3048 = vadd.f32 %v2719, %v2925
      %v3049 = vadd.f32 %v2720, %v2930
      %v3050 = vadd.f32 %v2721, %v2935
      %v3051 = vadd.f32 %v2722, %v2940
      %v3052 = vadd.f32 %v2723, %v2945
      %v3053 = vadd.f32 %v2724, %v2950
      %v3054 = vadd.f32 %v2725, %v2955
      %v3055 = vadd.f32 %v2726, %v2960
      %v3056 = vadd.f32 %v2727, %v2965
      %v3057 = vadd.f32 %v2728, %v2970
      %v3058 = vadd.f32 %v2729, %v2975
      %v3059 = vadd.f32 %v2730, %v2980
      %v3060 = vadd.f32 %v2731, %v2985
      %v3061 = vadd.f32 %v2732, %v2990
      %v3062 = vadd.f32 %v2733, %v2995
      %v3063 = vadd.f32 %v2734, %v3000
      %v3064 = vadd.f32 %v2735, %v3005
      %v3065 = vadd.f32 %v2736, %v3010
      %v3066 = vadd.f32 %v2737, %v3015
      %v3067 = vadd.f32 %v2738, %v3020
      %v3068 = vadd.f32 %v2739, %v3025
      %v3069 = vadd.f32 %v2740, %v3030
      %v3070 = vadd.f32 %v2741, %v3035
      %v3071 = vadd.f32 %v2742, %v3040
      %v3072 = vadd.f32 %v2743, %v3045
      %s3073 = scalar_lea.vmem %s1, 384
      %v3074 = vld [vmem:[%s3073] sm:$0xff]
      %v3075 = vld [vmem:[%s3073 + $0x8] sm:$0xff]
      %v3076 = vld [vmem:[%s3073 + $0x10] sm:$0xff]
      %v3077 = vld [vmem:[%s3073 + $0x18] sm:$0xff]
      %v3078 = vld [vmem:[%s3073 + $0x20] sm:$0xff]
      %v3079 = vld [vmem:[%s3073 + $0x28] sm:$0xff]
      %v3080 = vld [vmem:[%s3073 + $0x30] sm:$0xff]
      %v3081 = vld [vmem:[%s3073 + $0x38] sm:$0xff]
      %vm3085 = vcmask 1045504
      %v3086 = vrot.slane %v1068, 2
      %v3087 = vrot.slane %v1069, 2
      %v3088 = vsel %vm3085, %v3086, %v3087
      %v3089 = vrot.slane %v1070, 2
      %v3090 = vsel %vm3085, %v3087, %v3089
      %v3091 = vrot.slane %v1071, 2
      %v3092 = vsel %vm3085, %v3089, %v3091
      %v3093 = vrot.slane %v1072, 2
      %v3094 = vsel %vm3085, %v3091, %v3093
      %v3095 = vrot.slane %v1073, 2
      %v3096 = vsel %vm3085, %v3093, %v3095
      %v3097 = vrot.slane %v1074, 2
      %v3098 = vsel %vm3085, %v3095, %v3097
      %v3099 = vrot.slane %v1075, 2
      %v3100 = vsel %vm3085, %v3097, %v3099
      %v3101 = vrot.slane %v1076, 2
      %v3102 = vsel %vm3085, %v3099, %v3101
      %v3103 = vrot.slane %v1077, 2
      %v3104 = vsel %vm3085, %v3101, %v3103
      %v3105 = vrot.slane %v1078, 2
      %v3106 = vsel %vm3085, %v3103, %v3105
      %v3107 = vrot.slane %v1079, 2
      %v3108 = vsel %vm3085, %v3105, %v3107
      %v3109 = vrot.slane %v1080, 2
      %v3110 = vsel %vm3085, %v3107, %v3109
      %v3111 = vrot.slane %v1081, 2
      %v3112 = vsel %vm3085, %v3109, %v3111
      %v3113 = vrot.slane %v1082, 2
      %v3114 = vsel %vm3085, %v3111, %v3113
      %v3115 = vrot.slane %v1083, 2
      %v3116 = vsel %vm3085, %v3113, %v3115
      %v3117 = vrot.slane %v1084, 2
      %v3118 = vsel %vm3085, %v3115, %v3117
      %v3119 = vrot.slane %v1085, 2
      %v3120 = vsel %vm3085, %v3117, %v3119
      %v3121 = vrot.slane %v1086, 2
      %v3122 = vsel %vm3085, %v3119, %v3121
      %v3123 = vrot.slane %v1087, 2
      %v3124 = vsel %vm3085, %v3121, %v3123
      %v3125 = vrot.slane %v1088, 2
      %v3126 = vsel %vm3085, %v3123, %v3125
      %v3127 = vrot.slane %v1089, 2
      %v3128 = vsel %vm3085, %v3125, %v3127
      %v3129 = vrot.slane %v1090, 2
      %v3130 = vsel %vm3085, %v3127, %v3129
      %v3131 = vrot.slane %v1091, 2
      %v3132 = vsel %vm3085, %v3129, %v3131
      %v3133 = vrot.slane %v1092, 2
      %v3134 = vsel %vm3085, %v3131, %v3133
      %v3135 = vrot.slane %v1093, 2
      %v3136 = vsel %vm3085, %v3133, %v3135
      %v3137 = vsel %vm1336, %v3088, 0
      %v3139 = vsel %vm1336, %v3090, 0
      %v3141 = vsel %vm1336, %v3092, 0
      %v3143 = vsel %vm1336, %v3094, 0
      %v3145 = vsel %vm1336, %v3096, 0
      %v3147 = vsel %vm1336, %v3098, 0
      %v3149 = vsel %vm1336, %v3100, 0
      %v3151 = vsel %vm1336, %v3102, 0
      %v3153 = vsel %vm1336, %v3104, 0
      %v3155 = vsel %vm1336, %v3106, 0
      %v3157 = vsel %vm1336, %v3108, 0
      %v3159 = vsel %vm1336, %v3110, 0
      %v3161 = vsel %vm1336, %v3112, 0
      %v3163 = vsel %vm1336, %v3114, 0
      %v3165 = vsel %vm1336, %v3116, 0
      %v3167 = vsel %vm1336, %v3118, 0
      %v3169 = vsel %vm1336, %v3120, 0
      %v3171 = vsel %vm1336, %v3122, 0
      %v3173 = vsel %vm1336, %v3124, 0
      %v3175 = vsel %vm1336, %v3126, 0
      %v3177 = vsel %vm1336, %v3128, 0
      %v3179 = vsel %vm1336, %v3130, 0
      %v3181 = vsel %vm1336, %v3132, 0
      %v3183 = vsel %vm1336, %v3134, 0
      %v3185 = vsel %vm1336, %v3136, 0
      %3187 = vmatprep.subr.mxu0 0.0
      %3188 = vmatpush1.msra.mxu0 0.0
      %3189 = vmatprep.subr.mxu0 0.0
      %3190 = vmatpush1.msra.mxu0 0.0
      %3191 = vmatprep.subr.mxu0 0.0
      %3192 = vmatpush1.msra.mxu0 0.0
      %3193 = vmatprep.subr.mxu0 0.0
      %3194 = vmatpush1.msra.mxu0 0.0
      %3195 = vmatprep.subr.mxu0 0.0
      %3196 = vmatpush1.msra.mxu0 0.0
      %3197 = vmatprep.subr.mxu0 0.0
      %3198 = vmatpush1.msra.mxu0 0.0
      %3199 = vmatprep.subr.mxu0 0.0
      %3200 = vmatpush1.msra.mxu0 0.0
      %3201 = vmatprep.subr.mxu0 0.0
      %3202 = vmatpush1.msra.mxu0 0.0
      %3203 = vmatprep.subr.mxu0 0.0
      %3204 = vmatpush1.msra.mxu0 %v3081
      %3205 = vmatprep.subr.mxu0 0.0
      %3206 = vmatpush1.msra.mxu0 %v3080
      %3207 = vmatprep.subr.mxu0 0.0
      %3208 = vmatpush1.msra.mxu0 %v3079
      %3209 = vmatprep.subr.mxu0 0.0
      %3210 = vmatpush1.msra.mxu0 %v3078
      %3211 = vmatprep.subr.mxu0 0.0
      %3212 = vmatpush1.msra.mxu0 %v3077
      %3213 = vmatprep.subr.mxu0 0.0
      %3214 = vmatpush1.msra.mxu0 %v3076
      %3215 = vmatprep.subr.mxu0 0.0
      %3216 = vmatpush1.msra.mxu0 %v3075
      %3217 = vmatprep.subr.mxu0 0.0
      %3218 = vmatpush1.msra.mxu0 %v3074
      %3219 = vmatprep.subr.mxu0 0.0
      %3220 = vmatpush2.msra.mxu0 0.0
      %3221 = vmatprep.subr.mxu0 0.0
      %3222 = vmatpush2.msra.mxu0 0.0
      %3223 = vmatprep.subr.mxu0 0.0
      %3224 = vmatpush2.msra.mxu0 0.0
      %3225 = vmatprep.subr.mxu0 0.0
      %3226 = vmatpush2.msra.mxu0 0.0
      %3227 = vmatprep.subr.mxu0 0.0
      %3228 = vmatpush2.msra.mxu0 0.0
      %3229 = vmatprep.subr.mxu0 0.0
      %3230 = vmatpush2.msra.mxu0 0.0
      %3231 = vmatprep.subr.mxu0 0.0
      %3232 = vmatpush2.msra.mxu0 0.0
      %3233 = vmatprep.subr.mxu0 0.0
      %3234 = vmatpush2.msra.mxu0 0.0
      %3235 = vmatprep.subr.mxu0 0.0
      %3236 = vmatpush2.msra.mxu0 0.0
      %3237 = vmatprep.subr.mxu0 0.0
      %3238 = vmatpush2.msra.mxu0 0.0
      %3239 = vmatprep.subr.mxu0 0.0
      %3240 = vmatpush2.msra.mxu0 0.0
      %3241 = vmatprep.subr.mxu0 0.0
      %3242 = vmatpush2.msra.mxu0 0.0
      %3243 = vmatprep.subr.mxu0 0.0
      %3244 = vmatpush2.msra.mxu0 0.0
      %3245 = vmatprep.subr.mxu0 0.0
      %3246 = vmatpush2.msra.mxu0 0.0
      %3247 = vmatprep.subr.mxu0 0.0
      %3248 = vmatpush2.msra.mxu0 0.0
      %3249 = vmatprep.subr.mxu0 0.0
      %3250 = vmatpush2.msra.mxu0 0.0
      %3251 = vmatprep.mubr.f32.mxu0 0.0
      %3252 = vmatmul.mubr.f32.gmra.mxu0 %v3137
      %v3253 = vpop.f32.mrf.mxu0
      %v3254 = vadd.f32 0.0, %v3253
      %v3255 = vpop.f32.mrf.mxu0
      %3256 = vmatprep.mubr.f32.mxu0 0.0
      %3257 = vmatmul.mubr.f32.gmra.mxu0 %v3139
      %v3258 = vpop.f32.mrf.mxu0
      %v3259 = vadd.f32 0.0, %v3258
      %v3260 = vpop.f32.mrf.mxu0
      %3261 = vmatprep.mubr.f32.mxu0 0.0
      %3262 = vmatmul.mubr.f32.gmra.mxu0 %v3141
      %v3263 = vpop.f32.mrf.mxu0
      %v3264 = vadd.f32 0.0, %v3263
      %v3265 = vpop.f32.mrf.mxu0
      %3266 = vmatprep.mubr.f32.mxu0 0.0
      %3267 = vmatmul.mubr.f32.gmra.mxu0 %v3143
      %v3268 = vpop.f32.mrf.mxu0
      %v3269 = vadd.f32 0.0, %v3268
      %v3270 = vpop.f32.mrf.mxu0
      %3271 = vmatprep.mubr.f32.mxu0 0.0
      %3272 = vmatmul.mubr.f32.gmra.mxu0 %v3145
      %v3273 = vpop.f32.mrf.mxu0
      %v3274 = vadd.f32 0.0, %v3273
      %v3275 = vpop.f32.mrf.mxu0
      %3276 = vmatprep.mubr.f32.mxu0 0.0
      %3277 = vmatmul.mubr.f32.gmra.mxu0 %v3147
      %v3278 = vpop.f32.mrf.mxu0
      %v3279 = vadd.f32 0.0, %v3278
      %v3280 = vpop.f32.mrf.mxu0
      %3281 = vmatprep.mubr.f32.mxu0 0.0
      %3282 = vmatmul.mubr.f32.gmra.mxu0 %v3149
      %v3283 = vpop.f32.mrf.mxu0
      %v3284 = vadd.f32 0.0, %v3283
      %v3285 = vpop.f32.mrf.mxu0
      %3286 = vmatprep.mubr.f32.mxu0 0.0
      %3287 = vmatmul.mubr.f32.gmra.mxu0 %v3151
      %v3288 = vpop.f32.mrf.mxu0
      %v3289 = vadd.f32 0.0, %v3288
      %v3290 = vpop.f32.mrf.mxu0
      %3291 = vmatprep.mubr.f32.mxu0 0.0
      %3292 = vmatmul.mubr.f32.gmra.mxu0 %v3153
      %v3293 = vpop.f32.mrf.mxu0
      %v3294 = vadd.f32 0.0, %v3293
      %v3295 = vpop.f32.mrf.mxu0
      %3296 = vmatprep.mubr.f32.mxu0 0.0
      %3297 = vmatmul.mubr.f32.gmra.mxu0 %v3155
      %v3298 = vpop.f32.mrf.mxu0
      %v3299 = vadd.f32 0.0, %v3298
      %v3300 = vpop.f32.mrf.mxu0
      %3301 = vmatprep.mubr.f32.mxu0 0.0
      %3302 = vmatmul.mubr.f32.gmra.mxu0 %v3157
      %v3303 = vpop.f32.mrf.mxu0
      %v3304 = vadd.f32 0.0, %v3303
      %v3305 = vpop.f32.mrf.mxu0
      %3306 = vmatprep.mubr.f32.mxu0 0.0
      %3307 = vmatmul.mubr.f32.gmra.mxu0 %v3159
      %v3308 = vpop.f32.mrf.mxu0
      %v3309 = vadd.f32 0.0, %v3308
      %v3310 = vpop.f32.mrf.mxu0
      %3311 = vmatprep.mubr.f32.mxu0 0.0
      %3312 = vmatmul.mubr.f32.gmra.mxu0 %v3161
      %v3313 = vpop.f32.mrf.mxu0
      %v3314 = vadd.f32 0.0, %v3313
      %v3315 = vpop.f32.mrf.mxu0
      %3316 = vmatprep.mubr.f32.mxu0 0.0
      %3317 = vmatmul.mubr.f32.gmra.mxu0 %v3163
      %v3318 = vpop.f32.mrf.mxu0
      %v3319 = vadd.f32 0.0, %v3318
      %v3320 = vpop.f32.mrf.mxu0
      %3321 = vmatprep.mubr.f32.mxu0 0.0
      %3322 = vmatmul.mubr.f32.gmra.mxu0 %v3165
      %v3323 = vpop.f32.mrf.mxu0
      %v3324 = vadd.f32 0.0, %v3323
      %v3325 = vpop.f32.mrf.mxu0
      %3326 = vmatprep.mubr.f32.mxu0 0.0
      %3327 = vmatmul.mubr.f32.gmra.mxu0 %v3167
      %v3328 = vpop.f32.mrf.mxu0
      %v3329 = vadd.f32 0.0, %v3328
      %v3330 = vpop.f32.mrf.mxu0
      %3331 = vmatprep.mubr.f32.mxu0 0.0
      %3332 = vmatmul.mubr.f32.gmra.mxu0 %v3169
      %v3333 = vpop.f32.mrf.mxu0
      %v3334 = vadd.f32 0.0, %v3333
      %v3335 = vpop.f32.mrf.mxu0
      %3336 = vmatprep.mubr.f32.mxu0 0.0
      %3337 = vmatmul.mubr.f32.gmra.mxu0 %v3171
      %v3338 = vpop.f32.mrf.mxu0
      %v3339 = vadd.f32 0.0, %v3338
      %v3340 = vpop.f32.mrf.mxu0
      %3341 = vmatprep.mubr.f32.mxu0 0.0
      %3342 = vmatmul.mubr.f32.gmra.mxu0 %v3173
      %v3343 = vpop.f32.mrf.mxu0
      %v3344 = vadd.f32 0.0, %v3343
      %v3345 = vpop.f32.mrf.mxu0
      %3346 = vmatprep.mubr.f32.mxu0 0.0
      %3347 = vmatmul.mubr.f32.gmra.mxu0 %v3175
      %v3348 = vpop.f32.mrf.mxu0
      %v3349 = vadd.f32 0.0, %v3348
      %v3350 = vpop.f32.mrf.mxu0
      %3351 = vmatprep.mubr.f32.mxu0 0.0
      %3352 = vmatmul.mubr.f32.gmra.mxu0 %v3177
      %v3353 = vpop.f32.mrf.mxu0
      %v3354 = vadd.f32 0.0, %v3353
      %v3355 = vpop.f32.mrf.mxu0
      %3356 = vmatprep.mubr.f32.mxu0 0.0
      %3357 = vmatmul.mubr.f32.gmra.mxu0 %v3179
      %v3358 = vpop.f32.mrf.mxu0
      %v3359 = vadd.f32 0.0, %v3358
      %v3360 = vpop.f32.mrf.mxu0
      %3361 = vmatprep.mubr.f32.mxu0 0.0
      %3362 = vmatmul.mubr.f32.gmra.mxu0 %v3181
      %v3363 = vpop.f32.mrf.mxu0
      %v3364 = vadd.f32 0.0, %v3363
      %v3365 = vpop.f32.mrf.mxu0
      %3366 = vmatprep.mubr.f32.mxu0 0.0
      %3367 = vmatmul.mubr.f32.gmra.mxu0 %v3183
      %v3368 = vpop.f32.mrf.mxu0
      %v3369 = vadd.f32 0.0, %v3368
      %v3370 = vpop.f32.mrf.mxu0
      %3371 = vmatprep.mubr.f32.mxu0 0.0
      %3372 = vmatmul.mubr.f32.gmra.mxu0 %v3185
      %v3373 = vpop.f32.mrf.mxu0
      %v3374 = vadd.f32 0.0, %v3373
      %v3375 = vpop.f32.mrf.mxu0
      %3376 = vdwg.mxu0
      %v3377 = vadd.f32 %v3048, %v3254
      %v3378 = vadd.f32 %v3049, %v3259
      %v3379 = vadd.f32 %v3050, %v3264
      %v3380 = vadd.f32 %v3051, %v3269
      %v3381 = vadd.f32 %v3052, %v3274
      %v3382 = vadd.f32 %v3053, %v3279
      %v3383 = vadd.f32 %v3054, %v3284
      %v3384 = vadd.f32 %v3055, %v3289
      %v3385 = vadd.f32 %v3056, %v3294
      %v3386 = vadd.f32 %v3057, %v3299
      %v3387 = vadd.f32 %v3058, %v3304
      %v3388 = vadd.f32 %v3059, %v3309
      %v3389 = vadd.f32 %v3060, %v3314
      %v3390 = vadd.f32 %v3061, %v3319
      %v3391 = vadd.f32 %v3062, %v3324
      %v3392 = vadd.f32 %v3063, %v3329
      %v3393 = vadd.f32 %v3064, %v3334
      %v3394 = vadd.f32 %v3065, %v3339
      %v3395 = vadd.f32 %v3066, %v3344
      %v3396 = vadd.f32 %v3067, %v3349
      %v3397 = vadd.f32 %v3068, %v3354
      %v3398 = vadd.f32 %v3069, %v3359
      %v3399 = vadd.f32 %v3070, %v3364
      %v3400 = vadd.f32 %v3071, %v3369
      %v3401 = vadd.f32 %v3072, %v3374
      %s3402 = scalar_lea.vmem %s1, 448
      %v3403 = vld [vmem:[%s3402] sm:$0xff]
      %v3404 = vld [vmem:[%s3402 + $0x8] sm:$0xff]
      %v3405 = vld [vmem:[%s3402 + $0x10] sm:$0xff]
      %v3406 = vld [vmem:[%s3402 + $0x18] sm:$0xff]
      %v3407 = vld [vmem:[%s3402 + $0x20] sm:$0xff]
      %v3408 = vld [vmem:[%s3402 + $0x28] sm:$0xff]
      %v3409 = vld [vmem:[%s3402 + $0x30] sm:$0xff]
      %v3410 = vld [vmem:[%s3402 + $0x38] sm:$0xff]
      %v3411 = vrot.slane %v266, 2
      %v3412 = vrot.slane %v267, 2
      %v3413 = vsel %vm3085, %v3411, %v3412
      %v3414 = vrot.slane %v268, 2
      %v3415 = vsel %vm3085, %v3412, %v3414
      %v3416 = vrot.slane %v269, 2
      %v3417 = vsel %vm3085, %v3414, %v3416
      %v3418 = vrot.slane %v270, 2
      %v3419 = vsel %vm3085, %v3416, %v3418
      %v3420 = vrot.slane %v271, 2
      %v3421 = vsel %vm3085, %v3418, %v3420
      %v3422 = vrot.slane %v272, 2
      %v3423 = vsel %vm3085, %v3420, %v3422
      %v3424 = vrot.slane %v273, 2
      %v3425 = vsel %vm3085, %v3422, %v3424
      %v3426 = vrot.slane %v274, 2
      %v3427 = vsel %vm3085, %v3424, %v3426
      %v3428 = vrot.slane %v275, 2
      %v3429 = vsel %vm3085, %v3426, %v3428
      %v3430 = vrot.slane %v276, 2
      %v3431 = vsel %vm3085, %v3428, %v3430
      %v3432 = vrot.slane %v277, 2
      %v3433 = vsel %vm3085, %v3430, %v3432
      %v3434 = vrot.slane %v278, 2
      %v3435 = vsel %vm3085, %v3432, %v3434
      %v3436 = vrot.slane %v279, 2
      %v3437 = vsel %vm3085, %v3434, %v3436
      %v3438 = vrot.slane %v280, 2
      %v3439 = vsel %vm3085, %v3436, %v3438
      %v3440 = vrot.slane %v281, 2
      %v3441 = vsel %vm3085, %v3438, %v3440
      %v3442 = vrot.slane %v282, 2
      %v3443 = vsel %vm3085, %v3440, %v3442
      %v3444 = vrot.slane %v283, 2
      %v3445 = vsel %vm3085, %v3442, %v3444
      %v3446 = vrot.slane %v284, 2
      %v3447 = vsel %vm3085, %v3444, %v3446
      %v3448 = vrot.slane %v285, 2
      %v3449 = vsel %vm3085, %v3446, %v3448
      %v3450 = vrot.slane %v286, 2
      %v3451 = vsel %vm3085, %v3448, %v3450
      %v3452 = vrot.slane %v287, 2
      %v3453 = vsel %vm3085, %v3450, %v3452
      %v3454 = vrot.slane %v288, 2
      %v3455 = vsel %vm3085, %v3452, %v3454
      %v3456 = vrot.slane %v289, 2
      %v3457 = vsel %vm3085, %v3454, %v3456
      %v3458 = vrot.slane %v290, 2
      %v3459 = vsel %vm3085, %v3456, %v3458
      %v3460 = vrot.slane %v291, 2
      %v3461 = vsel %vm3085, %v3458, %v3460
      %v3462 = vsel %vm1336, %v3413, 0
      %v3464 = vsel %vm1336, %v3415, 0
      %v3466 = vsel %vm1336, %v3417, 0
      %v3468 = vsel %vm1336, %v3419, 0
      %v3470 = vsel %vm1336, %v3421, 0
      %v3472 = vsel %vm1336, %v3423, 0
      %v3474 = vsel %vm1336, %v3425, 0
      %v3476 = vsel %vm1336, %v3427, 0
      %v3478 = vsel %vm1336, %v3429, 0
      %v3480 = vsel %vm1336, %v3431, 0
      %v3482 = vsel %vm1336, %v3433, 0
      %v3484 = vsel %vm1336, %v3435, 0
      %v3486 = vsel %vm1336, %v3437, 0
      %v3488 = vsel %vm1336, %v3439, 0
      %v3490 = vsel %vm1336, %v3441, 0
      %v3492 = vsel %vm1336, %v3443, 0
      %v3494 = vsel %vm1336, %v3445, 0
      %v3496 = vsel %vm1336, %v3447, 0
      %v3498 = vsel %vm1336, %v3449, 0
      %v3500 = vsel %vm1336, %v3451, 0
      %v3502 = vsel %vm1336, %v3453, 0
      %v3504 = vsel %vm1336, %v3455, 0
      %v3506 = vsel %vm1336, %v3457, 0
      %v3508 = vsel %vm1336, %v3459, 0
      %v3510 = vsel %vm1336, %v3461, 0
      %3512 = vmatprep.subr.mxu0 0.0
      %3513 = vmatpush1.msra.mxu0 0.0
      %3514 = vmatprep.subr.mxu0 0.0
      %3515 = vmatpush1.msra.mxu0 0.0
      %3516 = vmatprep.subr.mxu0 0.0
      %3517 = vmatpush1.msra.mxu0 0.0
      %3518 = vmatprep.subr.mxu0 0.0
      %3519 = vmatpush1.msra.mxu0 0.0
      %3520 = vmatprep.subr.mxu0 0.0
      %3521 = vmatpush1.msra.mxu0 0.0
      %3522 = vmatprep.subr.mxu0 0.0
      %3523 = vmatpush1.msra.mxu0 0.0
      %3524 = vmatprep.subr.mxu0 0.0
      %3525 = vmatpush1.msra.mxu0 0.0
      %3526 = vmatprep.subr.mxu0 0.0
      %3527 = vmatpush1.msra.mxu0 0.0
      %3528 = vmatprep.subr.mxu0 0.0
      %3529 = vmatpush1.msra.mxu0 %v3410
      %3530 = vmatprep.subr.mxu0 0.0
      %3531 = vmatpush1.msra.mxu0 %v3409
      %3532 = vmatprep.subr.mxu0 0.0
      %3533 = vmatpush1.msra.mxu0 %v3408
      %3534 = vmatprep.subr.mxu0 0.0
      %3535 = vmatpush1.msra.mxu0 %v3407
      %3536 = vmatprep.subr.mxu0 0.0
      %3537 = vmatpush1.msra.mxu0 %v3406
      %3538 = vmatprep.subr.mxu0 0.0
      %3539 = vmatpush1.msra.mxu0 %v3405
      %3540 = vmatprep.subr.mxu0 0.0
      %3541 = vmatpush1.msra.mxu0 %v3404
      %3542 = vmatprep.subr.mxu0 0.0
      %3543 = vmatpush1.msra.mxu0 %v3403
      %3544 = vmatprep.subr.mxu0 0.0
      %3545 = vmatpush2.msra.mxu0 0.0
      %3546 = vmatprep.subr.mxu0 0.0
      %3547 = vmatpush2.msra.mxu0 0.0
      %3548 = vmatprep.subr.mxu0 0.0
      %3549 = vmatpush2.msra.mxu0 0.0
      %3550 = vmatprep.subr.mxu0 0.0
      %3551 = vmatpush2.msra.mxu0 0.0
      %3552 = vmatprep.subr.mxu0 0.0
      %3553 = vmatpush2.msra.mxu0 0.0
      %3554 = vmatprep.subr.mxu0 0.0
      %3555 = vmatpush2.msra.mxu0 0.0
      %3556 = vmatprep.subr.mxu0 0.0
      %3557 = vmatpush2.msra.mxu0 0.0
      %3558 = vmatprep.subr.mxu0 0.0
      %3559 = vmatpush2.msra.mxu0 0.0
      %3560 = vmatprep.subr.mxu0 0.0
      %3561 = vmatpush2.msra.mxu0 0.0
      %3562 = vmatprep.subr.mxu0 0.0
      %3563 = vmatpush2.msra.mxu0 0.0
      %3564 = vmatprep.subr.mxu0 0.0
      %3565 = vmatpush2.msra.mxu0 0.0
      %3566 = vmatprep.subr.mxu0 0.0
      %3567 = vmatpush2.msra.mxu0 0.0
      %3568 = vmatprep.subr.mxu0 0.0
      %3569 = vmatpush2.msra.mxu0 0.0
      %3570 = vmatprep.subr.mxu0 0.0
      %3571 = vmatpush2.msra.mxu0 0.0
      %3572 = vmatprep.subr.mxu0 0.0
      %3573 = vmatpush2.msra.mxu0 0.0
      %3574 = vmatprep.subr.mxu0 0.0
      %3575 = vmatpush2.msra.mxu0 0.0
      %3576 = vmatprep.mubr.f32.mxu0 0.0
      %3577 = vmatmul.mubr.f32.gmra.mxu0 %v3462
      %v3578 = vpop.f32.mrf.mxu0
      %v3579 = vadd.f32 0.0, %v3578
      %v3580 = vpop.f32.mrf.mxu0
      %3581 = vmatprep.mubr.f32.mxu0 0.0
      %3582 = vmatmul.mubr.f32.gmra.mxu0 %v3464
      %v3583 = vpop.f32.mrf.mxu0
      %v3584 = vadd.f32 0.0, %v3583
      %v3585 = vpop.f32.mrf.mxu0
      %3586 = vmatprep.mubr.f32.mxu0 0.0
      %3587 = vmatmul.mubr.f32.gmra.mxu0 %v3466
      %v3588 = vpop.f32.mrf.mxu0
      %v3589 = vadd.f32 0.0, %v3588
      %v3590 = vpop.f32.mrf.mxu0
      %3591 = vmatprep.mubr.f32.mxu0 0.0
      %3592 = vmatmul.mubr.f32.gmra.mxu0 %v3468
      %v3593 = vpop.f32.mrf.mxu0
      %v3594 = vadd.f32 0.0, %v3593
      %v3595 = vpop.f32.mrf.mxu0
      %3596 = vmatprep.mubr.f32.mxu0 0.0
      %3597 = vmatmul.mubr.f32.gmra.mxu0 %v3470
      %v3598 = vpop.f32.mrf.mxu0
      %v3599 = vadd.f32 0.0, %v3598
      %v3600 = vpop.f32.mrf.mxu0
      %3601 = vmatprep.mubr.f32.mxu0 0.0
      %3602 = vmatmul.mubr.f32.gmra.mxu0 %v3472
      %v3603 = vpop.f32.mrf.mxu0
      %v3604 = vadd.f32 0.0, %v3603
      %v3605 = vpop.f32.mrf.mxu0
      %3606 = vmatprep.mubr.f32.mxu0 0.0
      %3607 = vmatmul.mubr.f32.gmra.mxu0 %v3474
      %v3608 = vpop.f32.mrf.mxu0
      %v3609 = vadd.f32 0.0, %v3608
      %v3610 = vpop.f32.mrf.mxu0
      %3611 = vmatprep.mubr.f32.mxu0 0.0
      %3612 = vmatmul.mubr.f32.gmra.mxu0 %v3476
      %v3613 = vpop.f32.mrf.mxu0
      %v3614 = vadd.f32 0.0, %v3613
      %v3615 = vpop.f32.mrf.mxu0
      %3616 = vmatprep.mubr.f32.mxu0 0.0
      %3617 = vmatmul.mubr.f32.gmra.mxu0 %v3478
      %v3618 = vpop.f32.mrf.mxu0
      %v3619 = vadd.f32 0.0, %v3618
      %v3620 = vpop.f32.mrf.mxu0
      %3621 = vmatprep.mubr.f32.mxu0 0.0
      %3622 = vmatmul.mubr.f32.gmra.mxu0 %v3480
      %v3623 = vpop.f32.mrf.mxu0
      %v3624 = vadd.f32 0.0, %v3623
      %v3625 = vpop.f32.mrf.mxu0
      %3626 = vmatprep.mubr.f32.mxu0 0.0
      %3627 = vmatmul.mubr.f32.gmra.mxu0 %v3482
      %v3628 = vpop.f32.mrf.mxu0
      %v3629 = vadd.f32 0.0, %v3628
      %v3630 = vpop.f32.mrf.mxu0
      %3631 = vmatprep.mubr.f32.mxu0 0.0
      %3632 = vmatmul.mubr.f32.gmra.mxu0 %v3484
      %v3633 = vpop.f32.mrf.mxu0
      %v3634 = vadd.f32 0.0, %v3633
      %v3635 = vpop.f32.mrf.mxu0
      %3636 = vmatprep.mubr.f32.mxu0 0.0
      %3637 = vmatmul.mubr.f32.gmra.mxu0 %v3486
      %v3638 = vpop.f32.mrf.mxu0
      %v3639 = vadd.f32 0.0, %v3638
      %v3640 = vpop.f32.mrf.mxu0
      %3641 = vmatprep.mubr.f32.mxu0 0.0
      %3642 = vmatmul.mubr.f32.gmra.mxu0 %v3488
      %v3643 = vpop.f32.mrf.mxu0
      %v3644 = vadd.f32 0.0, %v3643
      %v3645 = vpop.f32.mrf.mxu0
      %3646 = vmatprep.mubr.f32.mxu0 0.0
      %3647 = vmatmul.mubr.f32.gmra.mxu0 %v3490
      %v3648 = vpop.f32.mrf.mxu0
      %v3649 = vadd.f32 0.0, %v3648
      %v3650 = vpop.f32.mrf.mxu0
      %3651 = vmatprep.mubr.f32.mxu0 0.0
      %3652 = vmatmul.mubr.f32.gmra.mxu0 %v3492
      %v3653 = vpop.f32.mrf.mxu0
      %v3654 = vadd.f32 0.0, %v3653
      %v3655 = vpop.f32.mrf.mxu0
      %3656 = vmatprep.mubr.f32.mxu0 0.0
      %3657 = vmatmul.mubr.f32.gmra.mxu0 %v3494
      %v3658 = vpop.f32.mrf.mxu0
      %v3659 = vadd.f32 0.0, %v3658
      %v3660 = vpop.f32.mrf.mxu0
      %3661 = vmatprep.mubr.f32.mxu0 0.0
      %3662 = vmatmul.mubr.f32.gmra.mxu0 %v3496
      %v3663 = vpop.f32.mrf.mxu0
      %v3664 = vadd.f32 0.0, %v3663
      %v3665 = vpop.f32.mrf.mxu0
      %3666 = vmatprep.mubr.f32.mxu0 0.0
      %3667 = vmatmul.mubr.f32.gmra.mxu0 %v3498
      %v3668 = vpop.f32.mrf.mxu0
      %v3669 = vadd.f32 0.0, %v3668
      %v3670 = vpop.f32.mrf.mxu0
      %3671 = vmatprep.mubr.f32.mxu0 0.0
      %3672 = vmatmul.mubr.f32.gmra.mxu0 %v3500
      %v3673 = vpop.f32.mrf.mxu0
      %v3674 = vadd.f32 0.0, %v3673
      %v3675 = vpop.f32.mrf.mxu0
      %3676 = vmatprep.mubr.f32.mxu0 0.0
      %3677 = vmatmul.mubr.f32.gmra.mxu0 %v3502
      %v3678 = vpop.f32.mrf.mxu0
      %v3679 = vadd.f32 0.0, %v3678
      %v3680 = vpop.f32.mrf.mxu0
      %3681 = vmatprep.mubr.f32.mxu0 0.0
      %3682 = vmatmul.mubr.f32.gmra.mxu0 %v3504
      %v3683 = vpop.f32.mrf.mxu0
      %v3684 = vadd.f32 0.0, %v3683
      %v3685 = vpop.f32.mrf.mxu0
      %3686 = vmatprep.mubr.f32.mxu0 0.0
      %3687 = vmatmul.mubr.f32.gmra.mxu0 %v3506
      %v3688 = vpop.f32.mrf.mxu0
      %v3689 = vadd.f32 0.0, %v3688
      %v3690 = vpop.f32.mrf.mxu0
      %3691 = vmatprep.mubr.f32.mxu0 0.0
      %3692 = vmatmul.mubr.f32.gmra.mxu0 %v3508
      %v3693 = vpop.f32.mrf.mxu0
      %v3694 = vadd.f32 0.0, %v3693
      %v3695 = vpop.f32.mrf.mxu0
      %3696 = vmatprep.mubr.f32.mxu0 0.0
      %3697 = vmatmul.mubr.f32.gmra.mxu0 %v3510
      %v3698 = vpop.f32.mrf.mxu0
      %v3699 = vadd.f32 0.0, %v3698
      %v3700 = vpop.f32.mrf.mxu0
      %3701 = vdwg.mxu0
      %v3702 = vadd.f32 %v3377, %v3579
      %v3703 = vadd.f32 %v3378, %v3584
      %v3704 = vadd.f32 %v3379, %v3589
      %v3705 = vadd.f32 %v3380, %v3594
      %v3706 = vadd.f32 %v3381, %v3599
      %v3707 = vadd.f32 %v3382, %v3604
      %v3708 = vadd.f32 %v3383, %v3609
      %v3709 = vadd.f32 %v3384, %v3614
      %v3710 = vadd.f32 %v3385, %v3619
      %v3711 = vadd.f32 %v3386, %v3624
      %v3712 = vadd.f32 %v3387, %v3629
      %v3713 = vadd.f32 %v3388, %v3634
      %v3714 = vadd.f32 %v3389, %v3639
      %v3715 = vadd.f32 %v3390, %v3644
      %v3716 = vadd.f32 %v3391, %v3649
      %v3717 = vadd.f32 %v3392, %v3654
      %v3718 = vadd.f32 %v3393, %v3659
      %v3719 = vadd.f32 %v3394, %v3664
      %v3720 = vadd.f32 %v3395, %v3669
      %v3721 = vadd.f32 %v3396, %v3674
      %v3722 = vadd.f32 %v3397, %v3679
      %v3723 = vadd.f32 %v3398, %v3684
      %v3724 = vadd.f32 %v3399, %v3689
      %v3725 = vadd.f32 %v3400, %v3694
      %v3726 = vadd.f32 %v3401, %v3699
      %s3727 = scalar_lea.vmem %s1, 512
      %v3728 = vld [vmem:[%s3727] sm:$0xff]
      %v3729 = vld [vmem:[%s3727 + $0x8] sm:$0xff]
      %v3730 = vld [vmem:[%s3727 + $0x10] sm:$0xff]
      %v3731 = vld [vmem:[%s3727 + $0x18] sm:$0xff]
      %v3732 = vld [vmem:[%s3727 + $0x20] sm:$0xff]
      %v3733 = vld [vmem:[%s3727 + $0x28] sm:$0xff]
      %v3734 = vld [vmem:[%s3727 + $0x30] sm:$0xff]
      %v3735 = vld [vmem:[%s3727 + $0x38] sm:$0xff]
      %v3739 = vrot.slane %v1293, 2
      %v3740 = vrot.slane %v1294, 2
      %v3741 = vsel %vm3085, %v3739, %v3740
      %v3742 = vrot.slane %v1295, 2
      %v3743 = vsel %vm3085, %v3740, %v3742
      %v3744 = vrot.slane %v1296, 2
      %v3745 = vsel %vm3085, %v3742, %v3744
      %v3746 = vrot.slane %v1297, 2
      %v3747 = vsel %vm3085, %v3744, %v3746
      %v3748 = vrot.slane %v1298, 2
      %v3749 = vsel %vm3085, %v3746, %v3748
      %v3750 = vrot.slane %v1299, 2
      %v3751 = vsel %vm3085, %v3748, %v3750
      %v3752 = vrot.slane %v1300, 2
      %v3753 = vsel %vm3085, %v3750, %v3752
      %v3754 = vrot.slane %v1301, 2
      %v3755 = vsel %vm3085, %v3752, %v3754
      %v3756 = vrot.slane %v1302, 2
      %v3757 = vsel %vm3085, %v3754, %v3756
      %v3758 = vrot.slane %v1303, 2
      %v3759 = vsel %vm3085, %v3756, %v3758
      %v3760 = vrot.slane %v1304, 2
      %v3761 = vsel %vm3085, %v3758, %v3760
      %v3762 = vrot.slane %v1305, 2
      %v3763 = vsel %vm3085, %v3760, %v3762
      %v3764 = vrot.slane %v1306, 2
      %v3765 = vsel %vm3085, %v3762, %v3764
      %v3766 = vrot.slane %v1307, 2
      %v3767 = vsel %vm3085, %v3764, %v3766
      %v3768 = vrot.slane %v1308, 2
      %v3769 = vsel %vm3085, %v3766, %v3768
      %v3770 = vrot.slane %v1309, 2
      %v3771 = vsel %vm3085, %v3768, %v3770
      %v3772 = vrot.slane %v1310, 2
      %v3773 = vsel %vm3085, %v3770, %v3772
      %v3774 = vrot.slane %v1311, 2
      %v3775 = vsel %vm3085, %v3772, %v3774
      %v3776 = vrot.slane %v1312, 2
      %v3777 = vsel %vm3085, %v3774, %v3776
      %v3778 = vrot.slane %v1313, 2
      %v3779 = vsel %vm3085, %v3776, %v3778
      %v3780 = vrot.slane %v1314, 2
      %v3781 = vsel %vm3085, %v3778, %v3780
      %v3782 = vrot.slane %v1315, 2
      %v3783 = vsel %vm3085, %v3780, %v3782
      %v3784 = vrot.slane %v1316, 2
      %v3785 = vsel %vm3085, %v3782, %v3784
      %v3786 = vrot.slane %v1317, 2
      %v3787 = vsel %vm3085, %v3784, %v3786
      %v3788 = vrot.slane %v1318, 2
      %v3789 = vsel %vm3085, %v3786, %v3788
      %v3790 = vsel %vm1336, %v3741, 0
      %v3792 = vsel %vm1336, %v3743, 0
      %v3794 = vsel %vm1336, %v3745, 0
      %v3796 = vsel %vm1336, %v3747, 0
      %v3798 = vsel %vm1336, %v3749, 0
      %v3800 = vsel %vm1336, %v3751, 0
      %v3802 = vsel %vm1336, %v3753, 0
      %v3804 = vsel %vm1336, %v3755, 0
      %v3806 = vsel %vm1336, %v3757, 0
      %v3808 = vsel %vm1336, %v3759, 0
      %v3810 = vsel %vm1336, %v3761, 0
      %v3812 = vsel %vm1336, %v3763, 0
      %v3814 = vsel %vm1336, %v3765, 0
      %v3816 = vsel %vm1336, %v3767, 0
      %v3818 = vsel %vm1336, %v3769, 0
      %v3820 = vsel %vm1336, %v3771, 0
      %v3822 = vsel %vm1336, %v3773, 0
      %v3824 = vsel %vm1336, %v3775, 0
      %v3826 = vsel %vm1336, %v3777, 0
      %v3828 = vsel %vm1336, %v3779, 0
      %v3830 = vsel %vm1336, %v3781, 0
      %v3832 = vsel %vm1336, %v3783, 0
      %v3834 = vsel %vm1336, %v3785, 0
      %v3836 = vsel %vm1336, %v3787, 0
      %v3838 = vsel %vm1336, %v3789, 0
      %3840 = vmatprep.subr.mxu0 0.0
      %3841 = vmatpush1.msra.mxu0 0.0
      %3842 = vmatprep.subr.mxu0 0.0
      %3843 = vmatpush1.msra.mxu0 0.0
      %3844 = vmatprep.subr.mxu0 0.0
      %3845 = vmatpush1.msra.mxu0 0.0
      %3846 = vmatprep.subr.mxu0 0.0
      %3847 = vmatpush1.msra.mxu0 0.0
      %3848 = vmatprep.subr.mxu0 0.0
      %3849 = vmatpush1.msra.mxu0 0.0
      %3850 = vmatprep.subr.mxu0 0.0
      %3851 = vmatpush1.msra.mxu0 0.0
      %3852 = vmatprep.subr.mxu0 0.0
      %3853 = vmatpush1.msra.mxu0 0.0
      %3854 = vmatprep.subr.mxu0 0.0
      %3855 = vmatpush1.msra.mxu0 0.0
      %3856 = vmatprep.subr.mxu0 0.0
      %3857 = vmatpush1.msra.mxu0 %v3735
      %3858 = vmatprep.subr.mxu0 0.0
      %3859 = vmatpush1.msra.mxu0 %v3734
      %3860 = vmatprep.subr.mxu0 0.0
      %3861 = vmatpush1.msra.mxu0 %v3733
      %3862 = vmatprep.subr.mxu0 0.0
      %3863 = vmatpush1.msra.mxu0 %v3732
      %3864 = vmatprep.subr.mxu0 0.0
      %3865 = vmatpush1.msra.mxu0 %v3731
      %3866 = vmatprep.subr.mxu0 0.0
      %3867 = vmatpush1.msra.mxu0 %v3730
      %3868 = vmatprep.subr.mxu0 0.0
      %3869 = vmatpush1.msra.mxu0 %v3729
      %3870 = vmatprep.subr.mxu0 0.0
      %3871 = vmatpush1.msra.mxu0 %v3728
      %3872 = vmatprep.subr.mxu0 0.0
      %3873 = vmatpush2.msra.mxu0 0.0
      %3874 = vmatprep.subr.mxu0 0.0
      %3875 = vmatpush2.msra.mxu0 0.0
      %3876 = vmatprep.subr.mxu0 0.0
      %3877 = vmatpush2.msra.mxu0 0.0
      %3878 = vmatprep.subr.mxu0 0.0
      %3879 = vmatpush2.msra.mxu0 0.0
      %3880 = vmatprep.subr.mxu0 0.0
      %3881 = vmatpush2.msra.mxu0 0.0
      %3882 = vmatprep.subr.mxu0 0.0
      %3883 = vmatpush2.msra.mxu0 0.0
      %3884 = vmatprep.subr.mxu0 0.0
      %3885 = vmatpush2.msra.mxu0 0.0
      %3886 = vmatprep.subr.mxu0 0.0
      %3887 = vmatpush2.msra.mxu0 0.0
      %3888 = vmatprep.subr.mxu0 0.0
      %3889 = vmatpush2.msra.mxu0 0.0
      %3890 = vmatprep.subr.mxu0 0.0
      %3891 = vmatpush2.msra.mxu0 0.0
      %3892 = vmatprep.subr.mxu0 0.0
      %3893 = vmatpush2.msra.mxu0 0.0
      %3894 = vmatprep.subr.mxu0 0.0
      %3895 = vmatpush2.msra.mxu0 0.0
      %3896 = vmatprep.subr.mxu0 0.0
      %3897 = vmatpush2.msra.mxu0 0.0
      %3898 = vmatprep.subr.mxu0 0.0
      %3899 = vmatpush2.msra.mxu0 0.0
      %3900 = vmatprep.subr.mxu0 0.0
      %3901 = vmatpush2.msra.mxu0 0.0
      %3902 = vmatprep.subr.mxu0 0.0
      %3903 = vmatpush2.msra.mxu0 0.0
      %3904 = vmatprep.mubr.f32.mxu0 0.0
      %3905 = vmatmul.mubr.f32.gmra.mxu0 %v3790
      %v3906 = vpop.f32.mrf.mxu0
      %v3907 = vadd.f32 0.0, %v3906
      %v3908 = vpop.f32.mrf.mxu0
      %3909 = vmatprep.mubr.f32.mxu0 0.0
      %3910 = vmatmul.mubr.f32.gmra.mxu0 %v3792
      %v3911 = vpop.f32.mrf.mxu0
      %v3912 = vadd.f32 0.0, %v3911
      %v3913 = vpop.f32.mrf.mxu0
      %3914 = vmatprep.mubr.f32.mxu0 0.0
      %3915 = vmatmul.mubr.f32.gmra.mxu0 %v3794
      %v3916 = vpop.f32.mrf.mxu0
      %v3917 = vadd.f32 0.0, %v3916
      %v3918 = vpop.f32.mrf.mxu0
      %3919 = vmatprep.mubr.f32.mxu0 0.0
      %3920 = vmatmul.mubr.f32.gmra.mxu0 %v3796
      %v3921 = vpop.f32.mrf.mxu0
      %v3922 = vadd.f32 0.0, %v3921
      %v3923 = vpop.f32.mrf.mxu0
      %3924 = vmatprep.mubr.f32.mxu0 0.0
      %3925 = vmatmul.mubr.f32.gmra.mxu0 %v3798
      %v3926 = vpop.f32.mrf.mxu0
      %v3927 = vadd.f32 0.0, %v3926
      %v3928 = vpop.f32.mrf.mxu0
      %3929 = vmatprep.mubr.f32.mxu0 0.0
      %3930 = vmatmul.mubr.f32.gmra.mxu0 %v3800
      %v3931 = vpop.f32.mrf.mxu0
      %v3932 = vadd.f32 0.0, %v3931
      %v3933 = vpop.f32.mrf.mxu0
      %3934 = vmatprep.mubr.f32.mxu0 0.0
      %3935 = vmatmul.mubr.f32.gmra.mxu0 %v3802
      %v3936 = vpop.f32.mrf.mxu0
      %v3937 = vadd.f32 0.0, %v3936
      %v3938 = vpop.f32.mrf.mxu0
      %3939 = vmatprep.mubr.f32.mxu0 0.0
      %3940 = vmatmul.mubr.f32.gmra.mxu0 %v3804
      %v3941 = vpop.f32.mrf.mxu0
      %v3942 = vadd.f32 0.0, %v3941
      %v3943 = vpop.f32.mrf.mxu0
      %3944 = vmatprep.mubr.f32.mxu0 0.0
      %3945 = vmatmul.mubr.f32.gmra.mxu0 %v3806
      %v3946 = vpop.f32.mrf.mxu0
      %v3947 = vadd.f32 0.0, %v3946
      %v3948 = vpop.f32.mrf.mxu0
      %3949 = vmatprep.mubr.f32.mxu0 0.0
      %3950 = vmatmul.mubr.f32.gmra.mxu0 %v3808
      %v3951 = vpop.f32.mrf.mxu0
      %v3952 = vadd.f32 0.0, %v3951
      %v3953 = vpop.f32.mrf.mxu0
      %3954 = vmatprep.mubr.f32.mxu0 0.0
      %3955 = vmatmul.mubr.f32.gmra.mxu0 %v3810
      %v3956 = vpop.f32.mrf.mxu0
      %v3957 = vadd.f32 0.0, %v3956
      %v3958 = vpop.f32.mrf.mxu0
      %3959 = vmatprep.mubr.f32.mxu0 0.0
      %3960 = vmatmul.mubr.f32.gmra.mxu0 %v3812
      %v3961 = vpop.f32.mrf.mxu0
      %v3962 = vadd.f32 0.0, %v3961
      %v3963 = vpop.f32.mrf.mxu0
      %3964 = vmatprep.mubr.f32.mxu0 0.0
      %3965 = vmatmul.mubr.f32.gmra.mxu0 %v3814
      %v3966 = vpop.f32.mrf.mxu0
      %v3967 = vadd.f32 0.0, %v3966
      %v3968 = vpop.f32.mrf.mxu0
      %3969 = vmatprep.mubr.f32.mxu0 0.0
      %3970 = vmatmul.mubr.f32.gmra.mxu0 %v3816
      %v3971 = vpop.f32.mrf.mxu0
      %v3972 = vadd.f32 0.0, %v3971
      %v3973 = vpop.f32.mrf.mxu0
      %3974 = vmatprep.mubr.f32.mxu0 0.0
      %3975 = vmatmul.mubr.f32.gmra.mxu0 %v3818
      %v3976 = vpop.f32.mrf.mxu0
      %v3977 = vadd.f32 0.0, %v3976
      %v3978 = vpop.f32.mrf.mxu0
      %3979 = vmatprep.mubr.f32.mxu0 0.0
      %3980 = vmatmul.mubr.f32.gmra.mxu0 %v3820
      %v3981 = vpop.f32.mrf.mxu0
      %v3982 = vadd.f32 0.0, %v3981
      %v3983 = vpop.f32.mrf.mxu0
      %3984 = vmatprep.mubr.f32.mxu0 0.0
      %3985 = vmatmul.mubr.f32.gmra.mxu0 %v3822
      %v3986 = vpop.f32.mrf.mxu0
      %v3987 = vadd.f32 0.0, %v3986
      %v3988 = vpop.f32.mrf.mxu0
      %3989 = vmatprep.mubr.f32.mxu0 0.0
      %3990 = vmatmul.mubr.f32.gmra.mxu0 %v3824
      %v3991 = vpop.f32.mrf.mxu0
      %v3992 = vadd.f32 0.0, %v3991
      %v3993 = vpop.f32.mrf.mxu0
      %3994 = vmatprep.mubr.f32.mxu0 0.0
      %3995 = vmatmul.mubr.f32.gmra.mxu0 %v3826
      %v3996 = vpop.f32.mrf.mxu0
      %v3997 = vadd.f32 0.0, %v3996
      %v3998 = vpop.f32.mrf.mxu0
      %3999 = vmatprep.mubr.f32.mxu0 0.0
      %4000 = vmatmul.mubr.f32.gmra.mxu0 %v3828
      %v4001 = vpop.f32.mrf.mxu0
      %v4002 = vadd.f32 0.0, %v4001
      %v4003 = vpop.f32.mrf.mxu0
      %4004 = vmatprep.mubr.f32.mxu0 0.0
      %4005 = vmatmul.mubr.f32.gmra.mxu0 %v3830
      %v4006 = vpop.f32.mrf.mxu0
      %v4007 = vadd.f32 0.0, %v4006
      %v4008 = vpop.f32.mrf.mxu0
      %4009 = vmatprep.mubr.f32.mxu0 0.0
      %4010 = vmatmul.mubr.f32.gmra.mxu0 %v3832
      %v4011 = vpop.f32.mrf.mxu0
      %v4012 = vadd.f32 0.0, %v4011
      %v4013 = vpop.f32.mrf.mxu0
      %4014 = vmatprep.mubr.f32.mxu0 0.0
      %4015 = vmatmul.mubr.f32.gmra.mxu0 %v3834
      %v4016 = vpop.f32.mrf.mxu0
      %v4017 = vadd.f32 0.0, %v4016
      %v4018 = vpop.f32.mrf.mxu0
      %4019 = vmatprep.mubr.f32.mxu0 0.0
      %4020 = vmatmul.mubr.f32.gmra.mxu0 %v3836
      %v4021 = vpop.f32.mrf.mxu0
      %v4022 = vadd.f32 0.0, %v4021
      %v4023 = vpop.f32.mrf.mxu0
      %4024 = vmatprep.mubr.f32.mxu0 0.0
      %4025 = vmatmul.mubr.f32.gmra.mxu0 %v3838
      %v4026 = vpop.f32.mrf.mxu0
      %v4027 = vadd.f32 0.0, %v4026
      %v4028 = vpop.f32.mrf.mxu0
      %4029 = vdwg.mxu0
      %v4030 = vadd.f32 %v3702, %v3907
      %v4031 = vadd.f32 %v3703, %v3912
      %v4032 = vadd.f32 %v3704, %v3917
      %v4033 = vadd.f32 %v3705, %v3922
      %v4034 = vadd.f32 %v3706, %v3927
      %v4035 = vadd.f32 %v3707, %v3932
      %v4036 = vadd.f32 %v3708, %v3937
      %v4037 = vadd.f32 %v3709, %v3942
      %v4038 = vadd.f32 %v3710, %v3947
      %v4039 = vadd.f32 %v3711, %v3952
      %v4040 = vadd.f32 %v3712, %v3957
      %v4041 = vadd.f32 %v3713, %v3962
      %v4042 = vadd.f32 %v3714, %v3967
      %v4043 = vadd.f32 %v3715, %v3972
      %v4044 = vadd.f32 %v3716, %v3977
      %v4045 = vadd.f32 %v3717, %v3982
      %v4046 = vadd.f32 %v3718, %v3987
      %v4047 = vadd.f32 %v3719, %v3992
      %v4048 = vadd.f32 %v3720, %v3997
      %v4049 = vadd.f32 %v3721, %v4002
      %v4050 = vadd.f32 %v3722, %v4007
      %v4051 = vadd.f32 %v3723, %v4012
      %v4052 = vadd.f32 %v3724, %v4017
      %v4053 = vadd.f32 %v3725, %v4022
      %v4054 = vadd.f32 %v3726, %v4027
      %4055 = vst [vmem:[%s219] sm:$0xff] %v4030
      %4056 = vst [vmem:[%s219 + $0x8] sm:$0xff] %v4031
      %4057 = vst [vmem:[%s219 + $0x10] sm:$0xff] %v4032
      %4058 = vst [vmem:[%s219 + $0x18] sm:$0xff] %v4033
      %4059 = vst [vmem:[%s219 + $0x20] sm:$0xff] %v4034
      %4060 = vst [vmem:[%s219 + $0x28] sm:$0xff] %v4035
      %4061 = vst [vmem:[%s219 + $0x30] sm:$0xff] %v4036
      %4062 = vst [vmem:[%s219 + $0x38] sm:$0xff] %v4037
      %4063 = vst [vmem:[%s219 + $0x40] sm:$0xff] %v4038
      %4064 = vst [vmem:[%s219 + $0x48] sm:$0xff] %v4039
      %4065 = vst [vmem:[%s219 + $0x50] sm:$0xff] %v4040
      %4066 = vst [vmem:[%s219 + $0x58] sm:$0xff] %v4041
      %4067 = vst [vmem:[%s219 + $0x60] sm:$0xff] %v4042
      %4068 = vst [vmem:[%s219 + $0x68] sm:$0xff] %v4043
      %4069 = vst [vmem:[%s219 + $0x70] sm:$0xff] %v4044
      %4070 = vst [vmem:[%s219 + $0x78] sm:$0xff] %v4045
      %4071 = vst [vmem:[%s219 + $0x80] sm:$0xff] %v4046
      %4072 = vst [vmem:[%s219 + $0x88] sm:$0xff] %v4047
      %4073 = vst [vmem:[%s219 + $0x90] sm:$0xff] %v4048
      %4074 = vst [vmem:[%s219 + $0x98] sm:$0xff] %v4049
      %4075 = vst [vmem:[%s219 + $0xa0] sm:$0xff] %v4050
      %4076 = vst [vmem:[%s219 + $0xa8] sm:$0xff] %v4051
      %4077 = vst [vmem:[%s219 + $0xb0] sm:$0xff] %v4052
      %4078 = vst [vmem:[%s219 + $0xb8] sm:$0xff] %v4053
      %4079 = vst [vmem:[%s219 + $0xc0] sm:$0xff] %v4054
      %s4080 = smul.u32 %s20, 8
      %s4081 = ssub.s32 25, %s4080
      %p4082 = scmp.lt.s32.totalorder %s4081, 8
      %s4083 = scalar_select %p4082, %s4081, 8
      %s4084 = smul.u32 %s4083, 25
      %v4085 = vstv %s4084
      %vm4086 = vcmp.lt.s32.totalorder %v293, %v4085
      %vm4087 = vcmp.lt.s32.totalorder %v294, %v4085
      %vm4088 = vcmp.lt.s32.totalorder %v295, %v4085
      %vm4089 = vcmp.lt.s32.totalorder %v296, %v4085
      %vm4090 = vcmp.lt.s32.totalorder %v297, %v4085
      %vm4091 = vcmp.lt.s32.totalorder %v298, %v4085
      %vm4092 = vcmp.lt.s32.totalorder %v299, %v4085
      %vm4093 = vcmp.lt.s32.totalorder %v300, %v4085
      %vm4094 = vcmp.lt.s32.totalorder %v301, %v4085
      %vm4095 = vcmp.lt.s32.totalorder %v302, %v4085
      %vm4096 = vcmp.lt.s32.totalorder %v303, %v4085
      %vm4097 = vcmp.lt.s32.totalorder %v304, %v4085
      %vm4098 = vcmp.lt.s32.totalorder %v305, %v4085
      %vm4099 = vcmp.lt.s32.totalorder %v306, %v4085
      %vm4100 = vcmp.lt.s32.totalorder %v307, %v4085
      %vm4101 = vcmp.lt.s32.totalorder %v308, %v4085
      %vm4102 = vcmp.lt.s32.totalorder %v309, %v4085
      %vm4103 = vcmp.lt.s32.totalorder %v310, %v4085
      %vm4104 = vcmp.lt.s32.totalorder %v311, %v4085
      %vm4105 = vcmp.lt.s32.totalorder %v312, %v4085
      %vm4106 = vcmp.lt.s32.totalorder %v313, %v4085
      %vm4107 = vcmp.lt.s32.totalorder %v314, %v4085
      %vm4108 = vcmp.lt.s32.totalorder %v315, %v4085
      %vm4109 = vcmp.lt.s32.totalorder %v316, %v4085
      %vm4110 = vcmp.lt.s32.totalorder %v317, %v4085
      %v4111 = vsel %vm4086, 1, 0
      %v4112 = vsel %vm4087, 1, 0
      %v4113 = vsel %vm4088, 1, 0
      %v4114 = vsel %vm4089, 1, 0
      %v4115 = vsel %vm4090, 1, 0
      %v4116 = vsel %vm4091, 1, 0
      %v4117 = vsel %vm4092, 1, 0
      %v4118 = vsel %vm4093, 1, 0
      %v4119 = vsel %vm4094, 1, 0
      %v4120 = vsel %vm4095, 1, 0
      %v4121 = vsel %vm4096, 1, 0
      %v4122 = vsel %vm4097, 1, 0
      %v4123 = vsel %vm4098, 1, 0
      %v4124 = vsel %vm4099, 1, 0
      %v4125 = vsel %vm4100, 1, 0
      %v4126 = vsel %vm4101, 1, 0
      %v4127 = vsel %vm4102, 1, 0
      %v4128 = vsel %vm4103, 1, 0
      %v4129 = vsel %vm4104, 1, 0
      %v4130 = vsel %vm4105, 1, 0
      %v4131 = vsel %vm4106, 1, 0
      %v4132 = vsel %vm4107, 1, 0
      %v4133 = vsel %vm4108, 1, 0
      %v4134 = vsel %vm4109, 1, 0
      %v4135 = vsel %vm4110, 1, 0
      %vm4136 = vcmp.eq.s32.totalorder %v4111, 1
      %vm4137 = vcmp.eq.s32.totalorder %v4112, 1
      %vm4138 = vcmp.eq.s32.totalorder %v4113, 1
      %vm4139 = vcmp.eq.s32.totalorder %v4114, 1
      %vm4140 = vcmp.eq.s32.totalorder %v4115, 1
      %vm4141 = vcmp.eq.s32.totalorder %v4116, 1
      %vm4142 = vcmp.eq.s32.totalorder %v4117, 1
      %vm4143 = vcmp.eq.s32.totalorder %v4118, 1
      %vm4144 = vcmp.eq.s32.totalorder %v4119, 1
      %vm4145 = vcmp.eq.s32.totalorder %v4120, 1
      %vm4146 = vcmp.eq.s32.totalorder %v4121, 1
      %vm4147 = vcmp.eq.s32.totalorder %v4122, 1
      %vm4148 = vcmp.eq.s32.totalorder %v4123, 1
      %vm4149 = vcmp.eq.s32.totalorder %v4124, 1
      %vm4150 = vcmp.eq.s32.totalorder %v4125, 1
      %vm4151 = vcmp.eq.s32.totalorder %v4126, 1
      %vm4152 = vcmp.eq.s32.totalorder %v4127, 1
      %vm4153 = vcmp.eq.s32.totalorder %v4128, 1
      %vm4154 = vcmp.eq.s32.totalorder %v4129, 1
      %vm4155 = vcmp.eq.s32.totalorder %v4130, 1
      %vm4156 = vcmp.eq.s32.totalorder %v4131, 1
      %vm4157 = vcmp.eq.s32.totalorder %v4132, 1
      %vm4158 = vcmp.eq.s32.totalorder %v4133, 1
      %vm4159 = vcmp.eq.s32.totalorder %v4134, 1
      %vm4160 = vcmp.eq.s32.totalorder %v4135, 1
      %v4161 = vsel %vm4136, %v4030, 0.0
      %v4162 = vsel %vm4137, %v4031, 0.0
      %v4163 = vsel %vm4138, %v4032, 0.0
      %v4164 = vsel %vm4139, %v4033, 0.0
      %v4165 = vsel %vm4140, %v4034, 0.0
      %v4166 = vsel %vm4141, %v4035, 0.0
      %v4167 = vsel %vm4142, %v4036, 0.0
      %v4168 = vsel %vm4143, %v4037, 0.0
      %v4169 = vsel %vm4144, %v4038, 0.0
      %v4170 = vsel %vm4145, %v4039, 0.0
      %v4171 = vsel %vm4146, %v4040, 0.0
      %v4172 = vsel %vm4147, %v4041, 0.0
      %v4173 = vsel %vm4148, %v4042, 0.0
      %v4174 = vsel %vm4149, %v4043, 0.0
      %v4175 = vsel %vm4150, %v4044, 0.0
      %v4176 = vsel %vm4151, %v4045, 0.0
      %v4177 = vsel %vm4152, %v4046, 0.0
      %v4178 = vsel %vm4153, %v4047, 0.0
      %v4179 = vsel %vm4154, %v4048, 0.0
      %v4180 = vsel %vm4155, %v4049, 0.0
      %v4181 = vsel %vm4156, %v4050, 0.0
      %v4182 = vsel %vm4157, %v4051, 0.0
      %v4183 = vsel %vm4158, %v4052, 0.0
      %v4184 = vsel %vm4159, %v4053, 0.0
      %v4185 = vsel %vm4160, %v4054, 0.0
      %v4186 = vadd.f32 %v4161, %v4162
      %v4187 = vadd.f32 %v4186, %v4163
      %v4188 = vadd.f32 %v4187, %v4164
      %v4189 = vadd.f32 %v4188, %v4165
      %v4190 = vadd.f32 %v4189, %v4166
      %v4191 = vadd.f32 %v4190, %v4167
      %v4192 = vadd.f32 %v4191, %v4168
      %v4193 = vadd.f32 %v4192, %v4169
      %v4194 = vadd.f32 %v4193, %v4170
      %v4195 = vadd.f32 %v4194, %v4171
      %v4196 = vadd.f32 %v4195, %v4172
      %v4197 = vadd.f32 %v4196, %v4173
      %v4198 = vadd.f32 %v4197, %v4174
      %v4199 = vadd.f32 %v4198, %v4175
      %v4200 = vadd.f32 %v4199, %v4176
      %v4201 = vadd.f32 %v4200, %v4177
      %v4202 = vadd.f32 %v4201, %v4178
      %v4203 = vadd.f32 %v4202, %v4179
      %v4204 = vadd.f32 %v4203, %v4180
      %v4205 = vadd.f32 %v4204, %v4181
      %v4206 = vadd.f32 %v4205, %v4182
      %v4207 = vadd.f32 %v4206, %v4183
      %v4208 = vadd.f32 %v4207, %v4184
      %v4209 = vadd.f32 %v4208, %v4185
      %v4210 = vrot.slane %v4209, 4
      %v4211 = vadd.f32 %v4209, %v4210
      %v4212 = vrot.slane %v4211, 2
      %v4213 = vadd.f32 %v4211, %v4212
      %v4214 = vrot.slane %v4213, 1
      %v4215 = vadd.f32 %v4213, %v4214
      %s4216 = scvt.s32.f32 %s4084
      %v4217 = vstv %s4216
      %v4218 = vrcp.pop %v4217
      %s4219 = vtos %v4218
      %v4220 = vstv %s4219
      %v4221 = vmul.f32 %v4215, %v4220
      %v4222 = vsub.f32 %v4030, %v4221
      %v4223 = vsub.f32 %v4031, %v4221
      %v4224 = vsub.f32 %v4032, %v4221
      %v4225 = vsub.f32 %v4033, %v4221
      %v4226 = vsub.f32 %v4034, %v4221
      %v4227 = vsub.f32 %v4035, %v4221
      %v4228 = vsub.f32 %v4036, %v4221
      %v4229 = vsub.f32 %v4037, %v4221
      %v4230 = vsub.f32 %v4038, %v4221
      %v4231 = vsub.f32 %v4039, %v4221
      %v4232 = vsub.f32 %v4040, %v4221
      %v4233 = vsub.f32 %v4041, %v4221
      %v4234 = vsub.f32 %v4042, %v4221
      %v4235 = vsub.f32 %v4043, %v4221
      %v4236 = vsub.f32 %v4044, %v4221
      %v4237 = vsub.f32 %v4045, %v4221
      %v4238 = vsub.f32 %v4046, %v4221
      %v4239 = vsub.f32 %v4047, %v4221
      %v4240 = vsub.f32 %v4048, %v4221
      %v4241 = vsub.f32 %v4049, %v4221
      %v4242 = vsub.f32 %v4050, %v4221
      %v4243 = vsub.f32 %v4051, %v4221
      %v4244 = vsub.f32 %v4052, %v4221
      %v4245 = vsub.f32 %v4053, %v4221
      %v4246 = vsub.f32 %v4054, %v4221
      %v4247 = vsel %vm4136, %v4222, 0.0
      %v4248 = vsel %vm4137, %v4223, 0.0
      %v4249 = vsel %vm4138, %v4224, 0.0
      %v4250 = vsel %vm4139, %v4225, 0.0
      %v4251 = vsel %vm4140, %v4226, 0.0
      %v4252 = vsel %vm4141, %v4227, 0.0
      %v4253 = vsel %vm4142, %v4228, 0.0
      %v4254 = vsel %vm4143, %v4229, 0.0
      %v4255 = vsel %vm4144, %v4230, 0.0
      %v4256 = vsel %vm4145, %v4231, 0.0
      %v4257 = vsel %vm4146, %v4232, 0.0
      %v4258 = vsel %vm4147, %v4233, 0.0
      %v4259 = vsel %vm4148, %v4234, 0.0
      %v4260 = vsel %vm4149, %v4235, 0.0
      %v4261 = vsel %vm4150, %v4236, 0.0
      %v4262 = vsel %vm4151, %v4237, 0.0
      %v4263 = vsel %vm4152, %v4238, 0.0
      %v4264 = vsel %vm4153, %v4239, 0.0
      %v4265 = vsel %vm4154, %v4240, 0.0
      %v4266 = vsel %vm4155, %v4241, 0.0
      %v4267 = vsel %vm4156, %v4242, 0.0
      %v4268 = vsel %vm4157, %v4243, 0.0
      %v4269 = vsel %vm4158, %v4244, 0.0
      %v4270 = vsel %vm4159, %v4245, 0.0
      %v4271 = vsel %vm4160, %v4246, 0.0
      %v4272 = vmul.f32 %v4247, %v4247
      %v4273 = vmul.f32 %v4248, %v4248
      %v4274 = vmul.f32 %v4249, %v4249
      %v4275 = vmul.f32 %v4250, %v4250
      %v4276 = vmul.f32 %v4251, %v4251
      %v4277 = vmul.f32 %v4252, %v4252
      %v4278 = vmul.f32 %v4253, %v4253
      %v4279 = vmul.f32 %v4254, %v4254
      %v4280 = vmul.f32 %v4255, %v4255
      %v4281 = vmul.f32 %v4256, %v4256
      %v4282 = vmul.f32 %v4257, %v4257
      %v4283 = vmul.f32 %v4258, %v4258
      %v4284 = vmul.f32 %v4259, %v4259
      %v4285 = vmul.f32 %v4260, %v4260
      %v4286 = vmul.f32 %v4261, %v4261
      %v4287 = vmul.f32 %v4262, %v4262
      %v4288 = vmul.f32 %v4263, %v4263
      %v4289 = vmul.f32 %v4264, %v4264
      %v4290 = vmul.f32 %v4265, %v4265
      %v4291 = vmul.f32 %v4266, %v4266
      %v4292 = vmul.f32 %v4267, %v4267
      %v4293 = vmul.f32 %v4268, %v4268
      %v4294 = vmul.f32 %v4269, %v4269
      %v4295 = vmul.f32 %v4270, %v4270
      %v4296 = vmul.f32 %v4271, %v4271
      %v4297 = vadd.f32 %v4272, %v4273
      %v4298 = vadd.f32 %v4297, %v4274
      %v4299 = vadd.f32 %v4298, %v4275
      %v4300 = vadd.f32 %v4299, %v4276
      %v4301 = vadd.f32 %v4300, %v4277
      %v4302 = vadd.f32 %v4301, %v4278
      %v4303 = vadd.f32 %v4302, %v4279
      %v4304 = vadd.f32 %v4303, %v4280
      %v4305 = vadd.f32 %v4304, %v4281
      %v4306 = vadd.f32 %v4305, %v4282
      %v4307 = vadd.f32 %v4306, %v4283
      %v4308 = vadd.f32 %v4307, %v4284
      %v4309 = vadd.f32 %v4308, %v4285
      %v4310 = vadd.f32 %v4309, %v4286
      %v4311 = vadd.f32 %v4310, %v4287
      %v4312 = vadd.f32 %v4311, %v4288
      %v4313 = vadd.f32 %v4312, %v4289
      %v4314 = vadd.f32 %v4313, %v4290
      %v4315 = vadd.f32 %v4314, %v4291
      %v4316 = vadd.f32 %v4315, %v4292
      %v4317 = vadd.f32 %v4316, %v4293
      %v4318 = vadd.f32 %v4317, %v4294
      %v4319 = vadd.f32 %v4318, %v4295
      %v4320 = vadd.f32 %v4319, %v4296
      %v4321 = vrot.slane %v4320, 4
      %v4322 = vadd.f32 %v4320, %v4321
      %v4323 = vrot.slane %v4322, 2
      %v4324 = vadd.f32 %v4322, %v4323
      %v4325 = vrot.slane %v4324, 1
      %v4326 = vadd.f32 %v4324, %v4325
      %v4327 = vsel %vm901, %v4215, %v4326
      %4328 = vst [vmem:[%s227] sm:$0x3] %v4327
      %p4329 = scmp.lt.s32.totalorder %s19, 0
      %s4330 = scalar_select %p4329, %s19, 0
      %p4331 = scmp.lt.s32.totalorder %s20, 3
      %s4332 = scalar_select %p4331, %s20, 3
      %s4333 = smul.addr %s4332, 25
      %s4334 = smul.addr %s4330, 100
      %s4335 = sadd.s32 %s4333, %s4334
      %s4336 = smul.addr %s4335, 8
      %s4337 = scalar_lea.vmem %s2, %s4336
      %p4338 = scmp.lt.s32.totalorder %s19, 0
      %s4339 = scalar_select %p4338, %s19, 0
      %p4340 = scmp.lt.s32.totalorder %s20, 3
      %s4341 = scalar_select %p4340, %s20, 3
      %s4342 = smul.addr %s4339, 4
      %s4343 = sadd.s32 %s4341, %s4342
      %s4344 = smul.addr %s4343, 2
      %s4345 = scalar_lea.vmem %s3, %s4344
      // Predicated region
      $region29: #{fused_relu_conv_bn_relu.2} parent=27 // pred_check
        %p4346 = pneg %p96
      $region30: #{fused_relu_conv_bn_relu.2} parent=27 // pred_check_branch
        %4348 = sbr.rel (%p4346) target = $region32
      $region31: #{fused_relu_conv_bn_relu.2} parent=27 // pred_region
        _
      $region32: #{fused_relu_conv_bn_relu.2} parent=27 // pred_fallthru
        _
      // Predicated region
      $region33: #{fused_relu_conv_bn_relu.2} parent=27 // pred_check
        %p4349 = pneg %p124
      $region34: #{fused_relu_conv_bn_relu.2} parent=27 // pred_check_branch
        %4351 = sbr.rel (%p4349) target = $region36
      $region35: #{fused_relu_conv_bn_relu.2} parent=27 // pred_region
        _
      $region36: #{fused_relu_conv_bn_relu.2} parent=27 // pred_fallthru
        _
    $region28: #{fused_relu_conv_bn_relu.2} parent=5 // pred_fallthru
      _
    %p4352 = scmp.le.s32.totalorder 2, %s10
    // Predicated region
    $region37: #{fused_relu_conv_bn_relu.2} parent=5 // pred_check
      %p4353 = pneg %p4352
    $region38: #{fused_relu_conv_bn_relu.2} parent=5 // pred_check_branch
      %4355 = sbr.rel (%p4353) target = $region40
    $region39: #{fused_relu_conv_bn_relu.2} parent=5 // pred_region
      %s4356 = ssub.s32 %s10, 2
      // Predicated region
      $region41: #{fused_relu_conv_bn_relu.2} parent=39 // pred_check
        %p4357 = pneg %p102
      $region42: #{fused_relu_conv_bn_relu.2} parent=39 // pred_check_branch
        %4359 = sbr.rel (%p4357) target = $region44
      $region43: #{fused_relu_conv_bn_relu.2} parent=39 // pred_region
        %p4360 = scmp.lt.s32.totalorder %s21, 0
        %s4361 = scalar_select %p4360, %s21, 0
        %p4362 = scmp.lt.s32.totalorder %s22, 3
        %s4363 = scalar_select %p4362, %s22, 3
        %s4364 = smul.addr %s4363, 25
        %s4365 = smul.addr %s4361, 100
        %s4366 = sadd.s32 %s4364, %s4365
        %s4367 = smul.addr %s4366, 8
        %s4368 = scalar_lea.vmem %s2, %s4367
      $region44: #{fused_relu_conv_bn_relu.2} parent=39 // pred_fallthru
        _
      // Predicated region
      $region45: #{fused_relu_conv_bn_relu.2} parent=39 // pred_check
        %p4369 = pneg %p130
      $region46: #{fused_relu_conv_bn_relu.2} parent=39 // pred_check_branch
        %4371 = sbr.rel (%p4369) target = $region48
      $region47: #{fused_relu_conv_bn_relu.2} parent=39 // pred_region
        %p4372 = scmp.lt.s32.totalorder %s21, 0
        %s4373 = scalar_select %p4372, %s21, 0
        %p4374 = scmp.lt.s32.totalorder %s22, 3
        %s4375 = scalar_select %p4374, %s22, 3
        %s4376 = smul.addr %s4373, 4
        %s4377 = sadd.s32 %s4375, %s4376
        %s4378 = smul.addr %s4377, 2
        %s4379 = scalar_lea.vmem %s3, %s4378
      $region48: #{fused_relu_conv_bn_relu.2} parent=39 // pred_fallthru
        _
    $region40: #{fused_relu_conv_bn_relu.2} parent=5 // pred_fallthru
      _
  $region6: #{fused_relu_conv_bn_relu.2} parent=0 // loop_footer
    %s14 = sadd.s32 1, %s10
  $region7: #{fused_relu_conv_bn_relu.2} parent=0 // loop_footer_branch
    %9 = sbr.rel target = $region3
  $region8: #{fused_relu_conv_bn_relu.2} parent=0 // loop_exit
    _

</llo_original>
